<compile_context>
chip_gen: v5e
topology: v5e:2x2
jax: 0.10.0
libtpu: 0.0.40
codegen_flags: <defaults>
</compile_context>

<pallas_src>
import functools

import jax
import jax.numpy as jnp
from jax.experimental import pallas as pl
from jax.experimental.pallas import tpu as pltpu


NEG_SLOPE = 0.01  # PyTorch nn.LeakyReLU default negative slope.

# ~0.6 MB of VMEM per image (pads + staging + live values); 32 images stay
# well inside the 48 MiB scoped limit below on every generation (v7x has only
# 64 MiB physical per core).  For N > cap the grid has >= 2 "parallel" steps so
# both v7x TensorCores get work; on single-core v5e/v6e fewer, larger steps
# simply amortize the ~0.35 us per-step pipeline overhead.
_TILE_N_CAP = 32


def _round_up(x, m):
    return (x + m - 1) // m * m


def _leaky_relu(x):
    return jnp.where(x > 0, x, NEG_SLOPE * x)


def _pick_tile_n(n):
    return min(n, _TILE_N_CAP)


# ----------------------------------------------------------------------------
# Pallas kernel
# ----------------------------------------------------------------------------
def _im2col_3x3(pad_ref, h_out, w_out):
    """Fold the 9 taps into the GEMM K dim from a zero-padded bf16 VMEM ref.

    pad_ref : (T, h_out+2, >=w_out+2, C) bf16, halo/junk columns are zero.
    returns : (T*h_out*w_out, 9*C) bf16 LHS, rows ordered (t, h, w),
              K ordered (kh, kw, c) to match the pre-reshaped weights.
    """
    t, c = pad_ref.shape[0], pad_ref.shape[3]
    parts = [pad_ref[:, kh:kh + h_out, kw:kw + w_out, :]
             for kh in range(3) for kw in range(3)]
    return jnp.concatenate(parts, axis=-1).reshape(t * h_out * w_out, 9 * c)


def _conv_pool_act(lhs, w_ref, b_ref, tmp_ref, t, h_in, w_comp, w_real):
    """conv-as-GEMM + 2x2 maxpool + bias + LeakyReLU (bias/act hoisted after
    the pool, valid because LeakyReLU is monotone and the bias is constant
    over each pool window).

    lhs     : (t*h_in*w_comp, K) bf16, rows ordered (t, h, w).
    w_ref   : (K, Cout) bf16.      b_ref : (1, 1, 1, Cout) f32.
    tmp_ref : (t, h_in//2, w_comp, Cout) f32 staging scratch for the row-pooled
              map, so the column-pair pool is one bulk store + 2 strided reads
              instead of per-column masked stores.
    returns : (t, h_in//2, w_real//2, Cout) f32.
    """
    cout = w_ref.shape[1]
    acc = jnp.dot(lhs, w_ref[...], preferred_element_type=jnp.float32)
    # Row-pair pool: leading-dim reshape + max (no relayout).
    z = acc.reshape(t, h_in // 2, 2, w_comp, cout).max(axis=2)
    tmp_ref[...] = z
    # Column-pair pool: sublane-strided reads of even/odd columns + one max.
    even = tmp_ref[:, :, pl.ds(0, w_real // 2, 2), :]
    odd = tmp_ref[:, :, pl.ds(1, w_real // 2, 2), :]
    return _leaky_relu(jnp.maximum(even, odd) + b_ref[...])


def _fused_cnn_kernel(x_ref, w1_ref, b1_ref, w2_ref, b2_ref, w3_ref, b3_ref,
                      fcw_ref, fcb_ref, out_ref,
                      pad2_ref, pad3_ref, tmp1_ref, tmp2_ref, tmp3_ref, *, dims):
    (h1, wd1), (h2, wd2, wc2), (h3, wd3, wc3) = dims
    t = x_ref.shape[0]

    # -------- block 1: conv1 (im2col done in the wrapper) + pool + LeakyReLU
    lhs1 = x_ref[...].reshape(t * h1 * wd1, x_ref.shape[3])
    a1 = _conv_pool_act(lhs1, w1_ref, b1_ref, tmp1_ref, t, h1, wd1, wd1)

    # Zero the whole (small, bf16) padded scratch every step: the halo / junk
    # columns must be zero, and a program_id==0-only init would be incorrect
    # when the "parallel" batch axis is split across TensorCores (each core
    # has its own scratch).  Cost is a few tens of KB of stores per step.
    pad2_ref[...] = jnp.zeros_like(pad2_ref)
    pad2_ref[:, 1:1 + h2, 1:1 + wd2, :] = a1.astype(pad2_ref.dtype)

    # -------- block 2
    lhs2 = _im2col_3x3(pad2_ref, h2, wc2)
    a2 = _conv_pool_act(lhs2, w2_ref, b2_ref, tmp2_ref, t, h2, wc2, wd2)

    pad3_ref[...] = jnp.zeros_like(pad3_ref)
    pad3_ref[:, 1:1 + h3, 1:1 + wd3, :] = a2.astype(pad3_ref.dtype)

    # -------- block 3
    lhs3 = _im2col_3x3(pad3_ref, h3, wc3)
    a3 = _conv_pool_act(lhs3, w3_ref, b3_ref, tmp3_ref, t, h3, wc3, wd3)
    # a3 : (t, H//8, W//8, 128) f32

    # Dropout(p=0.3): identity in eval/inference mode.
    # TODO(synk): training-mode dropout (random mask + 1/(1-p) scale) not implemented.

    # -------- fc1 + sigmoid epilogue: one bulk multiply + lane reduce.
    # fc weights were pre-permuted to the kernel's (h, w, c) order.
    s = jnp.sum(a3 * fcw_ref[...], axis=-1, keepdims=True)   # (t, h8, w8, 1)
    h8, w8 = a3.shape[1], a3.shape[2]
    logit = fcb_ref[...]                                      # (1, 1, 1, 1)
    for i in range(h8):
        for j in range(w8):
            logit = logit + s[:, i:i + 1, j:j + 1, :]

    # Numerically-stable sigmoid.
    out_ref[...] = jnp.where(
        logit >= 0,
        1.0 / (1.0 + jnp.exp(-logit)),
        jnp.exp(logit) / (1.0 + jnp.exp(logit))).astype(out_ref.dtype)


# ----------------------------------------------------------------------------
# Wrapper
# ----------------------------------------------------------------------------
@functools.partial(jax.jit, static_argnames=("image_dim",))
def simple_cnn_forward(x_nchw, params, image_dim=(16, 16)):
    H, W = image_dim
    assert H % 8 == 0 and W % 8 == 0
    N, c_in = x_nchw.shape[0], x_nchw.shape[1]

    h1, wd1 = H, W
    h2, wd2 = H // 2, W // 2
    h3, wd3 = H // 4, W // 4
    wc2, wc3 = _round_up(wd2, 8), _round_up(wd3, 8)
    h8, w8 = H // 8, W // 8
    kcin = 9 * c_in

    # Block-1 im2col in the wrapper (pure layout plumbing, ~18 KB/image bf16):
    # the kernel's block-1 LHS arrives lane-dense with zero in-kernel shifting,
    # and the HBM input ships as bf16 (halves the input DMA + VMEM block).
    x = jnp.transpose(x_nchw, (0, 2, 3, 1))                       # NHWC
    xp = jnp.pad(x, ((0, 0), (1, 1), (1, 1), (0, 0)))
    xcol = jnp.concatenate(
        [xp[:, kh:kh + H, kw:kw + W, :] for kh in range(3) for kw in range(3)],
        axis=-1).astype(jnp.bfloat16)                             # (N, H, W, 9*c_in)

    tile_n = _pick_tile_n(N)
    n_pad = pl.cdiv(N, tile_n) * tile_n
    if n_pad != N:  # keep an awkward N from collapsing the tile size
        xcol = jnp.pad(xcol, ((0, n_pad - N), (0, 0), (0, 0), (0, 0)))

    kernel = functools.partial(
        _fused_cnn_kernel,
        dims=((h1, wd1), (h2, wd2, wc2), (h3, wd3, wc3)))

    flops = 2 * n_pad * (h1 * wd1 * kcin * 32
                         + h2 * wc2 * 9 * 32 * 64
                         + h3 * wc3 * 9 * 64 * 128
                         + h8 * w8 * 128)
    bytes_accessed = (n_pad * h1 * wd1 * kcin * 2 + n_pad * 4
                      + 2 * (kcin * 32 + 9 * 32 * 64 + 9 * 64 * 128 + h8 * w8 * 128))
    cost = pl.CostEstimate(flops=flops, transcendentals=n_pad,
                           bytes_accessed=bytes_accessed)

    out = pl.pallas_call(
        kernel,
        out_shape=jax.ShapeDtypeStruct((n_pad, 1, 1, 1), jnp.float32),
        grid=(n_pad // tile_n,),
        in_specs=[
            pl.BlockSpec((tile_n, h1, wd1, kcin), lambda n: (n, 0, 0, 0)),
            pl.BlockSpec((kcin, 32), lambda n: (0, 0)),
            pl.BlockSpec((1, 1, 1, 32), lambda n: (0, 0, 0, 0)),
            pl.BlockSpec((9 * 32, 64), lambda n: (0, 0)),
            pl.BlockSpec((1, 1, 1, 64), lambda n: (0, 0, 0, 0)),
            pl.BlockSpec((9 * 64, 128), lambda n: (0, 0)),
            pl.BlockSpec((1, 1, 1, 128), lambda n: (0, 0, 0, 0)),
            pl.BlockSpec((1, h8, w8, 128), lambda n: (0, 0, 0, 0)),
            pl.BlockSpec((1, 1, 1, 1), lambda n: (0, 0, 0, 0)),
        ],
        out_specs=pl.BlockSpec((tile_n, 1, 1, 1), lambda n: (n, 0, 0, 0)),
        scratch_shapes=[
            pltpu.VMEM((tile_n, h2 + 2, wc2 + 2, 32), jnp.bfloat16),   # block-2 padded input
            pltpu.VMEM((tile_n, h3 + 2, wc3 + 2, 64), jnp.bfloat16),   # block-3 padded input
            pltpu.VMEM((tile_n, h1 // 2, wd1, 32), jnp.float32),       # block-1 row-pooled stage
            pltpu.VMEM((tile_n, h2 // 2, wc2, 64), jnp.float32),       # block-2 row-pooled stage
            pltpu.VMEM((tile_n, h3 // 2, wc3, 128), jnp.float32),      # block-3 row-pooled stage
        ],
        compiler_params=pltpu.CompilerParams(
            dimension_semantics=("parallel",),
            vmem_limit_bytes=48 * 1024 * 1024),
        cost_estimate=cost,
    )(xcol, params["w1"], params["b1"], params["w2"], params["b2"],
      params["w3"], params["b3"], params["fc_w"], params["fc_b"])
    return out.reshape(n_pad, 1)[:N]


# ----------------------------------------------------------------------------
# Parameter preparation (PyTorch layout -> kernel layout)
# ----------------------------------------------------------------------------
def torch_conv_w_to_gemm(w_oihw):
    """(Cout, Cin, 3, 3) -> (9*Cin, Cout) bf16, K ordered (kh, kw, cin)."""
    cout, cin, kh, kw = w_oihw.shape
    return jnp.transpose(w_oihw, (2, 3, 1, 0)).reshape(kh * kw * cin, cout).astype(
        jnp.bfloat16)


def torch_fc_to_kernel(fc_w, fc_b, h8, w8):
    """PyTorch fc1.weight (1, 128*h8*w8), features in (c, h, w) order ->
    (1, h8, w8, 128) pre-permuted to the kernel's NHWC flatten order."""
    w = fc_w.reshape(1, 128, h8, w8)
    w = jnp.transpose(w, (0, 2, 3, 1))
    return w.astype(jnp.float32), fc_b.reshape(1, 1, 1, 1).astype(jnp.float32)


def init_torch_params(key, image_dim):
    H, W = image_dim
    last = (H // 8) * (W // 8) * 128
    ks = jax.random.split(key, 8)

    def conv_init(kw_key, kb_key, cout, cin):
        w = jax.random.normal(kw_key, (cout, cin, 3, 3), jnp.float32) / jnp.sqrt(9.0 * cin)
        b = jax.random.normal(kb_key, (cout,), jnp.float32) * 0.01
        return w, b

    w1, b1 = conv_init(ks[0], ks[1], 32, 4)
    w2, b2 = conv_init(ks[2], ks[3], 64, 32)
    w3, b3 = conv_init(ks[4], ks[5], 128, 64)
    fc_w = jax.random.normal(ks[6], (1, last), jnp.float32) / jnp.sqrt(last)
    fc_b = jax.random.normal(ks[7], (1,), jnp.float32) * 0.01
    return dict(w1=w1, b1=b1, w2=w2, b2=b2, w3=w3, b3=b3, fc_w=fc_w, fc_b=fc_b)


def torch_params_to_kernel(tp, image_dim):
    H, W = image_dim
    fc_w, fc_b = torch_fc_to_kernel(tp["fc_w"], tp["fc_b"], H // 8, W // 8)
    return {
        "w1": torch_conv_w_to_gemm(tp["w1"]),
        "b1": tp["b1"].reshape(1, 1, 1, -1).astype(jnp.float32),
        "w2": torch_conv_w_to_gemm(tp["w2"]),
        "b2": tp["b2"].reshape(1, 1, 1, -1).astype(jnp.float32),
        "w3": torch_conv_w_to_gemm(tp["w3"]),
        "b3": tp["b3"].reshape(1, 1, 1, -1).astype(jnp.float32),
        "fc_w": fc_w,
        "fc_b": fc_b,
    }


# ----------------------------------------------------------------------------
# Pure-XLA reference (mirrors the PyTorch module; bf16 matmul inputs + f32
# accumulation, exactly like the Pallas kernel) for a correctness check.
# ----------------------------------------------------------------------------
def reference_forward(x_nchw, tp):
    def block(x, w, b):
        z = jax.lax.conv_general_dilated(
            x.astype(jnp.bfloat16), w.astype(jnp.bfloat16),
            window_strides=(1, 1), padding=((1, 1), (1, 1)),
            dimension_numbers=("NCHW", "OIHW", "NCHW"),
            preferred_element_type=jnp.float32)
        z = z + b[None, :, None, None]
        z = jnp.where(z > 0, z, NEG_SLOPE * z)
        return jax.lax.reduce_window(z, -jnp.inf, jax.lax.max,
                                     (1, 1, 2, 2), (1, 1, 2, 2), "VALID")

    a = block(x_nchw.astype(jnp.float32), tp["w1"], tp["b1"])
    a = block(a, tp["w2"], tp["b2"])
    a = block(a, tp["w3"], tp["b3"])
    flat = a.reshape(a.shape[0], -1)              # NCHW flatten == torch .view()
    logit = flat @ tp["fc_w"].T + tp["fc_b"]
    return jax.nn.sigmoid(logit)


if __name__ == "__main__":
    key = jax.random.PRNGKey(0)
    k_x, k_p = jax.random.split(key)

    image_dim = (16, 16)                          # (height, width)
    x = jax.random.normal(k_x, (2, 4, image_dim[0], image_dim[1]), jnp.float32)  # NCHW

    torch_params = init_torch_params(k_p, image_dim)
    params = torch_params_to_kernel(torch_params, image_dim)

    out = jax.block_until_ready(simple_cnn_forward(x, params, image_dim=image_dim))
    ref = jax.block_until_ready(reference_forward(x, torch_params))

    assert out.shape == (2, 1), out.shape
    assert bool(jnp.all(jnp.isfinite(out)))
    assert bool(jnp.all((out >= 0.0) & (out <= 1.0)))            # sigmoid range
    assert bool(jnp.allclose(out, ref, atol=5e-3)), (out, ref)   # matches PyTorch math
    print("KERNEL_OK")
</pallas_src>

<mosaic_0001>
module attributes {stable_mosaic.version = 11 : i64} {
  func.func @_fused_cnn_kernel(%arg0: i32, %arg1: memref<2x16x16x36xbf16, #tpu.memory_space<vmem>>, %arg2: memref<36x32xbf16, #tpu.memory_space<vmem>>, %arg3: memref<1x1x1x32xf32, #tpu.memory_space<vmem>>, %arg4: memref<288x64xbf16, #tpu.memory_space<vmem>>, %arg5: memref<1x1x1x64xf32, #tpu.memory_space<vmem>>, %arg6: memref<576x128xbf16, #tpu.memory_space<vmem>>, %arg7: memref<1x1x1x128xf32, #tpu.memory_space<vmem>>, %arg8: memref<1x2x2x128xf32, #tpu.memory_space<vmem>>, %arg9: memref<1x1x1x1xf32, #tpu.memory_space<vmem>>, %arg10: memref<2x1x1x1xf32, #tpu.memory_space<vmem>>, %arg11: memref<2x10x10x32xbf16, #tpu.memory_space<vmem>>, %arg12: memref<2x6x10x64xbf16, #tpu.memory_space<vmem>>, %arg13: memref<2x8x16x32xf32, #tpu.memory_space<vmem>>, %arg14: memref<2x4x8x64xf32, #tpu.memory_space<vmem>>, %arg15: memref<2x2x8x128xf32, #tpu.memory_space<vmem>>) attributes {dimension_semantics = [#tpu.dimension_semantics<parallel>], iteration_bounds = array<i64: 1>, scalar_prefetch = 0 : i64, scratch_operands = 5 : i64, tpu.core_type = #tpu.core_type<tc>, window_params = [{transform_indices = @transform_0, window_bounds = array<i64: 2, 16, 16, 36>}, {pipeline_mode = #tpu.pipeline_mode<synchronous>, transform_indices = @transform_1, window_bounds = array<i64: 36, 32>}, {pipeline_mode = #tpu.pipeline_mode<synchronous>, transform_indices = @transform_2, window_bounds = array<i64: 1, 1, 1, 32>}, {pipeline_mode = #tpu.pipeline_mode<synchronous>, transform_indices = @transform_3, window_bounds = array<i64: 288, 64>}, {pipeline_mode = #tpu.pipeline_mode<synchronous>, transform_indices = @transform_4, window_bounds = array<i64: 1, 1, 1, 64>}, {pipeline_mode = #tpu.pipeline_mode<synchronous>, transform_indices = @transform_5, window_bounds = array<i64: 576, 128>}, {pipeline_mode = #tpu.pipeline_mode<synchronous>, transform_indices = @transform_6, window_bounds = array<i64: 1, 1, 1, 128>}, {pipeline_mode = #tpu.pipeline_mode<synchronous>, transform_indices = @transform_7, window_bounds = array<i64: 1, 2, 2, 128>}, {pipeline_mode = #tpu.pipeline_mode<synchronous>, transform_indices = @transform_8, window_bounds = array<i64: 1, 1, 1, 1>}, {transform_indices = @transform_9, window_bounds = array<i64: 2, 1, 1, 1>}]} {
    %c0 = arith.constant 0 : index
    %c0_0 = arith.constant 0 : index
    %c0_1 = arith.constant 0 : index
    %c0_2 = arith.constant 0 : index
    %0 = vector.load %arg1[%c0, %c0_0, %c0_1, %c0_2] : memref<2x16x16x36xbf16, #tpu.memory_space<vmem>>, vector<2x16x16x36xbf16>
    %1 = vector.shape_cast %0 : vector<2x16x16x36xbf16> to vector<512x36xbf16>
    %c0_3 = arith.constant 0 : index
    %c0_4 = arith.constant 0 : index
    %2 = vector.load %arg2[%c0_3, %c0_4] : memref<36x32xbf16, #tpu.memory_space<vmem>>, vector<36x32xbf16>
    %cst = arith.constant dense<0.000000e+00> : vector<512x32xf32>
    %3 = tpu.matmul %1, %2, %cst {dimension_numbers = #tpu.dot_dimension_numbers<[1], [0], [0], [1], [0, 0, 1, 1], [], []>} : vector<512x36xbf16>, vector<36x32xbf16>, vector<512x32xf32> -> vector<512x32xf32>
    %4 = vector.shape_cast %3 : vector<512x32xf32> to vector<2x8x2x16x32xf32>
    %cst_5 = arith.constant dense<0xFF800000> : vector<2x8x16x32xf32>
    %5 = vector.multi_reduction <maximumf>, %4, %cst_5 [2] : vector<2x8x2x16x32xf32> to vector<2x8x16x32xf32>
    %c0_6 = arith.constant 0 : index
    %c0_7 = arith.constant 0 : index
    %c0_8 = arith.constant 0 : index
    %c0_9 = arith.constant 0 : index
    %6 = vector.load %arg13[%c0_6, %c0_7, %c0_8, %c0_9] : memref<2x8x16x32xf32, #tpu.memory_space<vmem>>, vector<2x8x16x32xf32>
    tpu.vector_store %arg13[%c0_6, %c0_7, %c0_8, %c0_9], %5 {strides = array<i32>} : memref<2x8x16x32xf32, #tpu.memory_space<vmem>>, vector<2x8x16x32xf32>,
    %c0_10 = arith.constant 0 : index
    %c0_11 = arith.constant 0 : index
    %c0_12 = arith.constant 0 : index
    %c0_13 = arith.constant 0 : index
    %7 = tpu.strided_load %arg13[%c0_10, %c0_11, %c0_12, %c0_13] {strides = array<i32: 1, 1, 2, 1>} : memref<2x8x16x32xf32, #tpu.memory_space<vmem>>, vector<2x8x8x32xf32>
    %c0_14 = arith.constant 0 : index
    %c0_15 = arith.constant 0 : index
    %c1 = arith.constant 1 : index
    %c0_16 = arith.constant 0 : index
    %8 = tpu.strided_load %arg13[%c0_14, %c0_15, %c1, %c0_16] {strides = array<i32: 1, 1, 2, 1>} : memref<2x8x16x32xf32, #tpu.memory_space<vmem>>, vector<2x8x8x32xf32>
    %9 = arith.maximumf %7, %8 : vector<2x8x8x32xf32>
    %c0_17 = arith.constant 0 : index
    %c0_18 = arith.constant 0 : index
    %c0_19 = arith.constant 0 : index
    %c0_20 = arith.constant 0 : index
    %10 = vector.load %arg3[%c0_17, %c0_18, %c0_19, %c0_20] : memref<1x1x1x32xf32, #tpu.memory_space<vmem>>, vector<1x1x1x32xf32>
    %11 = vector.broadcast %10 : vector<1x1x1x32xf32> to vector<2x8x8x32xf32>
    %12 = arith.addf %9, %11 : vector<2x8x8x32xf32>
    %cst_21 = arith.constant 0.000000e+00 : f32
    %13 = vector.broadcast %cst_21 : f32 to vector<2x8x8x32xf32>
    %14 = arith.cmpf ogt, %12, %13 : vector<2x8x8x32xf32>
    %cst_22 = arith.constant 0.00999999977 : f32
    %15 = vector.broadcast %cst_22 : f32 to vector<2x8x8x32xf32>
    %16 = arith.mulf %15, %12 : vector<2x8x8x32xf32>
    %17 = arith.select %14, %12, %16 : vector<2x8x8x32xi1>, vector<2x8x8x32xf32>
    %cst_23 = arith.constant 0.000000e+00 : bf16
    %18 = vector.broadcast %cst_23 : bf16 to vector<2x10x10x32xbf16>
    %c0_24 = arith.constant 0 : index
    %c0_25 = arith.constant 0 : index
    %c0_26 = arith.constant 0 : index
    %c0_27 = arith.constant 0 : index
    %19 = vector.load %arg11[%c0_24, %c0_25, %c0_26, %c0_27] : memref<2x10x10x32xbf16, #tpu.memory_space<vmem>>, vector<2x10x10x32xbf16>
    tpu.vector_store %arg11[%c0_24, %c0_25, %c0_26, %c0_27], %18 {strides = array<i32>} : memref<2x10x10x32xbf16, #tpu.memory_space<vmem>>, vector<2x10x10x32xbf16>,
    %20 = arith.truncf %17 : vector<2x8x8x32xf32> to vector<2x8x8x32xbf16>
    %c0_28 = arith.constant 0 : index
    %c1_29 = arith.constant 1 : index
    %c1_30 = arith.constant 1 : index
    %c0_31 = arith.constant 0 : index
    %21 = vector.load %arg11[%c0_28, %c1_29, %c1_30, %c0_31] : memref<2x10x10x32xbf16, #tpu.memory_space<vmem>>, vector<2x8x8x32xbf16>
    tpu.vector_store %arg11[%c0_28, %c1_29, %c1_30, %c0_31], %20 {strides = array<i32>} : memref<2x10x10x32xbf16, #tpu.memory_space<vmem>>, vector<2x8x8x32xbf16>,
    %c0_32 = arith.constant 0 : index
    %c0_33 = arith.constant 0 : index
    %c0_34 = arith.constant 0 : index
    %c0_35 = arith.constant 0 : index
    %22 = vector.load %arg11[%c0_32, %c0_33, %c0_34, %c0_35] : memref<2x10x10x32xbf16, #tpu.memory_space<vmem>>, vector<2x8x8x32xbf16>
    %c0_36 = arith.constant 0 : index
    %c0_37 = arith.constant 0 : index
    %c1_38 = arith.constant 1 : index
    %c0_39 = arith.constant 0 : index
    %23 = vector.load %arg11[%c0_36, %c0_37, %c1_38, %c0_39] : memref<2x10x10x32xbf16, #tpu.memory_space<vmem>>, vector<2x8x8x32xbf16>
    %c0_40 = arith.constant 0 : index
    %c0_41 = arith.constant 0 : index
    %c2 = arith.constant 2 : index
    %c0_42 = arith.constant 0 : index
    %24 = vector.load %arg11[%c0_40, %c0_41, %c2, %c0_42] : memref<2x10x10x32xbf16, #tpu.memory_space<vmem>>, vector<2x8x8x32xbf16>
    %c0_43 = arith.constant 0 : index
    %c1_44 = arith.constant 1 : index
    %c0_45 = arith.constant 0 : index
    %c0_46 = arith.constant 0 : index
    %25 = vector.load %arg11[%c0_43, %c1_44, %c0_45, %c0_46] : memref<2x10x10x32xbf16, #tpu.memory_space<vmem>>, vector<2x8x8x32xbf16>
    %c0_47 = arith.constant 0 : index
    %c1_48 = arith.constant 1 : index
    %c1_49 = arith.constant 1 : index
    %c0_50 = arith.constant 0 : index
    %26 = vector.load %arg11[%c0_47, %c1_48, %c1_49, %c0_50] : memref<2x10x10x32xbf16, #tpu.memory_space<vmem>>, vector<2x8x8x32xbf16>
    %c0_51 = arith.constant 0 : index
    %c1_52 = arith.constant 1 : index
    %c2_53 = arith.constant 2 : index
    %c0_54 = arith.constant 0 : index
    %27 = vector.load %arg11[%c0_51, %c1_52, %c2_53, %c0_54] : memref<2x10x10x32xbf16, #tpu.memory_space<vmem>>, vector<2x8x8x32xbf16>
    %c0_55 = arith.constant 0 : index
    %c2_56 = arith.constant 2 : index
    %c0_57 = arith.constant 0 : index
    %c0_58 = arith.constant 0 : index
    %28 = vector.load %arg11[%c0_55, %c2_56, %c0_57, %c0_58] : memref<2x10x10x32xbf16, #tpu.memory_space<vmem>>, vector<2x8x8x32xbf16>
    %c0_59 = arith.constant 0 : index
    %c2_60 = arith.constant 2 : index
    %c1_61 = arith.constant 1 : index
    %c0_62 = arith.constant 0 : index
    %29 = vector.load %arg11[%c0_59, %c2_60, %c1_61, %c0_62] : memref<2x10x10x32xbf16, #tpu.memory_space<vmem>>, vector<2x8x8x32xbf16>
    %c0_63 = arith.constant 0 : index
    %c2_64 = arith.constant 2 : index
    %c2_65 = arith.constant 2 : index
    %c0_66 = arith.constant 0 : index
    %30 = vector.load %arg11[%c0_63, %c2_64, %c2_65, %c0_66] : memref<2x10x10x32xbf16, #tpu.memory_space<vmem>>, vector<2x8x8x32xbf16>
    %31 = tpu.concatenate %22, %23, %24, %25, %26, %27, %28, %29, %30 in 3 : vector<2x8x8x32xbf16>, vector<2x8x8x32xbf16>, vector<2x8x8x32xbf16>, vector<2x8x8x32xbf16>, vector<2x8x8x32xbf16>, vector<2x8x8x32xbf16>, vector<2x8x8x32xbf16>, vector<2x8x8x32xbf16>, vector<2x8x8x32xbf16> -> vector<2x8x8x288xbf16>
    %32 = vector.shape_cast %31 : vector<2x8x8x288xbf16> to vector<128x288xbf16>
    %c0_67 = arith.constant 0 : index
    %c0_68 = arith.constant 0 : index
    %33 = vector.load %arg4[%c0_67, %c0_68] : memref<288x64xbf16, #tpu.memory_space<vmem>>, vector<288x64xbf16>
    %cst_69 = arith.constant dense<0.000000e+00> : vector<128x64xf32>
    %34 = tpu.matmul %32, %33, %cst_69 {dimension_numbers = #tpu.dot_dimension_numbers<[1], [0], [0], [1], [0, 0, 1, 1], [], []>} : vector<128x288xbf16>, vector<288x64xbf16>, vector<128x64xf32> -> vector<128x64xf32>
    %35 = vector.shape_cast %34 : vector<128x64xf32> to vector<2x4x2x8x64xf32>
    %cst_70 = arith.constant dense<0xFF800000> : vector<2x4x8x64xf32>
    %36 = vector.multi_reduction <maximumf>, %35, %cst_70 [2] : vector<2x4x2x8x64xf32> to vector<2x4x8x64xf32>
    %c0_71 = arith.constant 0 : index
    %c0_72 = arith.constant 0 : index
    %c0_73 = arith.constant 0 : index
    %c0_74 = arith.constant 0 : index
    %37 = vector.load %arg14[%c0_71, %c0_72, %c0_73, %c0_74] : memref<2x4x8x64xf32, #tpu.memory_space<vmem>>, vector<2x4x8x64xf32>
    tpu.vector_store %arg14[%c0_71, %c0_72, %c0_73, %c0_74], %36 {strides = array<i32>} : memref<2x4x8x64xf32, #tpu.memory_space<vmem>>, vector<2x4x8x64xf32>,
    %c0_75 = arith.constant 0 : index
    %c0_76 = arith.constant 0 : index
    %c0_77 = arith.constant 0 : index
    %c0_78 = arith.constant 0 : index
    %38 = tpu.strided_load %arg14[%c0_75, %c0_76, %c0_77, %c0_78] {strides = array<i32: 1, 1, 2, 1>} : memref<2x4x8x64xf32, #tpu.memory_space<vmem>>, vector<2x4x4x64xf32>
    %c0_79 = arith.constant 0 : index
    %c0_80 = arith.constant 0 : index
    %c1_81 = arith.constant 1 : index
    %c0_82 = arith.constant 0 : index
    %39 = tpu.strided_load %arg14[%c0_79, %c0_80, %c1_81, %c0_82] {strides = array<i32: 1, 1, 2, 1>} : memref<2x4x8x64xf32, #tpu.memory_space<vmem>>, vector<2x4x4x64xf32>
    %40 = arith.maximumf %38, %39 : vector<2x4x4x64xf32>
    %c0_83 = arith.constant 0 : index
    %c0_84 = arith.constant 0 : index
    %c0_85 = arith.constant 0 : index
    %c0_86 = arith.constant 0 : index
    %41 = vector.load %arg5[%c0_83, %c0_84, %c0_85, %c0_86] : memref<1x1x1x64xf32, #tpu.memory_space<vmem>>, vector<1x1x1x64xf32>
    %42 = vector.broadcast %41 : vector<1x1x1x64xf32> to vector<2x4x4x64xf32>
    %43 = arith.addf %40, %42 : vector<2x4x4x64xf32>
    %cst_87 = arith.constant 0.000000e+00 : f32
    %44 = vector.broadcast %cst_87 : f32 to vector<2x4x4x64xf32>
    %45 = arith.cmpf ogt, %43, %44 : vector<2x4x4x64xf32>
    %cst_88 = arith.constant 0.00999999977 : f32
    %46 = vector.broadcast %cst_88 : f32 to vector<2x4x4x64xf32>
    %47 = arith.mulf %46, %43 : vector<2x4x4x64xf32>
    %48 = arith.select %45, %43, %47 : vector<2x4x4x64xi1>, vector<2x4x4x64xf32>
    %cst_89 = arith.constant 0.000000e+00 : bf16
    %49 = vector.broadcast %cst_89 : bf16 to vector<2x6x10x64xbf16>
    %c0_90 = arith.constant 0 : index
    %c0_91 = arith.constant 0 : index
    %c0_92 = arith.constant 0 : index
    %c0_93 = arith.constant 0 : index
    %50 = vector.load %arg12[%c0_90, %c0_91, %c0_92, %c0_93] : memref<2x6x10x64xbf16, #tpu.memory_space<vmem>>, vector<2x6x10x64xbf16>
    tpu.vector_store %arg12[%c0_90, %c0_91, %c0_92, %c0_93], %49 {strides = array<i32>} : memref<2x6x10x64xbf16, #tpu.memory_space<vmem>>, vector<2x6x10x64xbf16>,
    %51 = arith.truncf %48 : vector<2x4x4x64xf32> to vector<2x4x4x64xbf16>
    %c0_94 = arith.constant 0 : index
    %c1_95 = arith.constant 1 : index
    %c1_96 = arith.constant 1 : index
    %c0_97 = arith.constant 0 : index
    %52 = vector.load %arg12[%c0_94, %c1_95, %c1_96, %c0_97] : memref<2x6x10x64xbf16, #tpu.memory_space<vmem>>, vector<2x4x4x64xbf16>
    tpu.vector_store %arg12[%c0_94, %c1_95, %c1_96, %c0_97], %51 {strides = array<i32>} : memref<2x6x10x64xbf16, #tpu.memory_space<vmem>>, vector<2x4x4x64xbf16>,
    %c0_98 = arith.constant 0 : index
    %c0_99 = arith.constant 0 : index
    %c0_100 = arith.constant 0 : index
    %c0_101 = arith.constant 0 : index
    %53 = vector.load %arg12[%c0_98, %c0_99, %c0_100, %c0_101] : memref<2x6x10x64xbf16, #tpu.memory_space<vmem>>, vector<2x4x8x64xbf16>
    %c0_102 = arith.constant 0 : index
    %c0_103 = arith.constant 0 : index
    %c1_104 = arith.constant 1 : index
    %c0_105 = arith.constant 0 : index
    %54 = vector.load %arg12[%c0_102, %c0_103, %c1_104, %c0_105] : memref<2x6x10x64xbf16, #tpu.memory_space<vmem>>, vector<2x4x8x64xbf16>
    %c0_106 = arith.constant 0 : index
    %c0_107 = arith.constant 0 : index
    %c2_108 = arith.constant 2 : index
    %c0_109 = arith.constant 0 : index
    %55 = vector.load %arg12[%c0_106, %c0_107, %c2_108, %c0_109] : memref<2x6x10x64xbf16, #tpu.memory_space<vmem>>, vector<2x4x8x64xbf16>
    %c0_110 = arith.constant 0 : index
    %c1_111 = arith.constant 1 : index
    %c0_112 = arith.constant 0 : index
    %c0_113 = arith.constant 0 : index
    %56 = vector.load %arg12[%c0_110, %c1_111, %c0_112, %c0_113] : memref<2x6x10x64xbf16, #tpu.memory_space<vmem>>, vector<2x4x8x64xbf16>
    %c0_114 = arith.constant 0 : index
    %c1_115 = arith.constant 1 : index
    %c1_116 = arith.constant 1 : index
    %c0_117 = arith.constant 0 : index
    %57 = vector.load %arg12[%c0_114, %c1_115, %c1_116, %c0_117] : memref<2x6x10x64xbf16, #tpu.memory_space<vmem>>, vector<2x4x8x64xbf16>
    %c0_118 = arith.constant 0 : index
    %c1_119 = arith.constant 1 : index
    %c2_120 = arith.constant 2 : index
    %c0_121 = arith.constant 0 : index
    %58 = vector.load %arg12[%c0_118, %c1_119, %c2_120, %c0_121] : memref<2x6x10x64xbf16, #tpu.memory_space<vmem>>, vector<2x4x8x64xbf16>
    %c0_122 = arith.constant 0 : index
    %c2_123 = arith.constant 2 : index
    %c0_124 = arith.constant 0 : index
    %c0_125 = arith.constant 0 : index
    %59 = vector.load %arg12[%c0_122, %c2_123, %c0_124, %c0_125] : memref<2x6x10x64xbf16, #tpu.memory_space<vmem>>, vector<2x4x8x64xbf16>
    %c0_126 = arith.constant 0 : index
    %c2_127 = arith.constant 2 : index
    %c1_128 = arith.constant 1 : index
    %c0_129 = arith.constant 0 : index
    %60 = vector.load %arg12[%c0_126, %c2_127, %c1_128, %c0_129] : memref<2x6x10x64xbf16, #tpu.memory_space<vmem>>, vector<2x4x8x64xbf16>
    %c0_130 = arith.constant 0 : index
    %c2_131 = arith.constant 2 : index
    %c2_132 = arith.constant 2 : index
    %c0_133 = arith.constant 0 : index
    %61 = vector.load %arg12[%c0_130, %c2_131, %c2_132, %c0_133] : memref<2x6x10x64xbf16, #tpu.memory_space<vmem>>, vector<2x4x8x64xbf16>
    %62 = tpu.concatenate %53, %54, %55, %56, %57, %58, %59, %60, %61 in 3 : vector<2x4x8x64xbf16>, vector<2x4x8x64xbf16>, vector<2x4x8x64xbf16>, vector<2x4x8x64xbf16>, vector<2x4x8x64xbf16>, vector<2x4x8x64xbf16>, vector<2x4x8x64xbf16>, vector<2x4x8x64xbf16>, vector<2x4x8x64xbf16> -> vector<2x4x8x576xbf16>
    %63 = vector.shape_cast %62 : vector<2x4x8x576xbf16> to vector<64x576xbf16>
    %c0_134 = arith.constant 0 : index
    %c0_135 = arith.constant 0 : index
    %64 = vector.load %arg6[%c0_134, %c0_135] : memref<576x128xbf16, #tpu.memory_space<vmem>>, vector<576x128xbf16>
    %cst_136 = arith.constant dense<0.000000e+00> : vector<64x128xf32>
    %65 = tpu.matmul %63, %64, %cst_136 {dimension_numbers = #tpu.dot_dimension_numbers<[1], [0], [0], [1], [0, 0, 1, 1], [], []>} : vector<64x576xbf16>, vector<576x128xbf16>, vector<64x128xf32> -> vector<64x128xf32>
    %66 = vector.shape_cast %65 : vector<64x128xf32> to vector<2x2x2x8x128xf32>
    %cst_137 = arith.constant dense<0xFF800000> : vector<2x2x8x128xf32>
    %67 = vector.multi_reduction <maximumf>, %66, %cst_137 [2] : vector<2x2x2x8x128xf32> to vector<2x2x8x128xf32>
    %c0_138 = arith.constant 0 : index
    %c0_139 = arith.constant 0 : index
    %c0_140 = arith.constant 0 : index
    %c0_141 = arith.constant 0 : index
    %68 = vector.load %arg15[%c0_138, %c0_139, %c0_140, %c0_141] : memref<2x2x8x128xf32, #tpu.memory_space<vmem>>, vector<2x2x8x128xf32>
    tpu.vector_store %arg15[%c0_138, %c0_139, %c0_140, %c0_141], %67 {strides = array<i32>} : memref<2x2x8x128xf32, #tpu.memory_space<vmem>>, vector<2x2x8x128xf32>,
    %c0_142 = arith.constant 0 : index
    %c0_143 = arith.constant 0 : index
    %c0_144 = arith.constant 0 : index
    %c0_145 = arith.constant 0 : index
    %69 = tpu.strided_load %arg15[%c0_142, %c0_143, %c0_144, %c0_145] {strides = array<i32: 1, 1, 2, 1>} : memref<2x2x8x128xf32, #tpu.memory_space<vmem>>, vector<2x2x2x128xf32>
    %c0_146 = arith.constant 0 : index
    %c0_147 = arith.constant 0 : index
    %c1_148 = arith.constant 1 : index
    %c0_149 = arith.constant 0 : index
    %70 = tpu.strided_load %arg15[%c0_146, %c0_147, %c1_148, %c0_149] {strides = array<i32: 1, 1, 2, 1>} : memref<2x2x8x128xf32, #tpu.memory_space<vmem>>, vector<2x2x2x128xf32>
    %71 = arith.maximumf %69, %70 : vector<2x2x2x128xf32>
    %c0_150 = arith.constant 0 : index
    %c0_151 = arith.constant 0 : index
    %c0_152 = arith.constant 0 : index
    %c0_153 = arith.constant 0 : index
    %72 = vector.load %arg7[%c0_150, %c0_151, %c0_152, %c0_153] : memref<1x1x1x128xf32, #tpu.memory_space<vmem>>, vector<1x1x1x128xf32>
    %73 = vector.broadcast %72 : vector<1x1x1x128xf32> to vector<2x2x2x128xf32>
    %74 = arith.addf %71, %73 : vector<2x2x2x128xf32>
    %cst_154 = arith.constant 0.000000e+00 : f32
    %75 = vector.broadcast %cst_154 : f32 to vector<2x2x2x128xf32>
    %76 = arith.cmpf ogt, %74, %75 : vector<2x2x2x128xf32>
    %cst_155 = arith.constant 0.00999999977 : f32
    %77 = vector.broadcast %cst_155 : f32 to vector<2x2x2x128xf32>
    %78 = arith.mulf %77, %74 : vector<2x2x2x128xf32>
    %79 = arith.select %76, %74, %78 : vector<2x2x2x128xi1>, vector<2x2x2x128xf32>
    %c0_156 = arith.constant 0 : index
    %c0_157 = arith.constant 0 : index
    %c0_158 = arith.constant 0 : index
    %c0_159 = arith.constant 0 : index
    %80 = vector.load %arg8[%c0_156, %c0_157, %c0_158, %c0_159] : memref<1x2x2x128xf32, #tpu.memory_space<vmem>>, vector<1x2x2x128xf32>
    %81 = vector.broadcast %80 : vector<1x2x2x128xf32> to vector<2x2x2x128xf32>
    %82 = arith.mulf %79, %81 : vector<2x2x2x128xf32>
    %cst_160 = arith.constant dense<0.000000e+00> : vector<2x2x2xf32>
    %83 = vector.multi_reduction <add>, %82, %cst_160 [3] : vector<2x2x2x128xf32> to vector<2x2x2xf32>
    %84 = vector.shape_cast %83 : vector<2x2x2xf32> to vector<2x2x2x1xf32>
    %c0_161 = arith.constant 0 : index
    %c0_162 = arith.constant 0 : index
    %c0_163 = arith.constant 0 : index
    %c0_164 = arith.constant 0 : index
    %85 = vector.load %arg9[%c0_161, %c0_162, %c0_163, %c0_164] : memref<1x1x1x1xf32, #tpu.memory_space<vmem>>, vector<1x1x1x1xf32>
    %86 = vector.extract_strided_slice %84 {offsets = [0, 0, 0, 0], sizes = [2, 1, 1, 1], strides = [1, 1, 1, 1]} : vector<2x2x2x1xf32> to vector<2x1x1x1xf32>
    %87 = vector.broadcast %85 : vector<1x1x1x1xf32> to vector<2x1x1x1xf32>
    %88 = arith.addf %87, %86 : vector<2x1x1x1xf32>
    %89 = vector.extract_strided_slice %84 {offsets = [0, 0, 1, 0], sizes = [2, 1, 1, 1], strides = [1, 1, 1, 1]} : vector<2x2x2x1xf32> to vector<2x1x1x1xf32>
    %90 = arith.addf %88, %89 : vector<2x1x1x1xf32>
    %91 = vector.extract_strided_slice %84 {offsets = [0, 1, 0, 0], sizes = [2, 1, 1, 1], strides = [1, 1, 1, 1]} : vector<2x2x2x1xf32> to vector<2x1x1x1xf32>
    %92 = arith.addf %90, %91 : vector<2x1x1x1xf32>
    %93 = vector.extract_strided_slice %84 {offsets = [0, 1, 1, 0], sizes = [2, 1, 1, 1], strides = [1, 1, 1, 1]} : vector<2x2x2x1xf32> to vector<2x1x1x1xf32>
    %94 = arith.addf %92, %93 : vector<2x1x1x1xf32>
    %cst_165 = arith.constant 0.000000e+00 : f32
    %95 = vector.broadcast %cst_165 : f32 to vector<2x1x1x1xf32>
    %96 = arith.cmpf oge, %94, %95 : vector<2x1x1x1xf32>
    %cst_166 = arith.constant 0.000000e+00 : f32
    %97 = vector.broadcast %cst_166 : f32 to vector<2x1x1x1xf32>
    %98 = arith.subf %97, %94 : vector<2x1x1x1xf32>
    %99 = math.exp %98 : vector<2x1x1x1xf32>
    %cst_167 = arith.constant 1.000000e+00 : f32
    %100 = vector.broadcast %cst_167 : f32 to vector<2x1x1x1xf32>
    %101 = arith.addf %100, %99 : vector<2x1x1x1xf32>
    %cst_168 = arith.constant 1.000000e+00 : f32
    %102 = vector.broadcast %cst_168 : f32 to vector<2x1x1x1xf32>
    %103 = arith.divf %102, %101 : vector<2x1x1x1xf32>
    %104 = math.exp %94 : vector<2x1x1x1xf32>
    %105 = math.exp %94 : vector<2x1x1x1xf32>
    %cst_169 = arith.constant 1.000000e+00 : f32
    %106 = vector.broadcast %cst_169 : f32 to vector<2x1x1x1xf32>
    %107 = arith.addf %106, %105 : vector<2x1x1x1xf32>
    %108 = arith.divf %104, %107 : vector<2x1x1x1xf32>
    %109 = arith.select %96, %103, %108 : vector<2x1x1x1xi1>, vector<2x1x1x1xf32>
    %c0_170 = arith.constant 0 : index
    %c0_171 = arith.constant 0 : index
    %c0_172 = arith.constant 0 : index
    %c0_173 = arith.constant 0 : index
    %110 = vector.load %arg10[%c0_170, %c0_171, %c0_172, %c0_173] : memref<2x1x1x1xf32, #tpu.memory_space<vmem>>, vector<2x1x1x1xf32>
    tpu.vector_store %arg10[%c0_170, %c0_171, %c0_172, %c0_173], %109 {strides = array<i32>} : memref<2x1x1x1xf32, #tpu.memory_space<vmem>>, vector<2x1x1x1xf32>,
    return
  }
  func.func @transform_0(%arg0: i32) -> (i32, i32, i32, i32) {
    %c0_i32 = arith.constant 0 : i32
    %c0_i32_0 = arith.constant 0 : i32
    %c0_i32_1 = arith.constant 0 : i32
    %c0_i32_2 = arith.constant 0 : i32
    return %arg0, %c0_i32, %c0_i32_0, %c0_i32_1 : i32, i32, i32, i32
  }
  func.func @transform_1(%arg0: i32) -> (i32, i32) {
    %c0_i32 = arith.constant 0 : i32
    %c0_i32_0 = arith.constant 0 : i32
    %c0_i32_1 = arith.constant 0 : i32
    return %c0_i32, %c0_i32_0 : i32, i32
  }
  func.func @transform_2(%arg0: i32) -> (i32, i32, i32, i32) {
    %c0_i32 = arith.constant 0 : i32
    %c0_i32_0 = arith.constant 0 : i32
    %c0_i32_1 = arith.constant 0 : i32
    %c0_i32_2 = arith.constant 0 : i32
    %c0_i32_3 = arith.constant 0 : i32
    return %c0_i32, %c0_i32_0, %c0_i32_1, %c0_i32_2 : i32, i32, i32, i32
  }
  func.func @transform_3(%arg0: i32) -> (i32, i32) {
    %c0_i32 = arith.constant 0 : i32
    %c0_i32_0 = arith.constant 0 : i32
    %c0_i32_1 = arith.constant 0 : i32
    return %c0_i32, %c0_i32_0 : i32, i32
  }
  func.func @transform_4(%arg0: i32) -> (i32, i32, i32, i32) {
    %c0_i32 = arith.constant 0 : i32
    %c0_i32_0 = arith.constant 0 : i32
    %c0_i32_1 = arith.constant 0 : i32
    %c0_i32_2 = arith.constant 0 : i32
    %c0_i32_3 = arith.constant 0 : i32
    return %c0_i32, %c0_i32_0, %c0_i32_1, %c0_i32_2 : i32, i32, i32, i32
  }
  func.func @transform_5(%arg0: i32) -> (i32, i32) {
    %c0_i32 = arith.constant 0 : i32
    %c0_i32_0 = arith.constant 0 : i32
    %c0_i32_1 = arith.constant 0 : i32
    return %c0_i32, %c0_i32_0 : i32, i32
  }
  func.func @transform_6(%arg0: i32) -> (i32, i32, i32, i32) {
    %c0_i32 = arith.constant 0 : i32
    %c0_i32_0 = arith.constant 0 : i32
    %c0_i32_1 = arith.constant 0 : i32
    %c0_i32_2 = arith.constant 0 : i32
    %c0_i32_3 = arith.constant 0 : i32
    return %c0_i32, %c0_i32_0, %c0_i32_1, %c0_i32_2 : i32, i32, i32, i32
  }
  func.func @transform_7(%arg0: i32) -> (i32, i32, i32, i32) {
    %c0_i32 = arith.constant 0 : i32
    %c0_i32_0 = arith.constant 0 : i32
    %c0_i32_1 = arith.constant 0 : i32
    %c0_i32_2 = arith.constant 0 : i32
    %c0_i32_3 = arith.constant 0 : i32
    return %c0_i32, %c0_i32_0, %c0_i32_1, %c0_i32_2 : i32, i32, i32, i32
  }
  func.func @transform_8(%arg0: i32) -> (i32, i32, i32, i32) {
    %c0_i32 = arith.constant 0 : i32
    %c0_i32_0 = arith.constant 0 : i32
    %c0_i32_1 = arith.constant 0 : i32
    %c0_i32_2 = arith.constant 0 : i32
    %c0_i32_3 = arith.constant 0 : i32
    return %c0_i32, %c0_i32_0, %c0_i32_1, %c0_i32_2 : i32, i32, i32, i32
  }
  func.func @transform_9(%arg0: i32) -> (i32, i32, i32, i32) {
    %c0_i32 = arith.constant 0 : i32
    %c0_i32_0 = arith.constant 0 : i32
    %c0_i32_1 = arith.constant 0 : i32
    %c0_i32_2 = arith.constant 0 : i32
    return %arg0, %c0_i32, %c0_i32_0, %c0_i32_1 : i32, i32, i32, i32
  }
}

</mosaic_0001>

<llo_original>
// kernel: simple_cnn_forward.1
$region0: #{simple_cnn_forward.1}
  #allocation0 [shape = 'u32[]', space=smem, size = 0x4, offset = 0x4, fixed_abs, tag = 'smem constant byte address 0x4 - core index']
  #allocation1 [shape = 'u32[72,128]{1,0:T(1,128)}', space=vmem, size = 0x9000, scoped, tag = 'internal scratch']
  #allocation2 [shape = 'bf16[2,10,10,32]{3,2,1,0:T(8,128)(2,1)}', space=vmem, size = 0x14000, scoped, tag = 'scratch operand']
  #allocation3 [shape = 'bf16[2,6,10,64]{3,2,1,0:T(8,128)(2,1)}', space=vmem, size = 0xc000, scoped, tag = 'scratch operand']
  #allocation4 [shape = 'f32[2,8,16,32]{3,2,1,0:T(8,128)}', space=vmem, size = 0x20000, scoped, tag = 'scratch operand']
  #allocation5 [shape = 'f32[2,4,8,64]{3,2,1,0:T(8,128)}', space=vmem, size = 0x8000, scoped, tag = 'scratch operand']
  #allocation6 [shape = 'f32[2,2,8,128]{3,2,1,0:T(8,128)}', space=vmem, size = 0x4000, scoped, tag = 'scratch operand']
  #allocation7 [shape = 'f32[1,1,1,1]{3,2,1,0:T(1,128)S(1)}', space=vmem, size = 0x200, scoped, tag = 'scoped memory for simple_cnn_forward.1']
  %s0 = inlined_call_operand.vmem [shape: bf16[2,16,16,36], index: 0, kind: input, shape index: {}]
  %s1 = inlined_call_operand.vmem [shape: bf16[36,32], index: 1, kind: input, shape index: {}]
  %s2 = inlined_call_operand.vmem [shape: f32[1,1,1,32], index: 2, kind: input, shape index: {}]
  %s3 = inlined_call_operand.vmem [shape: bf16[288,64], index: 3, kind: input, shape index: {}]
  %s4 = inlined_call_operand.vmem [shape: f32[1,1,1,64], index: 4, kind: input, shape index: {}]
  %s5 = inlined_call_operand.vmem [shape: bf16[576,128], index: 5, kind: input, shape index: {}]
  %s6 = inlined_call_operand.vmem [shape: f32[1,1,1,128], index: 6, kind: input, shape index: {}]
  %s7 = inlined_call_operand.vmem [shape: f32[1,2,2,128], index: 7, kind: input, shape index: {}]
  %s8 = inlined_call_operand.<no memory space> [shape: f32[1,1,1,1], index: 8, kind: input, shape index: {}]
  %s9 = inlined_call_operand.vmem [shape: f32[2,1,1,1], index: 9, kind: output, shape index: {}]
  %s10 = sld [smem:[#allocation0]]
  $region46: #{simple_cnn_forward.1} parent=0
    _
  %s12 = ssub.s32 1, %s10
  %s13 = scalar_select 0, %s12, %s10
  %v14 = vstv %s8
  %15 = vst [vmem:[#allocation7] sm:$0x1] %v14
  // Predicated region
  $region2: #{simple_cnn_forward.1} parent=0 // pred_check
    _
  $region3: #{simple_cnn_forward.1} parent=0 // pred_check_branch
    %17 = sbr.rel (0) target = $region5
  $region4: #{simple_cnn_forward.1} parent=0 // pred_region
    _
  $region5: #{simple_cnn_forward.1} parent=0 // pred_fallthru
    _
  // Predicated region
  $region6: #{simple_cnn_forward.1} parent=0 // pred_check
    _
  $region7: #{simple_cnn_forward.1} parent=0 // pred_check_branch
    %19 = sbr.rel (0) target = $region9
  $region8: #{simple_cnn_forward.1} parent=0 // pred_region
    _
  $region9: #{simple_cnn_forward.1} parent=0 // pred_fallthru
    _
  // Predicated region
  $region10: #{simple_cnn_forward.1} parent=0 // pred_check
    _
  $region11: #{simple_cnn_forward.1} parent=0 // pred_check_branch
    %21 = sbr.rel (0) target = $region13
  $region12: #{simple_cnn_forward.1} parent=0 // pred_region
    _
  $region13: #{simple_cnn_forward.1} parent=0 // pred_fallthru
    _
  // Predicated region
  $region14: #{simple_cnn_forward.1} parent=0 // pred_check
    _
  $region15: #{simple_cnn_forward.1} parent=0 // pred_check_branch
    %23 = sbr.rel (0) target = $region17
  $region16: #{simple_cnn_forward.1} parent=0 // pred_region
    _
  $region17: #{simple_cnn_forward.1} parent=0 // pred_fallthru
    _
  // Predicated region
  $region18: #{simple_cnn_forward.1} parent=0 // pred_check
    _
  $region19: #{simple_cnn_forward.1} parent=0 // pred_check_branch
    %25 = sbr.rel (0) target = $region21
  $region20: #{simple_cnn_forward.1} parent=0 // pred_region
    _
  $region21: #{simple_cnn_forward.1} parent=0 // pred_fallthru
    _
  // Predicated region
  $region22: #{simple_cnn_forward.1} parent=0 // pred_check
    _
  $region23: #{simple_cnn_forward.1} parent=0 // pred_check_branch
    %27 = sbr.rel (0) target = $region25
  $region24: #{simple_cnn_forward.1} parent=0 // pred_region
    _
  $region25: #{simple_cnn_forward.1} parent=0 // pred_fallthru
    _
  // Predicated region
  $region26: #{simple_cnn_forward.1} parent=0 // pred_check
    _
  $region27: #{simple_cnn_forward.1} parent=0 // pred_check_branch
    %29 = sbr.rel (0) target = $region29
  $region28: #{simple_cnn_forward.1} parent=0 // pred_region
    _
  $region29: #{simple_cnn_forward.1} parent=0 // pred_fallthru
    _
  // Predicated region
  $region30: #{simple_cnn_forward.1} parent=0 // pred_check
    _
  $region31: #{simple_cnn_forward.1} parent=0 // pred_check_branch
    %31 = sbr.rel (0) target = $region33
  $region32: #{simple_cnn_forward.1} parent=0 // pred_region
    _
  $region33: #{simple_cnn_forward.1} parent=0 // pred_fallthru
    _
  // Predicated region
  $region34: #{simple_cnn_forward.1} parent=0 // pred_check
    _
  $region35: #{simple_cnn_forward.1} parent=0 // pred_check_branch
    %33 = sbr.rel (0) target = $region37
  $region36: #{simple_cnn_forward.1} parent=0 // pred_region
    _
  $region37: #{simple_cnn_forward.1} parent=0 // pred_fallthru
    _
  %v35 = vld [vmem:[%s0] sm:$0xf]
  %v36 = vld [vmem:[%s0 + $0x4] sm:$0xf]
  %v37 = vld [vmem:[%s0 + $0x8] sm:$0xf]
  %v38 = vld [vmem:[%s0 + $0xc] sm:$0xf]
  %v39 = vld [vmem:[%s0 + $0x10] sm:$0xf]
  %v40 = vld [vmem:[%s0 + $0x14] sm:$0xf]
  %v41 = vld [vmem:[%s0 + $0x18] sm:$0xf]
  %v42 = vld [vmem:[%s0 + $0x1c] sm:$0xf]
  %v43 = vld [vmem:[%s0 + $0x20] sm:$0xf]
  %v44 = vld [vmem:[%s0 + $0x24] sm:$0xf]
  %v45 = vld [vmem:[%s0 + $0x28] sm:$0xf]
  %v46 = vld [vmem:[%s0 + $0x2c] sm:$0xf]
  %v47 = vld [vmem:[%s0 + $0x30] sm:$0xf]
  %v48 = vld [vmem:[%s0 + $0x34] sm:$0xf]
  %v49 = vld [vmem:[%s0 + $0x38] sm:$0xf]
  %v50 = vld [vmem:[%s0 + $0x3c] sm:$0xf]
  %v51 = vld [vmem:[%s0 + $0x40] sm:$0xf]
  %v52 = vld [vmem:[%s0 + $0x44] sm:$0xf]
  %v53 = vld [vmem:[%s0 + $0x48] sm:$0xf]
  %v54 = vld [vmem:[%s0 + $0x4c] sm:$0xf]
  %v55 = vld [vmem:[%s0 + $0x50] sm:$0xf]
  %v56 = vld [vmem:[%s0 + $0x54] sm:$0xf]
  %v57 = vld [vmem:[%s0 + $0x58] sm:$0xf]
  %v58 = vld [vmem:[%s0 + $0x5c] sm:$0xf]
  %v59 = vld [vmem:[%s0 + $0x60] sm:$0xf]
  %v60 = vld [vmem:[%s0 + $0x64] sm:$0xf]
  %v61 = vld [vmem:[%s0 + $0x68] sm:$0xf]
  %v62 = vld [vmem:[%s0 + $0x6c] sm:$0xf]
  %v63 = vld [vmem:[%s0 + $0x70] sm:$0xf]
  %v64 = vld [vmem:[%s0 + $0x74] sm:$0xf]
  %v65 = vld [vmem:[%s0 + $0x78] sm:$0xf]
  %v66 = vld [vmem:[%s0 + $0x7c] sm:$0xf]
  %v67 = vld [vmem:[%s0 + $0x80] sm:$0xf]
  %v68 = vld [vmem:[%s0 + $0x84] sm:$0xf]
  %v69 = vld [vmem:[%s0 + $0x88] sm:$0xf]
  %v70 = vld [vmem:[%s0 + $0x8c] sm:$0xf]
  %v71 = vld [vmem:[%s0 + $0x90] sm:$0xf]
  %v72 = vld [vmem:[%s0 + $0x94] sm:$0xf]
  %v73 = vld [vmem:[%s0 + $0x98] sm:$0xf]
  %v74 = vld [vmem:[%s0 + $0x9c] sm:$0xf]
  %v75 = vld [vmem:[%s0 + $0xa0] sm:$0xf]
  %v76 = vld [vmem:[%s0 + $0xa4] sm:$0xf]
  %v77 = vld [vmem:[%s0 + $0xa8] sm:$0xf]
  %v78 = vld [vmem:[%s0 + $0xac] sm:$0xf]
  %v79 = vld [vmem:[%s0 + $0xb0] sm:$0xf]
  %v80 = vld [vmem:[%s0 + $0xb4] sm:$0xf]
  %v81 = vld [vmem:[%s0 + $0xb8] sm:$0xf]
  %v82 = vld [vmem:[%s0 + $0xbc] sm:$0xf]
  %v83 = vld [vmem:[%s0 + $0xc0] sm:$0xf]
  %v84 = vld [vmem:[%s0 + $0xc4] sm:$0xf]
  %v85 = vld [vmem:[%s0 + $0xc8] sm:$0xf]
  %v86 = vld [vmem:[%s0 + $0xcc] sm:$0xf]
  %v87 = vld [vmem:[%s0 + $0xd0] sm:$0xf]
  %v88 = vld [vmem:[%s0 + $0xd4] sm:$0xf]
  %v89 = vld [vmem:[%s0 + $0xd8] sm:$0xf]
  %v90 = vld [vmem:[%s0 + $0xdc] sm:$0xf]
  %v91 = vld [vmem:[%s0 + $0xe0] sm:$0xf]
  %v92 = vld [vmem:[%s0 + $0xe4] sm:$0xf]
  %v93 = vld [vmem:[%s0 + $0xe8] sm:$0xf]
  %v94 = vld [vmem:[%s0 + $0xec] sm:$0xf]
  %v95 = vld [vmem:[%s0 + $0xf0] sm:$0xf]
  %v96 = vld [vmem:[%s0 + $0xf4] sm:$0xf]
  %v97 = vld [vmem:[%s0 + $0xf8] sm:$0xf]
  %v98 = vld [vmem:[%s0 + $0xfc] sm:$0xf]
  %v99 = vld [vmem:[%s1] sm:$0xf]
  %v100 = vld [vmem:[%s1 + $0x4] sm:$0xf]
  %v101 = vld [vmem:[%s1 + $0x8] sm:$0xf]
  %v102 = vld [vmem:[%s1 + $0xc] sm:$0xf]
  %v103 = vld [vmem:[%s1 + $0x10] sm:$0x3]
  %v168 = vunpack.c.l.b16 %v35
  %v169 = vunpack.c.l.b16 %v36
  %v170 = vunpack.c.l.b16 %v37
  %v171 = vunpack.c.l.b16 %v38
  %v172 = vunpack.c.l.b16 %v39
  %v173 = vunpack.c.l.b16 %v40
  %v174 = vunpack.c.l.b16 %v41
  %v175 = vunpack.c.l.b16 %v42
  %v176 = vunpack.c.l.b16 %v43
  %v177 = vunpack.c.l.b16 %v44
  %v178 = vunpack.c.l.b16 %v45
  %v179 = vunpack.c.l.b16 %v46
  %v180 = vunpack.c.l.b16 %v47
  %v181 = vunpack.c.l.b16 %v48
  %v182 = vunpack.c.l.b16 %v49
  %v183 = vunpack.c.l.b16 %v50
  %v184 = vunpack.c.l.b16 %v51
  %v185 = vunpack.c.l.b16 %v52
  %v186 = vunpack.c.l.b16 %v53
  %v187 = vunpack.c.l.b16 %v54
  %v188 = vunpack.c.l.b16 %v55
  %v189 = vunpack.c.l.b16 %v56
  %v190 = vunpack.c.l.b16 %v57
  %v191 = vunpack.c.l.b16 %v58
  %v192 = vunpack.c.l.b16 %v59
  %v193 = vunpack.c.l.b16 %v60
  %v194 = vunpack.c.l.b16 %v61
  %v195 = vunpack.c.l.b16 %v62
  %v196 = vunpack.c.l.b16 %v63
  %v197 = vunpack.c.l.b16 %v64
  %v198 = vunpack.c.l.b16 %v65
  %v199 = vunpack.c.l.b16 %v66
  %v200 = vunpack.c.l.b16 %v67
  %v201 = vunpack.c.l.b16 %v68
  %v202 = vunpack.c.l.b16 %v69
  %v203 = vunpack.c.l.b16 %v70
  %v204 = vunpack.c.l.b16 %v71
  %v205 = vunpack.c.l.b16 %v72
  %v206 = vunpack.c.l.b16 %v73
  %v207 = vunpack.c.l.b16 %v74
  %v208 = vunpack.c.l.b16 %v75
  %v209 = vunpack.c.l.b16 %v76
  %v210 = vunpack.c.l.b16 %v77
  %v211 = vunpack.c.l.b16 %v78
  %v212 = vunpack.c.l.b16 %v79
  %v213 = vunpack.c.l.b16 %v80
  %v214 = vunpack.c.l.b16 %v81
  %v215 = vunpack.c.l.b16 %v82
  %v216 = vunpack.c.l.b16 %v83
  %v217 = vunpack.c.l.b16 %v84
  %v218 = vunpack.c.l.b16 %v85
  %v219 = vunpack.c.l.b16 %v86
  %v220 = vunpack.c.l.b16 %v87
  %v221 = vunpack.c.l.b16 %v88
  %v222 = vunpack.c.l.b16 %v89
  %v223 = vunpack.c.l.b16 %v90
  %v224 = vunpack.c.l.b16 %v91
  %v225 = vunpack.c.l.b16 %v92
  %v226 = vunpack.c.l.b16 %v93
  %v227 = vunpack.c.l.b16 %v94
  %v228 = vunpack.c.l.b16 %v95
  %v229 = vunpack.c.l.b16 %v96
  %v230 = vunpack.c.l.b16 %v97
  %v231 = vunpack.c.l.b16 %v98
  %v232 = vpack.c.b16 %v169, %v168
  %v233 = vpack.c.b16 %v171, %v170
  %v234 = vpack.c.b16 %v173, %v172
  %v235 = vpack.c.b16 %v175, %v174
  %v236 = vpack.c.b16 %v177, %v176
  %v237 = vpack.c.b16 %v179, %v178
  %v238 = vpack.c.b16 %v181, %v180
  %v239 = vpack.c.b16 %v183, %v182
  %v240 = vpack.c.b16 %v185, %v184
  %v241 = vpack.c.b16 %v187, %v186
  %v242 = vpack.c.b16 %v189, %v188
  %v243 = vpack.c.b16 %v191, %v190
  %v244 = vpack.c.b16 %v193, %v192
  %v245 = vpack.c.b16 %v195, %v194
  %v246 = vpack.c.b16 %v197, %v196
  %v247 = vpack.c.b16 %v199, %v198
  %v248 = vpack.c.b16 %v201, %v200
  %v249 = vpack.c.b16 %v203, %v202
  %v250 = vpack.c.b16 %v205, %v204
  %v251 = vpack.c.b16 %v207, %v206
  %v252 = vpack.c.b16 %v209, %v208
  %v253 = vpack.c.b16 %v211, %v210
  %v254 = vpack.c.b16 %v213, %v212
  %v255 = vpack.c.b16 %v215, %v214
  %v256 = vpack.c.b16 %v217, %v216
  %v257 = vpack.c.b16 %v219, %v218
  %v258 = vpack.c.b16 %v221, %v220
  %v259 = vpack.c.b16 %v223, %v222
  %v260 = vpack.c.b16 %v225, %v224
  %v261 = vpack.c.b16 %v227, %v226
  %v262 = vpack.c.b16 %v229, %v228
  %v263 = vpack.c.b16 %v231, %v230
  %v269 = vunpack.c.l.b16 %v99
  %v270 = vunpack.c.l.b16 %v100
  %v271 = vunpack.c.l.b16 %v101
  %v272 = vunpack.c.l.b16 %v102
  %v273 = vunpack.c.l.b16 %v103
  %v274 = vpack.c.b16 %v270, %v269
  %v275 = vpack.c.b16 %v272, %v271
  %v276 = vpack.c.b16 %v273, %v273
  %vm279 = vcmask 293888
  %v281 = vsel %vm279, %v232, 0
  %v284 = vsel %vm279, %v233, 0
  %v287 = vsel %vm279, %v234, 0
  %v290 = vsel %vm279, %v235, 0
  %v293 = vsel %vm279, %v236, 0
  %v296 = vsel %vm279, %v237, 0
  %v299 = vsel %vm279, %v238, 0
  %v302 = vsel %vm279, %v239, 0
  %v305 = vsel %vm279, %v240, 0
  %v308 = vsel %vm279, %v241, 0
  %v311 = vsel %vm279, %v242, 0
  %v314 = vsel %vm279, %v243, 0
  %v317 = vsel %vm279, %v244, 0
  %v320 = vsel %vm279, %v245, 0
  %v323 = vsel %vm279, %v246, 0
  %v326 = vsel %vm279, %v247, 0
  %v329 = vsel %vm279, %v248, 0
  %v332 = vsel %vm279, %v249, 0
  %v335 = vsel %vm279, %v250, 0
  %v338 = vsel %vm279, %v251, 0
  %v341 = vsel %vm279, %v252, 0
  %v344 = vsel %vm279, %v253, 0
  %v347 = vsel %vm279, %v254, 0
  %v350 = vsel %vm279, %v255, 0
  %v353 = vsel %vm279, %v256, 0
  %v356 = vsel %vm279, %v257, 0
  %v359 = vsel %vm279, %v258, 0
  %v362 = vsel %vm279, %v259, 0
  %v365 = vsel %vm279, %v260, 0
  %v368 = vsel %vm279, %v261, 0
  %v371 = vsel %vm279, %v262, 0
  %v374 = vsel %vm279, %v263, 0
  %vm376 = vcmask 1041408
  %v378 = vsel %vm376, %v276, 0
  %380 = vmatpush.bf16.msra.mxu0 0
  %381 = vmatpush.bf16.msra.mxu0 0
  %382 = vmatpush.bf16.msra.mxu0 0
  %383 = vmatpush.bf16.msra.mxu0 0
  %384 = vmatpush.bf16.msra.mxu0 0
  %385 = vmatpush.bf16.msra.mxu0 %v378
  %386 = vmatpush.bf16.msra.mxu0 %v275
  %387 = vmatpush.bf16.msra.mxu0 %v274
  %388 = vmatmul.bf16.gmra.mxu0 %v281
  %v389 = vpop.f32.mrf.mxu0
  %v390 = vadd.f32 0.0, %v389
  %v391 = vpop.f32.mrf.mxu0
  %v392 = vadd.f32 0.0, %v391
  %393 = vmatmul.bf16.gmra.mxu0 %v284
  %v394 = vpop.f32.mrf.mxu0
  %v395 = vadd.f32 0.0, %v394
  %v396 = vpop.f32.mrf.mxu0
  %v397 = vadd.f32 0.0, %v396
  %398 = vmatmul.bf16.gmra.mxu0 %v287
  %v399 = vpop.f32.mrf.mxu0
  %v400 = vadd.f32 0.0, %v399
  %v401 = vpop.f32.mrf.mxu0
  %v402 = vadd.f32 0.0, %v401
  %403 = vmatmul.bf16.gmra.mxu0 %v290
  %v404 = vpop.f32.mrf.mxu0
  %v405 = vadd.f32 0.0, %v404
  %v406 = vpop.f32.mrf.mxu0
  %v407 = vadd.f32 0.0, %v406
  %408 = vmatmul.bf16.gmra.mxu0 %v293
  %v409 = vpop.f32.mrf.mxu0
  %v410 = vadd.f32 0.0, %v409
  %v411 = vpop.f32.mrf.mxu0
  %v412 = vadd.f32 0.0, %v411
  %413 = vmatmul.bf16.gmra.mxu0 %v296
  %v414 = vpop.f32.mrf.mxu0
  %v415 = vadd.f32 0.0, %v414
  %v416 = vpop.f32.mrf.mxu0
  %v417 = vadd.f32 0.0, %v416
  %418 = vmatmul.bf16.gmra.mxu0 %v299
  %v419 = vpop.f32.mrf.mxu0
  %v420 = vadd.f32 0.0, %v419
  %v421 = vpop.f32.mrf.mxu0
  %v422 = vadd.f32 0.0, %v421
  %423 = vmatmul.bf16.gmra.mxu0 %v302
  %v424 = vpop.f32.mrf.mxu0
  %v425 = vadd.f32 0.0, %v424
  %v426 = vpop.f32.mrf.mxu0
  %v427 = vadd.f32 0.0, %v426
  %428 = vmatmul.bf16.gmra.mxu0 %v305
  %v429 = vpop.f32.mrf.mxu0
  %v430 = vadd.f32 0.0, %v429
  %v431 = vpop.f32.mrf.mxu0
  %v432 = vadd.f32 0.0, %v431
  %433 = vmatmul.bf16.gmra.mxu0 %v308
  %v434 = vpop.f32.mrf.mxu0
  %v435 = vadd.f32 0.0, %v434
  %v436 = vpop.f32.mrf.mxu0
  %v437 = vadd.f32 0.0, %v436
  %438 = vmatmul.bf16.gmra.mxu0 %v311
  %v439 = vpop.f32.mrf.mxu0
  %v440 = vadd.f32 0.0, %v439
  %v441 = vpop.f32.mrf.mxu0
  %v442 = vadd.f32 0.0, %v441
  %443 = vmatmul.bf16.gmra.mxu0 %v314
  %v444 = vpop.f32.mrf.mxu0
  %v445 = vadd.f32 0.0, %v444
  %v446 = vpop.f32.mrf.mxu0
  %v447 = vadd.f32 0.0, %v446
  %448 = vmatmul.bf16.gmra.mxu0 %v317
  %v449 = vpop.f32.mrf.mxu0
  %v450 = vadd.f32 0.0, %v449
  %v451 = vpop.f32.mrf.mxu0
  %v452 = vadd.f32 0.0, %v451
  %453 = vmatmul.bf16.gmra.mxu0 %v320
  %v454 = vpop.f32.mrf.mxu0
  %v455 = vadd.f32 0.0, %v454
  %v456 = vpop.f32.mrf.mxu0
  %v457 = vadd.f32 0.0, %v456
  %458 = vmatmul.bf16.gmra.mxu0 %v323
  %v459 = vpop.f32.mrf.mxu0
  %v460 = vadd.f32 0.0, %v459
  %v461 = vpop.f32.mrf.mxu0
  %v462 = vadd.f32 0.0, %v461
  %463 = vmatmul.bf16.gmra.mxu0 %v326
  %v464 = vpop.f32.mrf.mxu0
  %v465 = vadd.f32 0.0, %v464
  %v466 = vpop.f32.mrf.mxu0
  %v467 = vadd.f32 0.0, %v466
  %468 = vmatmul.bf16.gmra.mxu0 %v329
  %v469 = vpop.f32.mrf.mxu0
  %v470 = vadd.f32 0.0, %v469
  %v471 = vpop.f32.mrf.mxu0
  %v472 = vadd.f32 0.0, %v471
  %473 = vmatmul.bf16.gmra.mxu0 %v332
  %v474 = vpop.f32.mrf.mxu0
  %v475 = vadd.f32 0.0, %v474
  %v476 = vpop.f32.mrf.mxu0
  %v477 = vadd.f32 0.0, %v476
  %478 = vmatmul.bf16.gmra.mxu0 %v335
  %v479 = vpop.f32.mrf.mxu0
  %v480 = vadd.f32 0.0, %v479
  %v481 = vpop.f32.mrf.mxu0
  %v482 = vadd.f32 0.0, %v481
  %483 = vmatmul.bf16.gmra.mxu0 %v338
  %v484 = vpop.f32.mrf.mxu0
  %v485 = vadd.f32 0.0, %v484
  %v486 = vpop.f32.mrf.mxu0
  %v487 = vadd.f32 0.0, %v486
  %488 = vmatmul.bf16.gmra.mxu0 %v341
  %v489 = vpop.f32.mrf.mxu0
  %v490 = vadd.f32 0.0, %v489
  %v491 = vpop.f32.mrf.mxu0
  %v492 = vadd.f32 0.0, %v491
  %493 = vmatmul.bf16.gmra.mxu0 %v344
  %v494 = vpop.f32.mrf.mxu0
  %v495 = vadd.f32 0.0, %v494
  %v496 = vpop.f32.mrf.mxu0
  %v497 = vadd.f32 0.0, %v496
  %498 = vmatmul.bf16.gmra.mxu0 %v347
  %v499 = vpop.f32.mrf.mxu0
  %v500 = vadd.f32 0.0, %v499
  %v501 = vpop.f32.mrf.mxu0
  %v502 = vadd.f32 0.0, %v501
  %503 = vmatmul.bf16.gmra.mxu0 %v350
  %v504 = vpop.f32.mrf.mxu0
  %v505 = vadd.f32 0.0, %v504
  %v506 = vpop.f32.mrf.mxu0
  %v507 = vadd.f32 0.0, %v506
  %508 = vmatmul.bf16.gmra.mxu0 %v353
  %v509 = vpop.f32.mrf.mxu0
  %v510 = vadd.f32 0.0, %v509
  %v511 = vpop.f32.mrf.mxu0
  %v512 = vadd.f32 0.0, %v511
  %513 = vmatmul.bf16.gmra.mxu0 %v356
  %v514 = vpop.f32.mrf.mxu0
  %v515 = vadd.f32 0.0, %v514
  %v516 = vpop.f32.mrf.mxu0
  %v517 = vadd.f32 0.0, %v516
  %518 = vmatmul.bf16.gmra.mxu0 %v359
  %v519 = vpop.f32.mrf.mxu0
  %v520 = vadd.f32 0.0, %v519
  %v521 = vpop.f32.mrf.mxu0
  %v522 = vadd.f32 0.0, %v521
  %523 = vmatmul.bf16.gmra.mxu0 %v362
  %v524 = vpop.f32.mrf.mxu0
  %v525 = vadd.f32 0.0, %v524
  %v526 = vpop.f32.mrf.mxu0
  %v527 = vadd.f32 0.0, %v526
  %528 = vmatmul.bf16.gmra.mxu0 %v365
  %v529 = vpop.f32.mrf.mxu0
  %v530 = vadd.f32 0.0, %v529
  %v531 = vpop.f32.mrf.mxu0
  %v532 = vadd.f32 0.0, %v531
  %533 = vmatmul.bf16.gmra.mxu0 %v368
  %v534 = vpop.f32.mrf.mxu0
  %v535 = vadd.f32 0.0, %v534
  %v536 = vpop.f32.mrf.mxu0
  %v537 = vadd.f32 0.0, %v536
  %538 = vmatmul.bf16.gmra.mxu0 %v371
  %v539 = vpop.f32.mrf.mxu0
  %v540 = vadd.f32 0.0, %v539
  %v541 = vpop.f32.mrf.mxu0
  %v542 = vadd.f32 0.0, %v541
  %543 = vmatmul.bf16.gmra.mxu0 %v374
  %v544 = vpop.f32.mrf.mxu0
  %v545 = vadd.f32 0.0, %v544
  %v546 = vpop.f32.mrf.mxu0
  %v547 = vadd.f32 0.0, %v546
  %548 = vdwg.mxu0
  %vm549 = vcmask 261120
  %v550 = vsel %vm549, %v390, -inf
  %v551 = vsel %vm549, %v395, -inf
  %v552 = vmax.f32 %v550, %v551
  %v553 = vsel %vm549, %v392, -inf
  %v554 = vsel %vm549, %v397, -inf
  %v555 = vmax.f32 %v553, %v554
  %v556 = vsel %vm549, %v400, -inf
  %v557 = vsel %vm549, %v405, -inf
  %v558 = vmax.f32 %v556, %v557
  %v559 = vsel %vm549, %v402, -inf
  %v560 = vsel %vm549, %v407, -inf
  %v561 = vmax.f32 %v559, %v560
  %v562 = vsel %vm549, %v410, -inf
  %v563 = vsel %vm549, %v415, -inf
  %v564 = vmax.f32 %v562, %v563
  %v565 = vsel %vm549, %v412, -inf
  %v566 = vsel %vm549, %v417, -inf
  %v567 = vmax.f32 %v565, %v566
  %v568 = vsel %vm549, %v420, -inf
  %v569 = vsel %vm549, %v425, -inf
  %v570 = vmax.f32 %v568, %v569
  %v571 = vsel %vm549, %v422, -inf
  %v572 = vsel %vm549, %v427, -inf
  %v573 = vmax.f32 %v571, %v572
  %v574 = vsel %vm549, %v430, -inf
  %v575 = vsel %vm549, %v435, -inf
  %v576 = vmax.f32 %v574, %v575
  %v577 = vsel %vm549, %v432, -inf
  %v578 = vsel %vm549, %v437, -inf
  %v579 = vmax.f32 %v577, %v578
  %v580 = vsel %vm549, %v440, -inf
  %v581 = vsel %vm549, %v445, -inf
  %v582 = vmax.f32 %v580, %v581
  %v583 = vsel %vm549, %v442, -inf
  %v584 = vsel %vm549, %v447, -inf
  %v585 = vmax.f32 %v583, %v584
  %v586 = vsel %vm549, %v450, -inf
  %v587 = vsel %vm549, %v455, -inf
  %v588 = vmax.f32 %v586, %v587
  %v589 = vsel %vm549, %v452, -inf
  %v590 = vsel %vm549, %v457, -inf
  %v591 = vmax.f32 %v589, %v590
  %v592 = vsel %vm549, %v460, -inf
  %v593 = vsel %vm549, %v465, -inf
  %v594 = vmax.f32 %v592, %v593
  %v595 = vsel %vm549, %v462, -inf
  %v596 = vsel %vm549, %v467, -inf
  %v597 = vmax.f32 %v595, %v596
  %v598 = vsel %vm549, %v470, -inf
  %v599 = vsel %vm549, %v475, -inf
  %v600 = vmax.f32 %v598, %v599
  %v601 = vsel %vm549, %v472, -inf
  %v602 = vsel %vm549, %v477, -inf
  %v603 = vmax.f32 %v601, %v602
  %v604 = vsel %vm549, %v480, -inf
  %v605 = vsel %vm549, %v485, -inf
  %v606 = vmax.f32 %v604, %v605
  %v607 = vsel %vm549, %v482, -inf
  %v608 = vsel %vm549, %v487, -inf
  %v609 = vmax.f32 %v607, %v608
  %v610 = vsel %vm549, %v490, -inf
  %v611 = vsel %vm549, %v495, -inf
  %v612 = vmax.f32 %v610, %v611
  %v613 = vsel %vm549, %v492, -inf
  %v614 = vsel %vm549, %v497, -inf
  %v615 = vmax.f32 %v613, %v614
  %v616 = vsel %vm549, %v500, -inf
  %v617 = vsel %vm549, %v505, -inf
  %v618 = vmax.f32 %v616, %v617
  %v619 = vsel %vm549, %v502, -inf
  %v620 = vsel %vm549, %v507, -inf
  %v621 = vmax.f32 %v619, %v620
  %v622 = vsel %vm549, %v510, -inf
  %v623 = vsel %vm549, %v515, -inf
  %v624 = vmax.f32 %v622, %v623
  %v625 = vsel %vm549, %v512, -inf
  %v626 = vsel %vm549, %v517, -inf
  %v627 = vmax.f32 %v625, %v626
  %v628 = vsel %vm549, %v520, -inf
  %v629 = vsel %vm549, %v525, -inf
  %v630 = vmax.f32 %v628, %v629
  %v631 = vsel %vm549, %v522, -inf
  %v632 = vsel %vm549, %v527, -inf
  %v633 = vmax.f32 %v631, %v632
  %v634 = vsel %vm549, %v530, -inf
  %v635 = vsel %vm549, %v535, -inf
  %v636 = vmax.f32 %v634, %v635
  %v637 = vsel %vm549, %v532, -inf
  %v638 = vsel %vm549, %v537, -inf
  %v639 = vmax.f32 %v637, %v638
  %v640 = vsel %vm549, %v540, -inf
  %v641 = vsel %vm549, %v545, -inf
  %v642 = vmax.f32 %v640, %v641
  %v643 = vsel %vm549, %v542, -inf
  %v644 = vsel %vm549, %v547, -inf
  %v645 = vmax.f32 %v643, %v644
  %646 = vst.msk [vmem:[#allocation4] sm:$0xff] %vm549, %v552
  %647 = vst.msk [vmem:[#allocation4 + $0x8] sm:$0xff] %vm549, %v555
  %648 = vst.msk [vmem:[#allocation4 + $0x10] sm:$0xff] %vm549, %v558
  %649 = vst.msk [vmem:[#allocation4 + $0x18] sm:$0xff] %vm549, %v561
  %650 = vst.msk [vmem:[#allocation4 + $0x20] sm:$0xff] %vm549, %v564
  %651 = vst.msk [vmem:[#allocation4 + $0x28] sm:$0xff] %vm549, %v567
  %652 = vst.msk [vmem:[#allocation4 + $0x30] sm:$0xff] %vm549, %v570
  %653 = vst.msk [vmem:[#allocation4 + $0x38] sm:$0xff] %vm549, %v573
  %654 = vst.msk [vmem:[#allocation4 + $0x40] sm:$0xff] %vm549, %v576
  %655 = vst.msk [vmem:[#allocation4 + $0x48] sm:$0xff] %vm549, %v579
  %656 = vst.msk [vmem:[#allocation4 + $0x50] sm:$0xff] %vm549, %v582
  %657 = vst.msk [vmem:[#allocation4 + $0x58] sm:$0xff] %vm549, %v585
  %658 = vst.msk [vmem:[#allocation4 + $0x60] sm:$0xff] %vm549, %v588
  %659 = vst.msk [vmem:[#allocation4 + $0x68] sm:$0xff] %vm549, %v591
  %660 = vst.msk [vmem:[#allocation4 + $0x70] sm:$0xff] %vm549, %v594
  %661 = vst.msk [vmem:[#allocation4 + $0x78] sm:$0xff] %vm549, %v597
  %662 = vst.msk [vmem:[#allocation4 + $0x80] sm:$0xff] %vm549, %v600
  %663 = vst.msk [vmem:[#allocation4 + $0x88] sm:$0xff] %vm549, %v603
  %664 = vst.msk [vmem:[#allocation4 + $0x90] sm:$0xff] %vm549, %v606
  %665 = vst.msk [vmem:[#allocation4 + $0x98] sm:$0xff] %vm549, %v609
  %666 = vst.msk [vmem:[#allocation4 + $0xa0] sm:$0xff] %vm549, %v612
  %667 = vst.msk [vmem:[#allocation4 + $0xa8] sm:$0xff] %vm549, %v615
  %668 = vst.msk [vmem:[#allocation4 + $0xb0] sm:$0xff] %vm549, %v618
  %669 = vst.msk [vmem:[#allocation4 + $0xb8] sm:$0xff] %vm549, %v621
  %670 = vst.msk [vmem:[#allocation4 + $0xc0] sm:$0xff] %vm549, %v624
  %671 = vst.msk [vmem:[#allocation4 + $0xc8] sm:$0xff] %vm549, %v627
  %672 = vst.msk [vmem:[#allocation4 + $0xd0] sm:$0xff] %vm549, %v630
  %673 = vst.msk [vmem:[#allocation4 + $0xd8] sm:$0xff] %vm549, %v633
  %674 = vst.msk [vmem:[#allocation4 + $0xe0] sm:$0xff] %vm549, %v636
  %675 = vst.msk [vmem:[#allocation4 + $0xe8] sm:$0xff] %vm549, %v639
  %676 = vst.msk [vmem:[#allocation4 + $0xf0] sm:$0xff] %vm549, %v642
  %677 = vst.msk [vmem:[#allocation4 + $0xf8] sm:$0xff] %vm549, %v645
  %v678 = vld [vmem:[#allocation4] ss:$2 sm:$0xff]
  %s679 = scalar_lea.vmem [#allocation4], 16
  %v680 = vld [vmem:[%s679] ss:$2 sm:$0xff]
  %s681 = scalar_lea.vmem [#allocation4], 32
  %v682 = vld [vmem:[%s681] ss:$2 sm:$0xff]
  %s683 = scalar_lea.vmem [#allocation4], 48
  %v684 = vld [vmem:[%s683] ss:$2 sm:$0xff]
  %s685 = scalar_lea.vmem [#allocation4], 64
  %v686 = vld [vmem:[%s685] ss:$2 sm:$0xff]
  %s687 = scalar_lea.vmem [#allocation4], 80
  %v688 = vld [vmem:[%s687] ss:$2 sm:$0xff]
  %s689 = scalar_lea.vmem [#allocation4], 96
  %v690 = vld [vmem:[%s689] ss:$2 sm:$0xff]
  %s691 = scalar_lea.vmem [#allocation4], 112
  %v692 = vld [vmem:[%s691] ss:$2 sm:$0xff]
  %s693 = scalar_lea.vmem [#allocation4], 128
  %v694 = vld [vmem:[%s693] ss:$2 sm:$0xff]
  %s695 = scalar_lea.vmem [#allocation4], 144
  %v696 = vld [vmem:[%s695] ss:$2 sm:$0xff]
  %s697 = scalar_lea.vmem [#allocation4], 160
  %v698 = vld [vmem:[%s697] ss:$2 sm:$0xff]
  %s699 = scalar_lea.vmem [#allocation4], 176
  %v700 = vld [vmem:[%s699] ss:$2 sm:$0xff]
  %s701 = scalar_lea.vmem [#allocation4], 192
  %v702 = vld [vmem:[%s701] ss:$2 sm:$0xff]
  %s703 = scalar_lea.vmem [#allocation4], 208
  %v704 = vld [vmem:[%s703] ss:$2 sm:$0xff]
  %s705 = scalar_lea.vmem [#allocation4], 224
  %v706 = vld [vmem:[%s705] ss:$2 sm:$0xff]
  %s707 = scalar_lea.vmem [#allocation4], 240
  %v708 = vld [vmem:[%s707] ss:$2 sm:$0xff]
  %s709 = scalar_lea.vmem [#allocation4], 1
  %v710 = vld [vmem:[%s709] ss:$2 sm:$0xff]
  %s711 = scalar_lea.vmem [#allocation4], 17
  %v712 = vld [vmem:[%s711] ss:$2 sm:$0xff]
  %s713 = scalar_lea.vmem [#allocation4], 33
  %v714 = vld [vmem:[%s713] ss:$2 sm:$0xff]
  %s715 = scalar_lea.vmem [#allocation4], 49
  %v716 = vld [vmem:[%s715] ss:$2 sm:$0xff]
  %s717 = scalar_lea.vmem [#allocation4], 65
  %v718 = vld [vmem:[%s717] ss:$2 sm:$0xff]
  %s719 = scalar_lea.vmem [#allocation4], 81
  %v720 = vld [vmem:[%s719] ss:$2 sm:$0xff]
  %s721 = scalar_lea.vmem [#allocation4], 97
  %v722 = vld [vmem:[%s721] ss:$2 sm:$0xff]
  %s723 = scalar_lea.vmem [#allocation4], 113
  %v724 = vld [vmem:[%s723] ss:$2 sm:$0xff]
  %s725 = scalar_lea.vmem [#allocation4], 129
  %v726 = vld [vmem:[%s725] ss:$2 sm:$0xff]
  %s727 = scalar_lea.vmem [#allocation4], 145
  %v728 = vld [vmem:[%s727] ss:$2 sm:$0xff]
  %s729 = scalar_lea.vmem [#allocation4], 161
  %v730 = vld [vmem:[%s729] ss:$2 sm:$0xff]
  %s731 = scalar_lea.vmem [#allocation4], 177
  %v732 = vld [vmem:[%s731] ss:$2 sm:$0xff]
  %s733 = scalar_lea.vmem [#allocation4], 193
  %v734 = vld [vmem:[%s733] ss:$2 sm:$0xff]
  %s735 = scalar_lea.vmem [#allocation4], 209
  %v736 = vld [vmem:[%s735] ss:$2 sm:$0xff]
  %s737 = scalar_lea.vmem [#allocation4], 225
  %v738 = vld [vmem:[%s737] ss:$2 sm:$0xff]
  %s739 = scalar_lea.vmem [#allocation4], 241
  %v740 = vld [vmem:[%s739] ss:$2 sm:$0xff]
  %v741 = vmax.f32 %v678, %v710
  %v742 = vmax.f32 %v680, %v712
  %v743 = vmax.f32 %v682, %v714
  %v744 = vmax.f32 %v684, %v716
  %v745 = vmax.f32 %v686, %v718
  %v746 = vmax.f32 %v688, %v720
  %v747 = vmax.f32 %v690, %v722
  %v748 = vmax.f32 %v692, %v724
  %v749 = vmax.f32 %v694, %v726
  %v750 = vmax.f32 %v696, %v728
  %v751 = vmax.f32 %v698, %v730
  %v752 = vmax.f32 %v700, %v732
  %v753 = vmax.f32 %v702, %v734
  %v754 = vmax.f32 %v704, %v736
  %v755 = vmax.f32 %v706, %v738
  %v756 = vmax.f32 %v708, %v740
  %v757 = vld [vmem:[%s2] sm:$0x1]
  %v759 = vperm.slane %v757, 0
  %v761 = vadd.f32 %v741, %v759
  %v762 = vadd.f32 %v742, %v759
  %v763 = vadd.f32 %v743, %v759
  %v764 = vadd.f32 %v744, %v759
  %v765 = vadd.f32 %v745, %v759
  %v766 = vadd.f32 %v746, %v759
  %v767 = vadd.f32 %v747, %v759
  %v768 = vadd.f32 %v748, %v759
  %v769 = vadd.f32 %v749, %v759
  %v770 = vadd.f32 %v750, %v759
  %v771 = vadd.f32 %v751, %v759
  %v772 = vadd.f32 %v752, %v759
  %v773 = vadd.f32 %v753, %v759
  %v774 = vadd.f32 %v754, %v759
  %v775 = vadd.f32 %v755, %v759
  %v776 = vadd.f32 %v756, %v759
  %vm777 = vcmp.gt.f32.partialorder %v761, 0.0
  %vm778 = vcmp.gt.f32.partialorder %v762, 0.0
  %vm779 = vcmp.gt.f32.partialorder %v763, 0.0
  %vm780 = vcmp.gt.f32.partialorder %v764, 0.0
  %vm781 = vcmp.gt.f32.partialorder %v765, 0.0
  %vm782 = vcmp.gt.f32.partialorder %v766, 0.0
  %vm783 = vcmp.gt.f32.partialorder %v767, 0.0
  %vm784 = vcmp.gt.f32.partialorder %v768, 0.0
  %vm785 = vcmp.gt.f32.partialorder %v769, 0.0
  %vm786 = vcmp.gt.f32.partialorder %v770, 0.0
  %vm787 = vcmp.gt.f32.partialorder %v771, 0.0
  %vm788 = vcmp.gt.f32.partialorder %v772, 0.0
  %vm789 = vcmp.gt.f32.partialorder %v773, 0.0
  %vm790 = vcmp.gt.f32.partialorder %v774, 0.0
  %vm791 = vcmp.gt.f32.partialorder %v775, 0.0
  %vm792 = vcmp.gt.f32.partialorder %v776, 0.0
  %v793 = vmul.f32 %v761, 0.01
  %v794 = vmul.f32 %v762, 0.01
  %v795 = vmul.f32 %v763, 0.01
  %v796 = vmul.f32 %v764, 0.01
  %v797 = vmul.f32 %v765, 0.01
  %v798 = vmul.f32 %v766, 0.01
  %v799 = vmul.f32 %v767, 0.01
  %v800 = vmul.f32 %v768, 0.01
  %v801 = vmul.f32 %v769, 0.01
  %v802 = vmul.f32 %v770, 0.01
  %v803 = vmul.f32 %v771, 0.01
  %v804 = vmul.f32 %v772, 0.01
  %v805 = vmul.f32 %v773, 0.01
  %v806 = vmul.f32 %v774, 0.01
  %v807 = vmul.f32 %v775, 0.01
  %v808 = vmul.f32 %v776, 0.01
  %v809 = vsel %vm777, %v761, %v793
  %v810 = vsel %vm778, %v762, %v794
  %v811 = vsel %vm779, %v763, %v795
  %v812 = vsel %vm780, %v764, %v796
  %v813 = vsel %vm781, %v765, %v797
  %v814 = vsel %vm782, %v766, %v798
  %v815 = vsel %vm783, %v767, %v799
  %v816 = vsel %vm784, %v768, %v800
  %v817 = vsel %vm785, %v769, %v801
  %v818 = vsel %vm786, %v770, %v802
  %v819 = vsel %vm787, %v771, %v803
  %v820 = vsel %vm788, %v772, %v804
  %v821 = vsel %vm789, %v773, %v805
  %v822 = vsel %vm790, %v774, %v806
  %v823 = vsel %vm791, %v775, %v807
  %v824 = vsel %vm792, %v776, %v808
  %vm825 = vcmask 257024
  %826 = vst.msk [vmem:[#allocation2] sm:$0xf] %vm825, 0
  %vm827 = vcmask 253952
  %828 = vst.msk [vmem:[#allocation2 + $0x4] sm:$0x1] %vm827, 0
  %829 = vst.msk [vmem:[#allocation2 + $0x8] sm:$0xf] %vm825, 0
  %830 = vst.msk [vmem:[#allocation2 + $0xc] sm:$0x1] %vm827, 0
  %831 = vst.msk [vmem:[#allocation2 + $0x10] sm:$0xf] %vm825, 0
  %832 = vst.msk [vmem:[#allocation2 + $0x14] sm:$0x1] %vm827, 0
  %833 = vst.msk [vmem:[#allocation2 + $0x18] sm:$0xf] %vm825, 0
  %834 = vst.msk [vmem:[#allocation2 + $0x1c] sm:$0x1] %vm827, 0
  %835 = vst.msk [vmem:[#allocation2 + $0x20] sm:$0xf] %vm825, 0
  %836 = vst.msk [vmem:[#allocation2 + $0x24] sm:$0x1] %vm827, 0
  %837 = vst.msk [vmem:[#allocation2 + $0x28] sm:$0xf] %vm825, 0
  %838 = vst.msk [vmem:[#allocation2 + $0x2c] sm:$0x1] %vm827, 0
  %839 = vst.msk [vmem:[#allocation2 + $0x30] sm:$0xf] %vm825, 0
  %840 = vst.msk [vmem:[#allocation2 + $0x34] sm:$0x1] %vm827, 0
  %841 = vst.msk [vmem:[#allocation2 + $0x38] sm:$0xf] %vm825, 0
  %842 = vst.msk [vmem:[#allocation2 + $0x3c] sm:$0x1] %vm827, 0
  %843 = vst.msk [vmem:[#allocation2 + $0x40] sm:$0xf] %vm825, 0
  %844 = vst.msk [vmem:[#allocation2 + $0x44] sm:$0x1] %vm827, 0
  %845 = vst.msk [vmem:[#allocation2 + $0x48] sm:$0xf] %vm825, 0
  %846 = vst.msk [vmem:[#allocation2 + $0x4c] sm:$0x1] %vm827, 0
  %847 = vst.msk [vmem:[#allocation2 + $0x50] sm:$0xf] %vm825, 0
  %848 = vst.msk [vmem:[#allocation2 + $0x54] sm:$0x1] %vm827, 0
  %849 = vst.msk [vmem:[#allocation2 + $0x58] sm:$0xf] %vm825, 0
  %850 = vst.msk [vmem:[#allocation2 + $0x5c] sm:$0x1] %vm827, 0
  %851 = vst.msk [vmem:[#allocation2 + $0x60] sm:$0xf] %vm825, 0
  %852 = vst.msk [vmem:[#allocation2 + $0x64] sm:$0x1] %vm827, 0
  %853 = vst.msk [vmem:[#allocation2 + $0x68] sm:$0xf] %vm825, 0
  %854 = vst.msk [vmem:[#allocation2 + $0x6c] sm:$0x1] %vm827, 0
  %855 = vst.msk [vmem:[#allocation2 + $0x70] sm:$0xf] %vm825, 0
  %856 = vst.msk [vmem:[#allocation2 + $0x74] sm:$0x1] %vm827, 0
  %857 = vst.msk [vmem:[#allocation2 + $0x78] sm:$0xf] %vm825, 0
  %858 = vst.msk [vmem:[#allocation2 + $0x7c] sm:$0x1] %vm827, 0
  %859 = vst.msk [vmem:[#allocation2 + $0x80] sm:$0xf] %vm825, 0
  %860 = vst.msk [vmem:[#allocation2 + $0x84] sm:$0x1] %vm827, 0
  %861 = vst.msk [vmem:[#allocation2 + $0x88] sm:$0xf] %vm825, 0
  %862 = vst.msk [vmem:[#allocation2 + $0x8c] sm:$0x1] %vm827, 0
  %863 = vst.msk [vmem:[#allocation2 + $0x90] sm:$0xf] %vm825, 0
  %864 = vst.msk [vmem:[#allocation2 + $0x94] sm:$0x1] %vm827, 0
  %865 = vst.msk [vmem:[#allocation2 + $0x98] sm:$0xf] %vm825, 0
  %866 = vst.msk [vmem:[#allocation2 + $0x9c] sm:$0x1] %vm827, 0
  %v867 = vpack.c.bf16 %v809, %v809
  %v868 = vpack.c.bf16 %v810, %v810
  %v869 = vpack.c.bf16 %v811, %v811
  %v870 = vpack.c.bf16 %v812, %v812
  %v871 = vpack.c.bf16 %v813, %v813
  %v872 = vpack.c.bf16 %v814, %v814
  %v873 = vpack.c.bf16 %v815, %v815
  %v874 = vpack.c.bf16 %v816, %v816
  %v875 = vpack.c.bf16 %v817, %v817
  %v876 = vpack.c.bf16 %v818, %v818
  %v877 = vpack.c.bf16 %v819, %v819
  %v878 = vpack.c.bf16 %v820, %v820
  %v879 = vpack.c.bf16 %v821, %v821
  %v880 = vpack.c.bf16 %v822, %v822
  %v881 = vpack.c.bf16 %v823, %v823
  %v882 = vpack.c.bf16 %v824, %v824
  %v884 = vshrl.u32 %v867, 16
  %v886 = vrot.slane %v884, 7
  %v887 = vshll.u32 %v867, 16
  %v889 = vor.u32 %v886, %v887
  %v890 = vrot.slane %v886, 4
  %v892 = vshrl.u32 %v868, 16
  %v894 = vrot.slane %v892, 7
  %v895 = vshll.u32 %v868, 16
  %v897 = vor.u32 %v894, %v895
  %v898 = vrot.slane %v894, 4
  %v900 = vshrl.u32 %v869, 16
  %v902 = vrot.slane %v900, 7
  %v903 = vshll.u32 %v869, 16
  %v905 = vor.u32 %v902, %v903
  %v906 = vrot.slane %v902, 4
  %v908 = vshrl.u32 %v870, 16
  %v910 = vrot.slane %v908, 7
  %v911 = vshll.u32 %v870, 16
  %v913 = vor.u32 %v910, %v911
  %v914 = vrot.slane %v910, 4
  %v916 = vshrl.u32 %v871, 16
  %v918 = vrot.slane %v916, 7
  %v919 = vshll.u32 %v871, 16
  %v921 = vor.u32 %v918, %v919
  %v922 = vrot.slane %v918, 4
  %v924 = vshrl.u32 %v872, 16
  %v926 = vrot.slane %v924, 7
  %v927 = vshll.u32 %v872, 16
  %v929 = vor.u32 %v926, %v927
  %v930 = vrot.slane %v926, 4
  %v932 = vshrl.u32 %v873, 16
  %v934 = vrot.slane %v932, 7
  %v935 = vshll.u32 %v873, 16
  %v937 = vor.u32 %v934, %v935
  %v938 = vrot.slane %v934, 4
  %v940 = vshrl.u32 %v874, 16
  %v942 = vrot.slane %v940, 7
  %v943 = vshll.u32 %v874, 16
  %v945 = vor.u32 %v942, %v943
  %v946 = vrot.slane %v942, 4
  %v948 = vshrl.u32 %v875, 16
  %v950 = vrot.slane %v948, 7
  %v951 = vshll.u32 %v875, 16
  %v953 = vor.u32 %v950, %v951
  %v954 = vrot.slane %v950, 4
  %v956 = vshrl.u32 %v876, 16
  %v958 = vrot.slane %v956, 7
  %v959 = vshll.u32 %v876, 16
  %v961 = vor.u32 %v958, %v959
  %v962 = vrot.slane %v958, 4
  %v964 = vshrl.u32 %v877, 16
  %v966 = vrot.slane %v964, 7
  %v967 = vshll.u32 %v877, 16
  %v969 = vor.u32 %v966, %v967
  %v970 = vrot.slane %v966, 4
  %v972 = vshrl.u32 %v878, 16
  %v974 = vrot.slane %v972, 7
  %v975 = vshll.u32 %v878, 16
  %v977 = vor.u32 %v974, %v975
  %v978 = vrot.slane %v974, 4
  %v980 = vshrl.u32 %v879, 16
  %v982 = vrot.slane %v980, 7
  %v983 = vshll.u32 %v879, 16
  %v985 = vor.u32 %v982, %v983
  %v986 = vrot.slane %v982, 4
  %v988 = vshrl.u32 %v880, 16
  %v990 = vrot.slane %v988, 7
  %v991 = vshll.u32 %v880, 16
  %v993 = vor.u32 %v990, %v991
  %v994 = vrot.slane %v990, 4
  %v996 = vshrl.u32 %v881, 16
  %v998 = vrot.slane %v996, 7
  %v999 = vshll.u32 %v881, 16
  %v1001 = vor.u32 %v998, %v999
  %v1002 = vrot.slane %v998, 4
  %v1004 = vshrl.u32 %v882, 16
  %v1006 = vrot.slane %v1004, 7
  %v1007 = vshll.u32 %v882, 16
  %v1009 = vor.u32 %v1006, %v1007
  %v1010 = vrot.slane %v1006, 4
  %s1043 = scalar_lea.vmem [#allocation2], 8
  %vm1044 = vcmask 257024
  %vm1045 = vsmask.f32 7938
  %vm1046 = vmand %vm1044, %vm1045
  %v1047 = vld [vmem:[%s1043] sm:$0xf]
  %v1048 = vsel %vm1046, %v889, %v1047
  %1049 = vst [vmem:[%s1043] sm:$0xf] %v1048
  %vm1050 = vcmask 253952
  %vm1051 = vsmask.f32 256
  %vm1052 = vmand %vm1050, %vm1051
  %v1053 = vld [vmem:[%s1043 + $0x4] sm:$0x1]
  %v1054 = vsel %vm1052, %v890, %v1053
  %1055 = vst [vmem:[%s1043 + $0x4] sm:$0x1] %v1054
  %v1056 = vld [vmem:[%s1043 + $0x8] sm:$0xf]
  %v1057 = vsel %vm1046, %v897, %v1056
  %1058 = vst [vmem:[%s1043 + $0x8] sm:$0xf] %v1057
  %v1059 = vld [vmem:[%s1043 + $0xc] sm:$0x1]
  %v1060 = vsel %vm1052, %v898, %v1059
  %1061 = vst [vmem:[%s1043 + $0xc] sm:$0x1] %v1060
  %v1062 = vld [vmem:[%s1043 + $0x10] sm:$0xf]
  %v1063 = vsel %vm1046, %v905, %v1062
  %1064 = vst [vmem:[%s1043 + $0x10] sm:$0xf] %v1063
  %v1065 = vld [vmem:[%s1043 + $0x14] sm:$0x1]
  %v1066 = vsel %vm1052, %v906, %v1065
  %1067 = vst [vmem:[%s1043 + $0x14] sm:$0x1] %v1066
  %v1068 = vld [vmem:[%s1043 + $0x18] sm:$0xf]
  %v1069 = vsel %vm1046, %v913, %v1068
  %1070 = vst [vmem:[%s1043 + $0x18] sm:$0xf] %v1069
  %v1071 = vld [vmem:[%s1043 + $0x1c] sm:$0x1]
  %v1072 = vsel %vm1052, %v914, %v1071
  %1073 = vst [vmem:[%s1043 + $0x1c] sm:$0x1] %v1072
  %v1074 = vld [vmem:[%s1043 + $0x20] sm:$0xf]
  %v1075 = vsel %vm1046, %v921, %v1074
  %1076 = vst [vmem:[%s1043 + $0x20] sm:$0xf] %v1075
  %v1077 = vld [vmem:[%s1043 + $0x24] sm:$0x1]
  %v1078 = vsel %vm1052, %v922, %v1077
  %1079 = vst [vmem:[%s1043 + $0x24] sm:$0x1] %v1078
  %v1080 = vld [vmem:[%s1043 + $0x28] sm:$0xf]
  %v1081 = vsel %vm1046, %v929, %v1080
  %1082 = vst [vmem:[%s1043 + $0x28] sm:$0xf] %v1081
  %v1083 = vld [vmem:[%s1043 + $0x2c] sm:$0x1]
  %v1084 = vsel %vm1052, %v930, %v1083
  %1085 = vst [vmem:[%s1043 + $0x2c] sm:$0x1] %v1084
  %v1086 = vld [vmem:[%s1043 + $0x30] sm:$0xf]
  %v1087 = vsel %vm1046, %v937, %v1086
  %1088 = vst [vmem:[%s1043 + $0x30] sm:$0xf] %v1087
  %v1089 = vld [vmem:[%s1043 + $0x34] sm:$0x1]
  %v1090 = vsel %vm1052, %v938, %v1089
  %1091 = vst [vmem:[%s1043 + $0x34] sm:$0x1] %v1090
  %v1092 = vld [vmem:[%s1043 + $0x38] sm:$0xf]
  %v1093 = vsel %vm1046, %v945, %v1092
  %1094 = vst [vmem:[%s1043 + $0x38] sm:$0xf] %v1093
  %v1095 = vld [vmem:[%s1043 + $0x3c] sm:$0x1]
  %v1096 = vsel %vm1052, %v946, %v1095
  %1097 = vst [vmem:[%s1043 + $0x3c] sm:$0x1] %v1096
  %v1098 = vld [vmem:[%s1043 + $0x50] sm:$0xf]
  %v1099 = vsel %vm1046, %v953, %v1098
  %1100 = vst [vmem:[%s1043 + $0x50] sm:$0xf] %v1099
  %v1101 = vld [vmem:[%s1043 + $0x54] sm:$0x1]
  %v1102 = vsel %vm1052, %v954, %v1101
  %1103 = vst [vmem:[%s1043 + $0x54] sm:$0x1] %v1102
  %v1104 = vld [vmem:[%s1043 + $0x58] sm:$0xf]
  %v1105 = vsel %vm1046, %v961, %v1104
  %1106 = vst [vmem:[%s1043 + $0x58] sm:$0xf] %v1105
  %v1107 = vld [vmem:[%s1043 + $0x5c] sm:$0x1]
  %v1108 = vsel %vm1052, %v962, %v1107
  %1109 = vst [vmem:[%s1043 + $0x5c] sm:$0x1] %v1108
  %v1110 = vld [vmem:[%s1043 + $0x60] sm:$0xf]
  %v1111 = vsel %vm1046, %v969, %v1110
  %1112 = vst [vmem:[%s1043 + $0x60] sm:$0xf] %v1111
  %v1113 = vld [vmem:[%s1043 + $0x64] sm:$0x1]
  %v1114 = vsel %vm1052, %v970, %v1113
  %1115 = vst [vmem:[%s1043 + $0x64] sm:$0x1] %v1114
  %v1116 = vld [vmem:[%s1043 + $0x68] sm:$0xf]
  %v1117 = vsel %vm1046, %v977, %v1116
  %1118 = vst [vmem:[%s1043 + $0x68] sm:$0xf] %v1117
  %v1119 = vld [vmem:[%s1043 + $0x6c] sm:$0x1]
  %v1120 = vsel %vm1052, %v978, %v1119
  %1121 = vst [vmem:[%s1043 + $0x6c] sm:$0x1] %v1120
  %v1122 = vld [vmem:[%s1043 + $0x70] sm:$0xf]
  %v1123 = vsel %vm1046, %v985, %v1122
  %1124 = vst [vmem:[%s1043 + $0x70] sm:$0xf] %v1123
  %v1125 = vld [vmem:[%s1043 + $0x74] sm:$0x1]
  %v1126 = vsel %vm1052, %v986, %v1125
  %1127 = vst [vmem:[%s1043 + $0x74] sm:$0x1] %v1126
  %v1128 = vld [vmem:[%s1043 + $0x78] sm:$0xf]
  %v1129 = vsel %vm1046, %v993, %v1128
  %1130 = vst [vmem:[%s1043 + $0x78] sm:$0xf] %v1129
  %v1131 = vld [vmem:[%s1043 + $0x7c] sm:$0x1]
  %v1132 = vsel %vm1052, %v994, %v1131
  %1133 = vst [vmem:[%s1043 + $0x7c] sm:$0x1] %v1132
  %v1134 = vld [vmem:[%s1043 + $0x80] sm:$0xf]
  %v1135 = vsel %vm1046, %v1001, %v1134
  %1136 = vst [vmem:[%s1043 + $0x80] sm:$0xf] %v1135
  %v1137 = vld [vmem:[%s1043 + $0x84] sm:$0x1]
  %v1138 = vsel %vm1052, %v1002, %v1137
  %1139 = vst [vmem:[%s1043 + $0x84] sm:$0x1] %v1138
  %v1140 = vld [vmem:[%s1043 + $0x88] sm:$0xf]
  %v1141 = vsel %vm1046, %v1009, %v1140
  %1142 = vst [vmem:[%s1043 + $0x88] sm:$0xf] %v1141
  %v1143 = vld [vmem:[%s1043 + $0x8c] sm:$0x1]
  %v1144 = vsel %vm1052, %v1010, %v1143
  %1145 = vst [vmem:[%s1043 + $0x8c] sm:$0x1] %v1144
  %v1146 = vld [vmem:[#allocation2] sm:$0xf]
  %v1147 = vld [vmem:[#allocation2 + $0x8] sm:$0xf]
  %v1148 = vld [vmem:[#allocation2 + $0x10] sm:$0xf]
  %v1149 = vld [vmem:[#allocation2 + $0x18] sm:$0xf]
  %v1150 = vld [vmem:[#allocation2 + $0x20] sm:$0xf]
  %v1151 = vld [vmem:[#allocation2 + $0x28] sm:$0xf]
  %v1152 = vld [vmem:[#allocation2 + $0x30] sm:$0xf]
  %v1153 = vld [vmem:[#allocation2 + $0x38] sm:$0xf]
  %v1154 = vld [vmem:[#allocation2 + $0x50] sm:$0xf]
  %v1155 = vld [vmem:[#allocation2 + $0x58] sm:$0xf]
  %v1156 = vld [vmem:[#allocation2 + $0x60] sm:$0xf]
  %v1157 = vld [vmem:[#allocation2 + $0x68] sm:$0xf]
  %v1158 = vld [vmem:[#allocation2 + $0x70] sm:$0xf]
  %v1159 = vld [vmem:[#allocation2 + $0x78] sm:$0xf]
  %v1160 = vld [vmem:[#allocation2 + $0x80] sm:$0xf]
  %v1161 = vld [vmem:[#allocation2 + $0x88] sm:$0xf]
  %v1162 = vld [vmem:[#allocation2 + $0x4] sm:$0x1]
  %v1163 = vld [vmem:[#allocation2 + $0xc] sm:$0x1]
  %v1164 = vld [vmem:[#allocation2 + $0x14] sm:$0x1]
  %v1165 = vld [vmem:[#allocation2 + $0x1c] sm:$0x1]
  %v1166 = vld [vmem:[#allocation2 + $0x24] sm:$0x1]
  %v1167 = vld [vmem:[#allocation2 + $0x2c] sm:$0x1]
  %v1168 = vld [vmem:[#allocation2 + $0x34] sm:$0x1]
  %v1169 = vld [vmem:[#allocation2 + $0x3c] sm:$0x1]
  %v1170 = vld [vmem:[#allocation2 + $0x54] sm:$0x1]
  %v1171 = vld [vmem:[#allocation2 + $0x5c] sm:$0x1]
  %v1172 = vld [vmem:[#allocation2 + $0x64] sm:$0x1]
  %v1173 = vld [vmem:[#allocation2 + $0x6c] sm:$0x1]
  %v1174 = vld [vmem:[#allocation2 + $0x74] sm:$0x1]
  %v1175 = vld [vmem:[#allocation2 + $0x7c] sm:$0x1]
  %v1176 = vld [vmem:[#allocation2 + $0x84] sm:$0x1]
  %v1177 = vld [vmem:[#allocation2 + $0x8c] sm:$0x1]
  %v1178 = vld [vmem:[#allocation2] sm:$0xe]
  %v1179 = vld [vmem:[#allocation2 + $0x8] sm:$0xe]
  %v1180 = vld [vmem:[#allocation2 + $0x10] sm:$0xe]
  %v1181 = vld [vmem:[#allocation2 + $0x18] sm:$0xe]
  %v1182 = vld [vmem:[#allocation2 + $0x20] sm:$0xe]
  %v1183 = vld [vmem:[#allocation2 + $0x28] sm:$0xe]
  %v1184 = vld [vmem:[#allocation2 + $0x30] sm:$0xe]
  %v1185 = vld [vmem:[#allocation2 + $0x38] sm:$0xe]
  %v1186 = vld [vmem:[#allocation2 + $0x50] sm:$0xe]
  %v1187 = vld [vmem:[#allocation2 + $0x58] sm:$0xe]
  %v1188 = vld [vmem:[#allocation2 + $0x60] sm:$0xe]
  %v1189 = vld [vmem:[#allocation2 + $0x68] sm:$0xe]
  %v1190 = vld [vmem:[#allocation2 + $0x70] sm:$0xe]
  %v1191 = vld [vmem:[#allocation2 + $0x78] sm:$0xe]
  %v1192 = vld [vmem:[#allocation2 + $0x80] sm:$0xe]
  %v1193 = vld [vmem:[#allocation2 + $0x88] sm:$0xe]
  %v1194 = vld [vmem:[%s1043] sm:$0xf]
  %v1195 = vld [vmem:[%s1043 + $0x8] sm:$0xf]
  %v1196 = vld [vmem:[%s1043 + $0x10] sm:$0xf]
  %v1197 = vld [vmem:[%s1043 + $0x18] sm:$0xf]
  %v1198 = vld [vmem:[%s1043 + $0x20] sm:$0xf]
  %v1199 = vld [vmem:[%s1043 + $0x28] sm:$0xf]
  %v1200 = vld [vmem:[%s1043 + $0x30] sm:$0xf]
  %v1201 = vld [vmem:[%s1043 + $0x38] sm:$0xf]
  %v1202 = vld [vmem:[%s1043 + $0x50] sm:$0xf]
  %v1203 = vld [vmem:[%s1043 + $0x58] sm:$0xf]
  %v1204 = vld [vmem:[%s1043 + $0x60] sm:$0xf]
  %v1205 = vld [vmem:[%s1043 + $0x68] sm:$0xf]
  %v1206 = vld [vmem:[%s1043 + $0x70] sm:$0xf]
  %v1207 = vld [vmem:[%s1043 + $0x78] sm:$0xf]
  %v1208 = vld [vmem:[%s1043 + $0x80] sm:$0xf]
  %v1209 = vld [vmem:[%s1043 + $0x88] sm:$0xf]
  %v1210 = vld [vmem:[%s1043 + $0x4] sm:$0x1]
  %v1211 = vld [vmem:[%s1043 + $0xc] sm:$0x1]
  %v1212 = vld [vmem:[%s1043 + $0x14] sm:$0x1]
  %v1213 = vld [vmem:[%s1043 + $0x1c] sm:$0x1]
  %v1214 = vld [vmem:[%s1043 + $0x24] sm:$0x1]
  %v1215 = vld [vmem:[%s1043 + $0x2c] sm:$0x1]
  %v1216 = vld [vmem:[%s1043 + $0x34] sm:$0x1]
  %v1217 = vld [vmem:[%s1043 + $0x3c] sm:$0x1]
  %v1218 = vld [vmem:[%s1043 + $0x54] sm:$0x1]
  %v1219 = vld [vmem:[%s1043 + $0x5c] sm:$0x1]
  %v1220 = vld [vmem:[%s1043 + $0x64] sm:$0x1]
  %v1221 = vld [vmem:[%s1043 + $0x6c] sm:$0x1]
  %v1222 = vld [vmem:[%s1043 + $0x74] sm:$0x1]
  %v1223 = vld [vmem:[%s1043 + $0x7c] sm:$0x1]
  %v1224 = vld [vmem:[%s1043 + $0x84] sm:$0x1]
  %v1225 = vld [vmem:[%s1043 + $0x8c] sm:$0x1]
  %v1226 = vld [vmem:[%s1043] sm:$0xe]
  %v1227 = vld [vmem:[%s1043 + $0x8] sm:$0xe]
  %v1228 = vld [vmem:[%s1043 + $0x10] sm:$0xe]
  %v1229 = vld [vmem:[%s1043 + $0x18] sm:$0xe]
  %v1230 = vld [vmem:[%s1043 + $0x20] sm:$0xe]
  %v1231 = vld [vmem:[%s1043 + $0x28] sm:$0xe]
  %v1232 = vld [vmem:[%s1043 + $0x30] sm:$0xe]
  %v1233 = vld [vmem:[%s1043 + $0x38] sm:$0xe]
  %v1234 = vld [vmem:[%s1043 + $0x50] sm:$0xe]
  %v1235 = vld [vmem:[%s1043 + $0x58] sm:$0xe]
  %v1236 = vld [vmem:[%s1043 + $0x60] sm:$0xe]
  %v1237 = vld [vmem:[%s1043 + $0x68] sm:$0xe]
  %v1238 = vld [vmem:[%s1043 + $0x70] sm:$0xe]
  %v1239 = vld [vmem:[%s1043 + $0x78] sm:$0xe]
  %v1240 = vld [vmem:[%s1043 + $0x80] sm:$0xe]
  %v1241 = vld [vmem:[%s1043 + $0x88] sm:$0xe]
  %s1242 = scalar_lea.vmem [#allocation2], 16
  %v1243 = vld [vmem:[%s1242] sm:$0xf]
  %v1244 = vld [vmem:[%s1242 + $0x8] sm:$0xf]
  %v1245 = vld [vmem:[%s1242 + $0x10] sm:$0xf]
  %v1246 = vld [vmem:[%s1242 + $0x18] sm:$0xf]
  %v1247 = vld [vmem:[%s1242 + $0x20] sm:$0xf]
  %v1248 = vld [vmem:[%s1242 + $0x28] sm:$0xf]
  %v1249 = vld [vmem:[%s1242 + $0x30] sm:$0xf]
  %v1250 = vld [vmem:[%s1242 + $0x38] sm:$0xf]
  %v1251 = vld [vmem:[%s1242 + $0x50] sm:$0xf]
  %v1252 = vld [vmem:[%s1242 + $0x58] sm:$0xf]
  %v1253 = vld [vmem:[%s1242 + $0x60] sm:$0xf]
  %v1254 = vld [vmem:[%s1242 + $0x68] sm:$0xf]
  %v1255 = vld [vmem:[%s1242 + $0x70] sm:$0xf]
  %v1256 = vld [vmem:[%s1242 + $0x78] sm:$0xf]
  %v1257 = vld [vmem:[%s1242 + $0x80] sm:$0xf]
  %v1258 = vld [vmem:[%s1242 + $0x88] sm:$0xf]
  %v1259 = vld [vmem:[%s1242 + $0x4] sm:$0x1]
  %v1260 = vld [vmem:[%s1242 + $0xc] sm:$0x1]
  %v1261 = vld [vmem:[%s1242 + $0x14] sm:$0x1]
  %v1262 = vld [vmem:[%s1242 + $0x1c] sm:$0x1]
  %v1263 = vld [vmem:[%s1242 + $0x24] sm:$0x1]
  %v1264 = vld [vmem:[%s1242 + $0x2c] sm:$0x1]
  %v1265 = vld [vmem:[%s1242 + $0x34] sm:$0x1]
  %v1266 = vld [vmem:[%s1242 + $0x3c] sm:$0x1]
  %v1267 = vld [vmem:[%s1242 + $0x54] sm:$0x1]
  %v1268 = vld [vmem:[%s1242 + $0x5c] sm:$0x1]
  %v1269 = vld [vmem:[%s1242 + $0x64] sm:$0x1]
  %v1270 = vld [vmem:[%s1242 + $0x6c] sm:$0x1]
  %v1271 = vld [vmem:[%s1242 + $0x74] sm:$0x1]
  %v1272 = vld [vmem:[%s1242 + $0x7c] sm:$0x1]
  %v1273 = vld [vmem:[%s1242 + $0x84] sm:$0x1]
  %v1274 = vld [vmem:[%s1242 + $0x8c] sm:$0x1]
  %v1275 = vld [vmem:[%s1242] sm:$0xe]
  %v1276 = vld [vmem:[%s1242 + $0x8] sm:$0xe]
  %v1277 = vld [vmem:[%s1242 + $0x10] sm:$0xe]
  %v1278 = vld [vmem:[%s1242 + $0x18] sm:$0xe]
  %v1279 = vld [vmem:[%s1242 + $0x20] sm:$0xe]
  %v1280 = vld [vmem:[%s1242 + $0x28] sm:$0xe]
  %v1281 = vld [vmem:[%s1242 + $0x30] sm:$0xe]
  %v1282 = vld [vmem:[%s1242 + $0x38] sm:$0xe]
  %v1283 = vld [vmem:[%s1242 + $0x50] sm:$0xe]
  %v1284 = vld [vmem:[%s1242 + $0x58] sm:$0xe]
  %v1285 = vld [vmem:[%s1242 + $0x60] sm:$0xe]
  %v1286 = vld [vmem:[%s1242 + $0x68] sm:$0xe]
  %v1287 = vld [vmem:[%s1242 + $0x70] sm:$0xe]
  %v1288 = vld [vmem:[%s1242 + $0x78] sm:$0xe]
  %v1289 = vld [vmem:[%s1242 + $0x80] sm:$0xe]
  %v1290 = vld [vmem:[%s1242 + $0x88] sm:$0xe]
  %v1323 = vunpack.c.l.b16 %v1146
  %v1324 = vunpack.c.l.b16 %v1162
  %v1325 = vunpack.c.l.b16 %v1147
  %v1326 = vunpack.c.l.b16 %v1163
  %v1327 = vunpack.c.l.b16 %v1148
  %v1328 = vunpack.c.l.b16 %v1164
  %v1329 = vunpack.c.l.b16 %v1149
  %v1330 = vunpack.c.l.b16 %v1165
  %v1331 = vunpack.c.l.b16 %v1150
  %v1332 = vunpack.c.l.b16 %v1166
  %v1333 = vunpack.c.l.b16 %v1151
  %v1334 = vunpack.c.l.b16 %v1167
  %v1335 = vunpack.c.l.b16 %v1152
  %v1336 = vunpack.c.l.b16 %v1168
  %v1337 = vunpack.c.l.b16 %v1153
  %v1338 = vunpack.c.l.b16 %v1169
  %v1339 = vunpack.c.l.b16 %v1154
  %v1340 = vunpack.c.l.b16 %v1170
  %v1341 = vunpack.c.l.b16 %v1155
  %v1342 = vunpack.c.l.b16 %v1171
  %v1343 = vunpack.c.l.b16 %v1156
  %v1344 = vunpack.c.l.b16 %v1172
  %v1345 = vunpack.c.l.b16 %v1157
  %v1346 = vunpack.c.l.b16 %v1173
  %v1347 = vunpack.c.l.b16 %v1158
  %v1348 = vunpack.c.l.b16 %v1174
  %v1349 = vunpack.c.l.b16 %v1159
  %v1350 = vunpack.c.l.b16 %v1175
  %v1351 = vunpack.c.l.b16 %v1160
  %v1352 = vunpack.c.l.b16 %v1176
  %v1353 = vunpack.c.l.b16 %v1161
  %v1354 = vunpack.c.l.b16 %v1177
  %v1355 = vpack.c.b16 %v1324, %v1323
  %v1356 = vpack.c.b16 %v1326, %v1325
  %v1357 = vpack.c.b16 %v1328, %v1327
  %v1358 = vpack.c.b16 %v1330, %v1329
  %v1359 = vpack.c.b16 %v1332, %v1331
  %v1360 = vpack.c.b16 %v1334, %v1333
  %v1361 = vpack.c.b16 %v1336, %v1335
  %v1362 = vpack.c.b16 %v1338, %v1337
  %v1363 = vpack.c.b16 %v1340, %v1339
  %v1364 = vpack.c.b16 %v1342, %v1341
  %v1365 = vpack.c.b16 %v1344, %v1343
  %v1366 = vpack.c.b16 %v1346, %v1345
  %v1367 = vpack.c.b16 %v1348, %v1347
  %v1368 = vpack.c.b16 %v1350, %v1349
  %v1369 = vpack.c.b16 %v1352, %v1351
  %v1370 = vpack.c.b16 %v1354, %v1353
  %v1372 = vshrl.u32 %v1355, 16
  %v1374 = vshll.u32 %v1355, 16
  %v1376 = vrot.slane %v1374, 1
  %v1377 = vor.u32 %v1372, %v1376
  %v1379 = vshrl.u32 %v1356, 16
  %v1381 = vshll.u32 %v1356, 16
  %v1383 = vrot.slane %v1381, 1
  %v1384 = vor.u32 %v1379, %v1383
  %v1386 = vshrl.u32 %v1357, 16
  %v1388 = vshll.u32 %v1357, 16
  %v1390 = vrot.slane %v1388, 1
  %v1391 = vor.u32 %v1386, %v1390
  %v1393 = vshrl.u32 %v1358, 16
  %v1395 = vshll.u32 %v1358, 16
  %v1397 = vrot.slane %v1395, 1
  %v1398 = vor.u32 %v1393, %v1397
  %v1400 = vshrl.u32 %v1359, 16
  %v1402 = vshll.u32 %v1359, 16
  %v1404 = vrot.slane %v1402, 1
  %v1405 = vor.u32 %v1400, %v1404
  %v1407 = vshrl.u32 %v1360, 16
  %v1409 = vshll.u32 %v1360, 16
  %v1411 = vrot.slane %v1409, 1
  %v1412 = vor.u32 %v1407, %v1411
  %v1414 = vshrl.u32 %v1361, 16
  %v1416 = vshll.u32 %v1361, 16
  %v1418 = vrot.slane %v1416, 1
  %v1419 = vor.u32 %v1414, %v1418
  %v1421 = vshrl.u32 %v1362, 16
  %v1423 = vshll.u32 %v1362, 16
  %v1425 = vrot.slane %v1423, 1
  %v1426 = vor.u32 %v1421, %v1425
  %v1428 = vshrl.u32 %v1363, 16
  %v1430 = vshll.u32 %v1363, 16
  %v1432 = vrot.slane %v1430, 1
  %v1433 = vor.u32 %v1428, %v1432
  %v1435 = vshrl.u32 %v1364, 16
  %v1437 = vshll.u32 %v1364, 16
  %v1439 = vrot.slane %v1437, 1
  %v1440 = vor.u32 %v1435, %v1439
  %v1442 = vshrl.u32 %v1365, 16
  %v1444 = vshll.u32 %v1365, 16
  %v1446 = vrot.slane %v1444, 1
  %v1447 = vor.u32 %v1442, %v1446
  %v1449 = vshrl.u32 %v1366, 16
  %v1451 = vshll.u32 %v1366, 16
  %v1453 = vrot.slane %v1451, 1
  %v1454 = vor.u32 %v1449, %v1453
  %v1456 = vshrl.u32 %v1367, 16
  %v1458 = vshll.u32 %v1367, 16
  %v1460 = vrot.slane %v1458, 1
  %v1461 = vor.u32 %v1456, %v1460
  %v1463 = vshrl.u32 %v1368, 16
  %v1465 = vshll.u32 %v1368, 16
  %v1467 = vrot.slane %v1465, 1
  %v1468 = vor.u32 %v1463, %v1467
  %v1470 = vshrl.u32 %v1369, 16
  %v1472 = vshll.u32 %v1369, 16
  %v1474 = vrot.slane %v1472, 1
  %v1475 = vor.u32 %v1470, %v1474
  %v1477 = vshrl.u32 %v1370, 16
  %v1479 = vshll.u32 %v1370, 16
  %v1481 = vrot.slane %v1479, 1
  %v1482 = vor.u32 %v1477, %v1481
  %1483 = vrot.lane.b32.xlu0 %v1377, 32
  %v1484 = vpop.permute.xlu0 %1483
  %1485 = vrot.lane.b32.xlu0 %v1384, 32
  %v1486 = vpop.permute.xlu0 %1485
  %1487 = vrot.lane.b32.xlu0 %v1391, 32
  %v1488 = vpop.permute.xlu0 %1487
  %1489 = vrot.lane.b32.xlu0 %v1398, 32
  %v1490 = vpop.permute.xlu0 %1489
  %1491 = vrot.lane.b32.xlu0 %v1405, 32
  %v1492 = vpop.permute.xlu0 %1491
  %1493 = vrot.lane.b32.xlu0 %v1412, 32
  %v1494 = vpop.permute.xlu0 %1493
  %1495 = vrot.lane.b32.xlu0 %v1419, 32
  %v1496 = vpop.permute.xlu0 %1495
  %1497 = vrot.lane.b32.xlu0 %v1426, 32
  %v1498 = vpop.permute.xlu0 %1497
  %1499 = vrot.lane.b32.xlu0 %v1433, 32
  %v1500 = vpop.permute.xlu0 %1499
  %1501 = vrot.lane.b32.xlu0 %v1440, 32
  %v1502 = vpop.permute.xlu0 %1501
  %1503 = vrot.lane.b32.xlu0 %v1447, 32
  %v1504 = vpop.permute.xlu0 %1503
  %1505 = vrot.lane.b32.xlu0 %v1454, 32
  %v1506 = vpop.permute.xlu0 %1505
  %1507 = vrot.lane.b32.xlu0 %v1461, 32
  %v1508 = vpop.permute.xlu0 %1507
  %1509 = vrot.lane.b32.xlu0 %v1468, 32
  %v1510 = vpop.permute.xlu0 %1509
  %1511 = vrot.lane.b32.xlu0 %v1475, 32
  %v1512 = vpop.permute.xlu0 %1511
  %1513 = vrot.lane.b32.xlu0 %v1482, 32
  %v1514 = vpop.permute.xlu0 %1513
  %v1531 = vunpack.c.l.b16 %v1178
  %v1532 = vunpack.c.l.b16 %v1179
  %v1533 = vunpack.c.l.b16 %v1180
  %v1534 = vunpack.c.l.b16 %v1181
  %v1535 = vunpack.c.l.b16 %v1182
  %v1536 = vunpack.c.l.b16 %v1183
  %v1537 = vunpack.c.l.b16 %v1184
  %v1538 = vunpack.c.l.b16 %v1185
  %v1539 = vunpack.c.l.b16 %v1186
  %v1540 = vunpack.c.l.b16 %v1187
  %v1541 = vunpack.c.l.b16 %v1188
  %v1542 = vunpack.c.l.b16 %v1189
  %v1543 = vunpack.c.l.b16 %v1190
  %v1544 = vunpack.c.l.b16 %v1191
  %v1545 = vunpack.c.l.b16 %v1192
  %v1546 = vunpack.c.l.b16 %v1193
  %v1547 = vpack.c.b16 %v1324, %v1531
  %v1548 = vpack.c.b16 %v1326, %v1532
  %v1549 = vpack.c.b16 %v1328, %v1533
  %v1550 = vpack.c.b16 %v1330, %v1534
  %v1551 = vpack.c.b16 %v1332, %v1535
  %v1552 = vpack.c.b16 %v1334, %v1536
  %v1553 = vpack.c.b16 %v1336, %v1537
  %v1554 = vpack.c.b16 %v1338, %v1538
  %v1555 = vpack.c.b16 %v1340, %v1539
  %v1556 = vpack.c.b16 %v1342, %v1540
  %v1557 = vpack.c.b16 %v1344, %v1541
  %v1558 = vpack.c.b16 %v1346, %v1542
  %v1559 = vpack.c.b16 %v1348, %v1543
  %v1560 = vpack.c.b16 %v1350, %v1544
  %v1561 = vpack.c.b16 %v1352, %v1545
  %v1562 = vpack.c.b16 %v1354, %v1546
  %v1563 = vrot.slane %v1547, 1
  %v1564 = vrot.slane %v1548, 1
  %v1565 = vrot.slane %v1549, 1
  %v1566 = vrot.slane %v1550, 1
  %v1567 = vrot.slane %v1551, 1
  %v1568 = vrot.slane %v1552, 1
  %v1569 = vrot.slane %v1553, 1
  %v1570 = vrot.slane %v1554, 1
  %v1571 = vrot.slane %v1555, 1
  %v1572 = vrot.slane %v1556, 1
  %v1573 = vrot.slane %v1557, 1
  %v1574 = vrot.slane %v1558, 1
  %v1575 = vrot.slane %v1559, 1
  %v1576 = vrot.slane %v1560, 1
  %v1577 = vrot.slane %v1561, 1
  %v1578 = vrot.slane %v1562, 1
  %1579 = vrot.lane.b32.xlu0 %v1563, 64
  %v1580 = vpop.permute.xlu0 %1579
  %1581 = vrot.lane.b32.xlu0 %v1564, 64
  %v1582 = vpop.permute.xlu0 %1581
  %1583 = vrot.lane.b32.xlu0 %v1565, 64
  %v1584 = vpop.permute.xlu0 %1583
  %1585 = vrot.lane.b32.xlu0 %v1566, 64
  %v1586 = vpop.permute.xlu0 %1585
  %1587 = vrot.lane.b32.xlu0 %v1567, 64
  %v1588 = vpop.permute.xlu0 %1587
  %1589 = vrot.lane.b32.xlu0 %v1568, 64
  %v1590 = vpop.permute.xlu0 %1589
  %1591 = vrot.lane.b32.xlu0 %v1569, 64
  %v1592 = vpop.permute.xlu0 %1591
  %1593 = vrot.lane.b32.xlu0 %v1570, 64
  %v1594 = vpop.permute.xlu0 %1593
  %1595 = vrot.lane.b32.xlu0 %v1571, 64
  %v1596 = vpop.permute.xlu0 %1595
  %1597 = vrot.lane.b32.xlu0 %v1572, 64
  %v1598 = vpop.permute.xlu0 %1597
  %1599 = vrot.lane.b32.xlu0 %v1573, 64
  %v1600 = vpop.permute.xlu0 %1599
  %1601 = vrot.lane.b32.xlu0 %v1574, 64
  %v1602 = vpop.permute.xlu0 %1601
  %1603 = vrot.lane.b32.xlu0 %v1575, 64
  %v1604 = vpop.permute.xlu0 %1603
  %1605 = vrot.lane.b32.xlu0 %v1576, 64
  %v1606 = vpop.permute.xlu0 %1605
  %1607 = vrot.lane.b32.xlu0 %v1577, 64
  %v1608 = vpop.permute.xlu0 %1607
  %1609 = vrot.lane.b32.xlu0 %v1578, 64
  %v1610 = vpop.permute.xlu0 %1609
  %v1627 = vunpack.c.l.b16 %v1194
  %v1628 = vunpack.c.l.b16 %v1195
  %v1629 = vunpack.c.l.b16 %v1196
  %v1630 = vunpack.c.l.b16 %v1197
  %v1631 = vunpack.c.l.b16 %v1198
  %v1632 = vunpack.c.l.b16 %v1199
  %v1633 = vunpack.c.l.b16 %v1200
  %v1634 = vunpack.c.l.b16 %v1201
  %v1635 = vunpack.c.l.b16 %v1202
  %v1636 = vunpack.c.l.b16 %v1203
  %v1637 = vunpack.c.l.b16 %v1204
  %v1638 = vunpack.c.l.b16 %v1205
  %v1639 = vunpack.c.l.b16 %v1206
  %v1640 = vunpack.c.l.b16 %v1207
  %v1641 = vunpack.c.l.b16 %v1208
  %v1642 = vunpack.c.l.b16 %v1209
  %v1643 = vpack.c.b16 %v1627, %v1627
  %v1644 = vpack.c.b16 %v1628, %v1628
  %v1645 = vpack.c.b16 %v1629, %v1629
  %v1646 = vpack.c.b16 %v1630, %v1630
  %v1647 = vpack.c.b16 %v1631, %v1631
  %v1648 = vpack.c.b16 %v1632, %v1632
  %v1649 = vpack.c.b16 %v1633, %v1633
  %v1650 = vpack.c.b16 %v1634, %v1634
  %v1651 = vpack.c.b16 %v1635, %v1635
  %v1652 = vpack.c.b16 %v1636, %v1636
  %v1653 = vpack.c.b16 %v1637, %v1637
  %v1654 = vpack.c.b16 %v1638, %v1638
  %v1655 = vpack.c.b16 %v1639, %v1639
  %v1656 = vpack.c.b16 %v1640, %v1640
  %v1657 = vpack.c.b16 %v1641, %v1641
  %v1658 = vpack.c.b16 %v1642, %v1642
  %1659 = vrot.lane.b32.xlu0 %v1643, 96
  %v1660 = vpop.permute.xlu0 %1659
  %1661 = vrot.lane.b32.xlu0 %v1644, 96
  %v1662 = vpop.permute.xlu0 %1661
  %1663 = vrot.lane.b32.xlu0 %v1645, 96
  %v1664 = vpop.permute.xlu0 %1663
  %1665 = vrot.lane.b32.xlu0 %v1646, 96
  %v1666 = vpop.permute.xlu0 %1665
  %1667 = vrot.lane.b32.xlu0 %v1647, 96
  %v1668 = vpop.permute.xlu0 %1667
  %1669 = vrot.lane.b32.xlu0 %v1648, 96
  %v1670 = vpop.permute.xlu0 %1669
  %1671 = vrot.lane.b32.xlu0 %v1649, 96
  %v1672 = vpop.permute.xlu0 %1671
  %1673 = vrot.lane.b32.xlu0 %v1650, 96
  %v1674 = vpop.permute.xlu0 %1673
  %1675 = vrot.lane.b32.xlu0 %v1651, 96
  %v1676 = vpop.permute.xlu0 %1675
  %1677 = vrot.lane.b32.xlu0 %v1652, 96
  %v1678 = vpop.permute.xlu0 %1677
  %1679 = vrot.lane.b32.xlu0 %v1653, 96
  %v1680 = vpop.permute.xlu0 %1679
  %1681 = vrot.lane.b32.xlu0 %v1654, 96
  %v1682 = vpop.permute.xlu0 %1681
  %1683 = vrot.lane.b32.xlu0 %v1655, 96
  %v1684 = vpop.permute.xlu0 %1683
  %1685 = vrot.lane.b32.xlu0 %v1656, 96
  %v1686 = vpop.permute.xlu0 %1685
  %1687 = vrot.lane.b32.xlu0 %v1657, 96
  %v1688 = vpop.permute.xlu0 %1687
  %1689 = vrot.lane.b32.xlu0 %v1658, 96
  %v1690 = vpop.permute.xlu0 %1689
  %v1707 = vunpack.c.l.b16 %v1210
  %v1708 = vunpack.c.l.b16 %v1211
  %v1709 = vunpack.c.l.b16 %v1212
  %v1710 = vunpack.c.l.b16 %v1213
  %v1711 = vunpack.c.l.b16 %v1214
  %v1712 = vunpack.c.l.b16 %v1215
  %v1713 = vunpack.c.l.b16 %v1216
  %v1714 = vunpack.c.l.b16 %v1217
  %v1715 = vunpack.c.l.b16 %v1218
  %v1716 = vunpack.c.l.b16 %v1219
  %v1717 = vunpack.c.l.b16 %v1220
  %v1718 = vunpack.c.l.b16 %v1221
  %v1719 = vunpack.c.l.b16 %v1222
  %v1720 = vunpack.c.l.b16 %v1223
  %v1721 = vunpack.c.l.b16 %v1224
  %v1722 = vunpack.c.l.b16 %v1225
  %v1723 = vpack.c.b16 %v1707, %v1627
  %v1724 = vpack.c.b16 %v1708, %v1628
  %v1725 = vpack.c.b16 %v1709, %v1629
  %v1726 = vpack.c.b16 %v1710, %v1630
  %v1727 = vpack.c.b16 %v1711, %v1631
  %v1728 = vpack.c.b16 %v1712, %v1632
  %v1729 = vpack.c.b16 %v1713, %v1633
  %v1730 = vpack.c.b16 %v1714, %v1634
  %v1731 = vpack.c.b16 %v1715, %v1635
  %v1732 = vpack.c.b16 %v1716, %v1636
  %v1733 = vpack.c.b16 %v1717, %v1637
  %v1734 = vpack.c.b16 %v1718, %v1638
  %v1735 = vpack.c.b16 %v1719, %v1639
  %v1736 = vpack.c.b16 %v1720, %v1640
  %v1737 = vpack.c.b16 %v1721, %v1641
  %v1738 = vpack.c.b16 %v1722, %v1642
  %v1740 = vshrl.u32 %v1723, 16
  %v1742 = vshll.u32 %v1723, 16
  %v1744 = vrot.slane %v1742, 1
  %v1745 = vor.u32 %v1740, %v1744
  %v1747 = vshrl.u32 %v1724, 16
  %v1749 = vshll.u32 %v1724, 16
  %v1751 = vrot.slane %v1749, 1
  %v1752 = vor.u32 %v1747, %v1751
  %v1754 = vshrl.u32 %v1725, 16
  %v1756 = vshll.u32 %v1725, 16
  %v1758 = vrot.slane %v1756, 1
  %v1759 = vor.u32 %v1754, %v1758
  %v1761 = vshrl.u32 %v1726, 16
  %v1763 = vshll.u32 %v1726, 16
  %v1765 = vrot.slane %v1763, 1
  %v1766 = vor.u32 %v1761, %v1765
  %v1768 = vshrl.u32 %v1727, 16
  %v1770 = vshll.u32 %v1727, 16
  %v1772 = vrot.slane %v1770, 1
  %v1773 = vor.u32 %v1768, %v1772
  %v1775 = vshrl.u32 %v1728, 16
  %v1777 = vshll.u32 %v1728, 16
  %v1779 = vrot.slane %v1777, 1
  %v1780 = vor.u32 %v1775, %v1779
  %v1782 = vshrl.u32 %v1729, 16
  %v1784 = vshll.u32 %v1729, 16
  %v1786 = vrot.slane %v1784, 1
  %v1787 = vor.u32 %v1782, %v1786
  %v1789 = vshrl.u32 %v1730, 16
  %v1791 = vshll.u32 %v1730, 16
  %v1793 = vrot.slane %v1791, 1
  %v1794 = vor.u32 %v1789, %v1793
  %v1796 = vshrl.u32 %v1731, 16
  %v1798 = vshll.u32 %v1731, 16
  %v1800 = vrot.slane %v1798, 1
  %v1801 = vor.u32 %v1796, %v1800
  %v1803 = vshrl.u32 %v1732, 16
  %v1805 = vshll.u32 %v1732, 16
  %v1807 = vrot.slane %v1805, 1
  %v1808 = vor.u32 %v1803, %v1807
  %v1810 = vshrl.u32 %v1733, 16
  %v1812 = vshll.u32 %v1733, 16
  %v1814 = vrot.slane %v1812, 1
  %v1815 = vor.u32 %v1810, %v1814
  %v1817 = vshrl.u32 %v1734, 16
  %v1819 = vshll.u32 %v1734, 16
  %v1821 = vrot.slane %v1819, 1
  %v1822 = vor.u32 %v1817, %v1821
  %v1824 = vshrl.u32 %v1735, 16
  %v1826 = vshll.u32 %v1735, 16
  %v1828 = vrot.slane %v1826, 1
  %v1829 = vor.u32 %v1824, %v1828
  %v1831 = vshrl.u32 %v1736, 16
  %v1833 = vshll.u32 %v1736, 16
  %v1835 = vrot.slane %v1833, 1
  %v1836 = vor.u32 %v1831, %v1835
  %v1838 = vshrl.u32 %v1737, 16
  %v1840 = vshll.u32 %v1737, 16
  %v1842 = vrot.slane %v1840, 1
  %v1843 = vor.u32 %v1838, %v1842
  %v1845 = vshrl.u32 %v1738, 16
  %v1847 = vshll.u32 %v1738, 16
  %v1849 = vrot.slane %v1847, 1
  %v1850 = vor.u32 %v1845, %v1849
  %v1867 = vunpack.c.l.b16 %v1226
  %v1868 = vunpack.c.l.b16 %v1227
  %v1869 = vunpack.c.l.b16 %v1228
  %v1870 = vunpack.c.l.b16 %v1229
  %v1871 = vunpack.c.l.b16 %v1230
  %v1872 = vunpack.c.l.b16 %v1231
  %v1873 = vunpack.c.l.b16 %v1232
  %v1874 = vunpack.c.l.b16 %v1233
  %v1875 = vunpack.c.l.b16 %v1234
  %v1876 = vunpack.c.l.b16 %v1235
  %v1877 = vunpack.c.l.b16 %v1236
  %v1878 = vunpack.c.l.b16 %v1237
  %v1879 = vunpack.c.l.b16 %v1238
  %v1880 = vunpack.c.l.b16 %v1239
  %v1881 = vunpack.c.l.b16 %v1240
  %v1882 = vunpack.c.l.b16 %v1241
  %v1883 = vpack.c.b16 %v1707, %v1867
  %v1884 = vpack.c.b16 %v1708, %v1868
  %v1885 = vpack.c.b16 %v1709, %v1869
  %v1886 = vpack.c.b16 %v1710, %v1870
  %v1887 = vpack.c.b16 %v1711, %v1871
  %v1888 = vpack.c.b16 %v1712, %v1872
  %v1889 = vpack.c.b16 %v1713, %v1873
  %v1890 = vpack.c.b16 %v1714, %v1874
  %v1891 = vpack.c.b16 %v1715, %v1875
  %v1892 = vpack.c.b16 %v1716, %v1876
  %v1893 = vpack.c.b16 %v1717, %v1877
  %v1894 = vpack.c.b16 %v1718, %v1878
  %v1895 = vpack.c.b16 %v1719, %v1879
  %v1896 = vpack.c.b16 %v1720, %v1880
  %v1897 = vpack.c.b16 %v1721, %v1881
  %v1898 = vpack.c.b16 %v1722, %v1882
  %v1899 = vrot.slane %v1883, 1
  %v1900 = vrot.slane %v1884, 1
  %v1901 = vrot.slane %v1885, 1
  %v1902 = vrot.slane %v1886, 1
  %v1903 = vrot.slane %v1887, 1
  %v1904 = vrot.slane %v1888, 1
  %v1905 = vrot.slane %v1889, 1
  %v1906 = vrot.slane %v1890, 1
  %v1907 = vrot.slane %v1891, 1
  %v1908 = vrot.slane %v1892, 1
  %v1909 = vrot.slane %v1893, 1
  %v1910 = vrot.slane %v1894, 1
  %v1911 = vrot.slane %v1895, 1
  %v1912 = vrot.slane %v1896, 1
  %v1913 = vrot.slane %v1897, 1
  %v1914 = vrot.slane %v1898, 1
  %1915 = vrot.lane.b32.xlu0 %v1899, 32
  %v1916 = vpop.permute.xlu0 %1915
  %1917 = vrot.lane.b32.xlu0 %v1900, 32
  %v1918 = vpop.permute.xlu0 %1917
  %1919 = vrot.lane.b32.xlu0 %v1901, 32
  %v1920 = vpop.permute.xlu0 %1919
  %1921 = vrot.lane.b32.xlu0 %v1902, 32
  %v1922 = vpop.permute.xlu0 %1921
  %1923 = vrot.lane.b32.xlu0 %v1903, 32
  %v1924 = vpop.permute.xlu0 %1923
  %1925 = vrot.lane.b32.xlu0 %v1904, 32
  %v1926 = vpop.permute.xlu0 %1925
  %1927 = vrot.lane.b32.xlu0 %v1905, 32
  %v1928 = vpop.permute.xlu0 %1927
  %1929 = vrot.lane.b32.xlu0 %v1906, 32
  %v1930 = vpop.permute.xlu0 %1929
  %1931 = vrot.lane.b32.xlu0 %v1907, 32
  %v1932 = vpop.permute.xlu0 %1931
  %1933 = vrot.lane.b32.xlu0 %v1908, 32
  %v1934 = vpop.permute.xlu0 %1933
  %1935 = vrot.lane.b32.xlu0 %v1909, 32
  %v1936 = vpop.permute.xlu0 %1935
  %1937 = vrot.lane.b32.xlu0 %v1910, 32
  %v1938 = vpop.permute.xlu0 %1937
  %1939 = vrot.lane.b32.xlu0 %v1911, 32
  %v1940 = vpop.permute.xlu0 %1939
  %1941 = vrot.lane.b32.xlu0 %v1912, 32
  %v1942 = vpop.permute.xlu0 %1941
  %1943 = vrot.lane.b32.xlu0 %v1913, 32
  %v1944 = vpop.permute.xlu0 %1943
  %1945 = vrot.lane.b32.xlu0 %v1914, 32
  %v1946 = vpop.permute.xlu0 %1945
  %v1963 = vunpack.c.l.b16 %v1243
  %v1964 = vunpack.c.l.b16 %v1244
  %v1965 = vunpack.c.l.b16 %v1245
  %v1966 = vunpack.c.l.b16 %v1246
  %v1967 = vunpack.c.l.b16 %v1247
  %v1968 = vunpack.c.l.b16 %v1248
  %v1969 = vunpack.c.l.b16 %v1249
  %v1970 = vunpack.c.l.b16 %v1250
  %v1971 = vunpack.c.l.b16 %v1251
  %v1972 = vunpack.c.l.b16 %v1252
  %v1973 = vunpack.c.l.b16 %v1253
  %v1974 = vunpack.c.l.b16 %v1254
  %v1975 = vunpack.c.l.b16 %v1255
  %v1976 = vunpack.c.l.b16 %v1256
  %v1977 = vunpack.c.l.b16 %v1257
  %v1978 = vunpack.c.l.b16 %v1258
  %v1979 = vpack.c.b16 %v1963, %v1963
  %v1980 = vpack.c.b16 %v1964, %v1964
  %v1981 = vpack.c.b16 %v1965, %v1965
  %v1982 = vpack.c.b16 %v1966, %v1966
  %v1983 = vpack.c.b16 %v1967, %v1967
  %v1984 = vpack.c.b16 %v1968, %v1968
  %v1985 = vpack.c.b16 %v1969, %v1969
  %v1986 = vpack.c.b16 %v1970, %v1970
  %v1987 = vpack.c.b16 %v1971, %v1971
  %v1988 = vpack.c.b16 %v1972, %v1972
  %v1989 = vpack.c.b16 %v1973, %v1973
  %v1990 = vpack.c.b16 %v1974, %v1974
  %v1991 = vpack.c.b16 %v1975, %v1975
  %v1992 = vpack.c.b16 %v1976, %v1976
  %v1993 = vpack.c.b16 %v1977, %v1977
  %v1994 = vpack.c.b16 %v1978, %v1978
  %1995 = vrot.lane.b32.xlu0 %v1979, 64
  %v1996 = vpop.permute.xlu0 %1995
  %1997 = vrot.lane.b32.xlu0 %v1980, 64
  %v1998 = vpop.permute.xlu0 %1997
  %1999 = vrot.lane.b32.xlu0 %v1981, 64
  %v2000 = vpop.permute.xlu0 %1999
  %2001 = vrot.lane.b32.xlu0 %v1982, 64
  %v2002 = vpop.permute.xlu0 %2001
  %2003 = vrot.lane.b32.xlu0 %v1983, 64
  %v2004 = vpop.permute.xlu0 %2003
  %2005 = vrot.lane.b32.xlu0 %v1984, 64
  %v2006 = vpop.permute.xlu0 %2005
  %2007 = vrot.lane.b32.xlu0 %v1985, 64
  %v2008 = vpop.permute.xlu0 %2007
  %2009 = vrot.lane.b32.xlu0 %v1986, 64
  %v2010 = vpop.permute.xlu0 %2009
  %2011 = vrot.lane.b32.xlu0 %v1987, 64
  %v2012 = vpop.permute.xlu0 %2011
  %2013 = vrot.lane.b32.xlu0 %v1988, 64
  %v2014 = vpop.permute.xlu0 %2013
  %2015 = vrot.lane.b32.xlu0 %v1989, 64
  %v2016 = vpop.permute.xlu0 %2015
  %2017 = vrot.lane.b32.xlu0 %v1990, 64
  %v2018 = vpop.permute.xlu0 %2017
  %2019 = vrot.lane.b32.xlu0 %v1991, 64
  %v2020 = vpop.permute.xlu0 %2019
  %2021 = vrot.lane.b32.xlu0 %v1992, 64
  %v2022 = vpop.permute.xlu0 %2021
  %2023 = vrot.lane.b32.xlu0 %v1993, 64
  %v2024 = vpop.permute.xlu0 %2023
  %2025 = vrot.lane.b32.xlu0 %v1994, 64
  %v2026 = vpop.permute.xlu0 %2025
  %v2043 = vunpack.c.l.b16 %v1259
  %v2044 = vunpack.c.l.b16 %v1260
  %v2045 = vunpack.c.l.b16 %v1261
  %v2046 = vunpack.c.l.b16 %v1262
  %v2047 = vunpack.c.l.b16 %v1263
  %v2048 = vunpack.c.l.b16 %v1264
  %v2049 = vunpack.c.l.b16 %v1265
  %v2050 = vunpack.c.l.b16 %v1266
  %v2051 = vunpack.c.l.b16 %v1267
  %v2052 = vunpack.c.l.b16 %v1268
  %v2053 = vunpack.c.l.b16 %v1269
  %v2054 = vunpack.c.l.b16 %v1270
  %v2055 = vunpack.c.l.b16 %v1271
  %v2056 = vunpack.c.l.b16 %v1272
  %v2057 = vunpack.c.l.b16 %v1273
  %v2058 = vunpack.c.l.b16 %v1274
  %v2059 = vpack.c.b16 %v2043, %v1963
  %v2060 = vpack.c.b16 %v2044, %v1964
  %v2061 = vpack.c.b16 %v2045, %v1965
  %v2062 = vpack.c.b16 %v2046, %v1966
  %v2063 = vpack.c.b16 %v2047, %v1967
  %v2064 = vpack.c.b16 %v2048, %v1968
  %v2065 = vpack.c.b16 %v2049, %v1969
  %v2066 = vpack.c.b16 %v2050, %v1970
  %v2067 = vpack.c.b16 %v2051, %v1971
  %v2068 = vpack.c.b16 %v2052, %v1972
  %v2069 = vpack.c.b16 %v2053, %v1973
  %v2070 = vpack.c.b16 %v2054, %v1974
  %v2071 = vpack.c.b16 %v2055, %v1975
  %v2072 = vpack.c.b16 %v2056, %v1976
  %v2073 = vpack.c.b16 %v2057, %v1977
  %v2074 = vpack.c.b16 %v2058, %v1978
  %v2076 = vshrl.u32 %v2059, 16
  %v2078 = vshll.u32 %v2059, 16
  %v2080 = vrot.slane %v2078, 1
  %v2081 = vor.u32 %v2076, %v2080
  %v2083 = vshrl.u32 %v2060, 16
  %v2085 = vshll.u32 %v2060, 16
  %v2087 = vrot.slane %v2085, 1
  %v2088 = vor.u32 %v2083, %v2087
  %v2090 = vshrl.u32 %v2061, 16
  %v2092 = vshll.u32 %v2061, 16
  %v2094 = vrot.slane %v2092, 1
  %v2095 = vor.u32 %v2090, %v2094
  %v2097 = vshrl.u32 %v2062, 16
  %v2099 = vshll.u32 %v2062, 16
  %v2101 = vrot.slane %v2099, 1
  %v2102 = vor.u32 %v2097, %v2101
  %v2104 = vshrl.u32 %v2063, 16
  %v2106 = vshll.u32 %v2063, 16
  %v2108 = vrot.slane %v2106, 1
  %v2109 = vor.u32 %v2104, %v2108
  %v2111 = vshrl.u32 %v2064, 16
  %v2113 = vshll.u32 %v2064, 16
  %v2115 = vrot.slane %v2113, 1
  %v2116 = vor.u32 %v2111, %v2115
  %v2118 = vshrl.u32 %v2065, 16
  %v2120 = vshll.u32 %v2065, 16
  %v2122 = vrot.slane %v2120, 1
  %v2123 = vor.u32 %v2118, %v2122
  %v2125 = vshrl.u32 %v2066, 16
  %v2127 = vshll.u32 %v2066, 16
  %v2129 = vrot.slane %v2127, 1
  %v2130 = vor.u32 %v2125, %v2129
  %v2132 = vshrl.u32 %v2067, 16
  %v2134 = vshll.u32 %v2067, 16
  %v2136 = vrot.slane %v2134, 1
  %v2137 = vor.u32 %v2132, %v2136
  %v2139 = vshrl.u32 %v2068, 16
  %v2141 = vshll.u32 %v2068, 16
  %v2143 = vrot.slane %v2141, 1
  %v2144 = vor.u32 %v2139, %v2143
  %v2146 = vshrl.u32 %v2069, 16
  %v2148 = vshll.u32 %v2069, 16
  %v2150 = vrot.slane %v2148, 1
  %v2151 = vor.u32 %v2146, %v2150
  %v2153 = vshrl.u32 %v2070, 16
  %v2155 = vshll.u32 %v2070, 16
  %v2157 = vrot.slane %v2155, 1
  %v2158 = vor.u32 %v2153, %v2157
  %v2160 = vshrl.u32 %v2071, 16
  %v2162 = vshll.u32 %v2071, 16
  %v2164 = vrot.slane %v2162, 1
  %v2165 = vor.u32 %v2160, %v2164
  %v2167 = vshrl.u32 %v2072, 16
  %v2169 = vshll.u32 %v2072, 16
  %v2171 = vrot.slane %v2169, 1
  %v2172 = vor.u32 %v2167, %v2171
  %v2174 = vshrl.u32 %v2073, 16
  %v2176 = vshll.u32 %v2073, 16
  %v2178 = vrot.slane %v2176, 1
  %v2179 = vor.u32 %v2174, %v2178
  %v2181 = vshrl.u32 %v2074, 16
  %v2183 = vshll.u32 %v2074, 16
  %v2185 = vrot.slane %v2183, 1
  %v2186 = vor.u32 %v2181, %v2185
  %2187 = vrot.lane.b32.xlu0 %v2081, 96
  %v2188 = vpop.permute.xlu0 %2187
  %2189 = vrot.lane.b32.xlu0 %v2088, 96
  %v2190 = vpop.permute.xlu0 %2189
  %2191 = vrot.lane.b32.xlu0 %v2095, 96
  %v2192 = vpop.permute.xlu0 %2191
  %2193 = vrot.lane.b32.xlu0 %v2102, 96
  %v2194 = vpop.permute.xlu0 %2193
  %2195 = vrot.lane.b32.xlu0 %v2109, 96
  %v2196 = vpop.permute.xlu0 %2195
  %2197 = vrot.lane.b32.xlu0 %v2116, 96
  %v2198 = vpop.permute.xlu0 %2197
  %2199 = vrot.lane.b32.xlu0 %v2123, 96
  %v2200 = vpop.permute.xlu0 %2199
  %2201 = vrot.lane.b32.xlu0 %v2130, 96
  %v2202 = vpop.permute.xlu0 %2201
  %2203 = vrot.lane.b32.xlu0 %v2137, 96
  %v2204 = vpop.permute.xlu0 %2203
  %2205 = vrot.lane.b32.xlu0 %v2144, 96
  %v2206 = vpop.permute.xlu0 %2205
  %2207 = vrot.lane.b32.xlu0 %v2151, 96
  %v2208 = vpop.permute.xlu0 %2207
  %2209 = vrot.lane.b32.xlu0 %v2158, 96
  %v2210 = vpop.permute.xlu0 %2209
  %2211 = vrot.lane.b32.xlu0 %v2165, 96
  %v2212 = vpop.permute.xlu0 %2211
  %2213 = vrot.lane.b32.xlu0 %v2172, 96
  %v2214 = vpop.permute.xlu0 %2213
  %2215 = vrot.lane.b32.xlu0 %v2179, 96
  %v2216 = vpop.permute.xlu0 %2215
  %2217 = vrot.lane.b32.xlu0 %v2186, 96
  %v2218 = vpop.permute.xlu0 %2217
  %v2235 = vunpack.c.l.b16 %v1275
  %v2236 = vunpack.c.l.b16 %v1276
  %v2237 = vunpack.c.l.b16 %v1277
  %v2238 = vunpack.c.l.b16 %v1278
  %v2239 = vunpack.c.l.b16 %v1279
  %v2240 = vunpack.c.l.b16 %v1280
  %v2241 = vunpack.c.l.b16 %v1281
  %v2242 = vunpack.c.l.b16 %v1282
  %v2243 = vunpack.c.l.b16 %v1283
  %v2244 = vunpack.c.l.b16 %v1284
  %v2245 = vunpack.c.l.b16 %v1285
  %v2246 = vunpack.c.l.b16 %v1286
  %v2247 = vunpack.c.l.b16 %v1287
  %v2248 = vunpack.c.l.b16 %v1288
  %v2249 = vunpack.c.l.b16 %v1289
  %v2250 = vunpack.c.l.b16 %v1290
  %v2251 = vpack.c.b16 %v2043, %v2235
  %v2252 = vpack.c.b16 %v2044, %v2236
  %v2253 = vpack.c.b16 %v2045, %v2237
  %v2254 = vpack.c.b16 %v2046, %v2238
  %v2255 = vpack.c.b16 %v2047, %v2239
  %v2256 = vpack.c.b16 %v2048, %v2240
  %v2257 = vpack.c.b16 %v2049, %v2241
  %v2258 = vpack.c.b16 %v2050, %v2242
  %v2259 = vpack.c.b16 %v2051, %v2243
  %v2260 = vpack.c.b16 %v2052, %v2244
  %v2261 = vpack.c.b16 %v2053, %v2245
  %v2262 = vpack.c.b16 %v2054, %v2246
  %v2263 = vpack.c.b16 %v2055, %v2247
  %v2264 = vpack.c.b16 %v2056, %v2248
  %v2265 = vpack.c.b16 %v2057, %v2249
  %v2266 = vpack.c.b16 %v2058, %v2250
  %v2267 = vrot.slane %v2251, 1
  %v2268 = vrot.slane %v2252, 1
  %v2269 = vrot.slane %v2253, 1
  %v2270 = vrot.slane %v2254, 1
  %v2271 = vrot.slane %v2255, 1
  %v2272 = vrot.slane %v2256, 1
  %v2273 = vrot.slane %v2257, 1
  %v2274 = vrot.slane %v2258, 1
  %v2275 = vrot.slane %v2259, 1
  %v2276 = vrot.slane %v2260, 1
  %v2277 = vrot.slane %v2261, 1
  %v2278 = vrot.slane %v2262, 1
  %v2279 = vrot.slane %v2263, 1
  %v2280 = vrot.slane %v2264, 1
  %v2281 = vrot.slane %v2265, 1
  %v2282 = vrot.slane %v2266, 1
  %v2285 = vsel %vm549, %v1146, %v1484
  %v2288 = vsel %vm549, %v1147, %v1486
  %v2291 = vsel %vm549, %v1148, %v1488
  %v2294 = vsel %vm549, %v1149, %v1490
  %v2297 = vsel %vm549, %v1150, %v1492
  %v2300 = vsel %vm549, %v1151, %v1494
  %v2303 = vsel %vm549, %v1152, %v1496
  %v2306 = vsel %vm549, %v1153, %v1498
  %v2309 = vsel %vm549, %v1154, %v1500
  %v2312 = vsel %vm549, %v1155, %v1502
  %v2315 = vsel %vm549, %v1156, %v1504
  %v2318 = vsel %vm549, %v1157, %v1506
  %v2321 = vsel %vm549, %v1158, %v1508
  %v2324 = vsel %vm549, %v1159, %v1510
  %v2327 = vsel %vm549, %v1160, %v1512
  %v2330 = vsel %vm549, %v1161, %v1514
  %vm2331 = vcmask 523264
  %v2333 = vsel %vm2331, %v2285, %v1580
  %v2335 = vsel %vm2331, %v2288, %v1582
  %v2337 = vsel %vm2331, %v2291, %v1584
  %v2339 = vsel %vm2331, %v2294, %v1586
  %v2341 = vsel %vm2331, %v2297, %v1588
  %v2343 = vsel %vm2331, %v2300, %v1590
  %v2345 = vsel %vm2331, %v2303, %v1592
  %v2347 = vsel %vm2331, %v2306, %v1594
  %v2349 = vsel %vm2331, %v2309, %v1596
  %v2351 = vsel %vm2331, %v2312, %v1598
  %v2353 = vsel %vm2331, %v2315, %v1600
  %v2355 = vsel %vm2331, %v2318, %v1602
  %v2357 = vsel %vm2331, %v2321, %v1604
  %v2359 = vsel %vm2331, %v2324, %v1606
  %v2361 = vsel %vm2331, %v2327, %v1608
  %v2363 = vsel %vm2331, %v2330, %v1610
  %vm2364 = vcmask 785408
  %v2366 = vsel %vm2364, %v2333, %v1660
  %v2368 = vsel %vm2364, %v2335, %v1662
  %v2370 = vsel %vm2364, %v2337, %v1664
  %v2372 = vsel %vm2364, %v2339, %v1666
  %v2374 = vsel %vm2364, %v2341, %v1668
  %v2376 = vsel %vm2364, %v2343, %v1670
  %v2378 = vsel %vm2364, %v2345, %v1672
  %v2380 = vsel %vm2364, %v2347, %v1674
  %v2382 = vsel %vm2364, %v2349, %v1676
  %v2384 = vsel %vm2364, %v2351, %v1678
  %v2386 = vsel %vm2364, %v2353, %v1680
  %v2388 = vsel %vm2364, %v2355, %v1682
  %v2390 = vsel %vm2364, %v2357, %v1684
  %v2392 = vsel %vm2364, %v2359, %v1686
  %v2394 = vsel %vm2364, %v2361, %v1688
  %v2396 = vsel %vm2364, %v2363, %v1690
  %v2399 = vsel %vm549, %v1745, %v1916
  %v2402 = vsel %vm549, %v1752, %v1918
  %v2405 = vsel %vm549, %v1759, %v1920
  %v2408 = vsel %vm549, %v1766, %v1922
  %v2411 = vsel %vm549, %v1773, %v1924
  %v2414 = vsel %vm549, %v1780, %v1926
  %v2417 = vsel %vm549, %v1787, %v1928
  %v2420 = vsel %vm549, %v1794, %v1930
  %v2423 = vsel %vm549, %v1801, %v1932
  %v2426 = vsel %vm549, %v1808, %v1934
  %v2429 = vsel %vm549, %v1815, %v1936
  %v2432 = vsel %vm549, %v1822, %v1938
  %v2435 = vsel %vm549, %v1829, %v1940
  %v2438 = vsel %vm549, %v1836, %v1942
  %v2441 = vsel %vm549, %v1843, %v1944
  %v2444 = vsel %vm549, %v1850, %v1946
  %v2446 = vsel %vm2331, %v2399, %v1996
  %v2448 = vsel %vm2331, %v2402, %v1998
  %v2450 = vsel %vm2331, %v2405, %v2000
  %v2452 = vsel %vm2331, %v2408, %v2002
  %v2454 = vsel %vm2331, %v2411, %v2004
  %v2456 = vsel %vm2331, %v2414, %v2006
  %v2458 = vsel %vm2331, %v2417, %v2008
  %v2460 = vsel %vm2331, %v2420, %v2010
  %v2462 = vsel %vm2331, %v2423, %v2012
  %v2464 = vsel %vm2331, %v2426, %v2014
  %v2466 = vsel %vm2331, %v2429, %v2016
  %v2468 = vsel %vm2331, %v2432, %v2018
  %v2470 = vsel %vm2331, %v2435, %v2020
  %v2472 = vsel %vm2331, %v2438, %v2022
  %v2474 = vsel %vm2331, %v2441, %v2024
  %v2476 = vsel %vm2331, %v2444, %v2026
  %v2478 = vsel %vm2364, %v2446, %v2188
  %v2480 = vsel %vm2364, %v2448, %v2190
  %v2482 = vsel %vm2364, %v2450, %v2192
  %v2484 = vsel %vm2364, %v2452, %v2194
  %v2486 = vsel %vm2364, %v2454, %v2196
  %v2488 = vsel %vm2364, %v2456, %v2198
  %v2490 = vsel %vm2364, %v2458, %v2200
  %v2492 = vsel %vm2364, %v2460, %v2202
  %v2494 = vsel %vm2364, %v2462, %v2204
  %v2496 = vsel %vm2364, %v2464, %v2206
  %v2498 = vsel %vm2364, %v2466, %v2208
  %v2500 = vsel %vm2364, %v2468, %v2210
  %v2502 = vsel %vm2364, %v2470, %v2212
  %v2504 = vsel %vm2364, %v2472, %v2214
  %v2506 = vsel %vm2364, %v2474, %v2216
  %v2508 = vsel %vm2364, %v2476, %v2218
  %v2541 = vunpack.c.l.b16 %v2366
  %v2542 = vunpack.c.l.b16 %v2478
  %v2543 = vunpack.c.l.b16 %v2267
  %v2544 = vunpack.c.l.b16 %v2368
  %v2545 = vunpack.c.l.b16 %v2480
  %v2546 = vunpack.c.l.b16 %v2268
  %v2547 = vunpack.c.l.b16 %v2370
  %v2548 = vunpack.c.l.b16 %v2482
  %v2549 = vunpack.c.l.b16 %v2269
  %v2550 = vunpack.c.l.b16 %v2372
  %v2551 = vunpack.c.l.b16 %v2484
  %v2552 = vunpack.c.l.b16 %v2270
  %v2553 = vunpack.c.l.b16 %v2374
  %v2554 = vunpack.c.l.b16 %v2486
  %v2555 = vunpack.c.l.b16 %v2271
  %v2556 = vunpack.c.l.b16 %v2376
  %v2557 = vunpack.c.l.b16 %v2488
  %v2558 = vunpack.c.l.b16 %v2272
  %v2559 = vunpack.c.l.b16 %v2378
  %v2560 = vunpack.c.l.b16 %v2490
  %v2561 = vunpack.c.l.b16 %v2273
  %v2562 = vunpack.c.l.b16 %v2380
  %v2563 = vunpack.c.l.b16 %v2492
  %v2564 = vunpack.c.l.b16 %v2274
  %v2565 = vunpack.c.l.b16 %v2382
  %v2566 = vunpack.c.l.b16 %v2494
  %v2567 = vunpack.c.l.b16 %v2275
  %v2568 = vunpack.c.l.b16 %v2384
  %v2569 = vunpack.c.l.b16 %v2496
  %v2570 = vunpack.c.l.b16 %v2276
  %v2571 = vunpack.c.l.b16 %v2386
  %v2572 = vunpack.c.l.b16 %v2498
  %v2573 = vunpack.c.l.b16 %v2277
  %v2574 = vunpack.c.l.b16 %v2388
  %v2575 = vunpack.c.l.b16 %v2500
  %v2576 = vunpack.c.l.b16 %v2278
  %v2577 = vunpack.c.l.b16 %v2390
  %v2578 = vunpack.c.l.b16 %v2502
  %v2579 = vunpack.c.l.b16 %v2279
  %v2580 = vunpack.c.l.b16 %v2392
  %v2581 = vunpack.c.l.b16 %v2504
  %v2582 = vunpack.c.l.b16 %v2280
  %v2583 = vunpack.c.l.b16 %v2394
  %v2584 = vunpack.c.l.b16 %v2506
  %v2585 = vunpack.c.l.b16 %v2281
  %v2586 = vunpack.c.l.b16 %v2396
  %v2587 = vunpack.c.l.b16 %v2508
  %v2588 = vunpack.c.l.b16 %v2282
  %v2589 = vld [vmem:[%s3] sm:$0xf]
  %v2590 = vld [vmem:[%s3 + $0x4] sm:$0xf]
  %v2591 = vld [vmem:[%s3 + $0x8] sm:$0xf]
  %v2592 = vld [vmem:[%s3 + $0xc] sm:$0xf]
  %v2593 = vld [vmem:[%s3 + $0x10] sm:$0xf]
  %v2594 = vld [vmem:[%s3 + $0x14] sm:$0xf]
  %v2595 = vld [vmem:[%s3 + $0x18] sm:$0xf]
  %v2596 = vld [vmem:[%s3 + $0x1c] sm:$0xf]
  %v2597 = vld [vmem:[%s3 + $0x20] sm:$0xf]
  %v2598 = vld [vmem:[%s3 + $0x24] sm:$0xf]
  %v2599 = vld [vmem:[%s3 + $0x28] sm:$0xf]
  %v2600 = vld [vmem:[%s3 + $0x2c] sm:$0xf]
  %v2601 = vld [vmem:[%s3 + $0x30] sm:$0xf]
  %v2602 = vld [vmem:[%s3 + $0x34] sm:$0xf]
  %v2603 = vld [vmem:[%s3 + $0x38] sm:$0xf]
  %v2604 = vld [vmem:[%s3 + $0x3c] sm:$0xf]
  %v2605 = vld [vmem:[%s3 + $0x40] sm:$0xf]
  %v2606 = vld [vmem:[%s3 + $0x44] sm:$0xf]
  %v2607 = vld [vmem:[%s3 + $0x48] sm:$0xf]
  %v2608 = vld [vmem:[%s3 + $0x4c] sm:$0xf]
  %v2609 = vld [vmem:[%s3 + $0x50] sm:$0xf]
  %v2610 = vld [vmem:[%s3 + $0x54] sm:$0xf]
  %v2611 = vld [vmem:[%s3 + $0x58] sm:$0xf]
  %v2612 = vld [vmem:[%s3 + $0x5c] sm:$0xf]
  %v2613 = vld [vmem:[%s3 + $0x60] sm:$0xf]
  %v2614 = vld [vmem:[%s3 + $0x64] sm:$0xf]
  %v2615 = vld [vmem:[%s3 + $0x68] sm:$0xf]
  %v2616 = vld [vmem:[%s3 + $0x6c] sm:$0xf]
  %v2617 = vld [vmem:[%s3 + $0x70] sm:$0xf]
  %v2618 = vld [vmem:[%s3 + $0x74] sm:$0xf]
  %v2619 = vld [vmem:[%s3 + $0x78] sm:$0xf]
  %v2620 = vld [vmem:[%s3 + $0x7c] sm:$0xf]
  %v2621 = vld [vmem:[%s3 + $0x80] sm:$0xf]
  %v2622 = vld [vmem:[%s3 + $0x84] sm:$0xf]
  %v2623 = vld [vmem:[%s3 + $0x88] sm:$0xf]
  %v2624 = vld [vmem:[%s3 + $0x8c] sm:$0xf]
  %v2625 = vpack.c.b16 %v2544, %v2541
  %v2626 = vpack.c.b16 %v2545, %v2542
  %v2627 = vpack.c.b16 %v2546, %v2543
  %v2628 = vpack.c.b16 %v2550, %v2547
  %v2629 = vpack.c.b16 %v2551, %v2548
  %v2630 = vpack.c.b16 %v2552, %v2549
  %v2631 = vpack.c.b16 %v2556, %v2553
  %v2632 = vpack.c.b16 %v2557, %v2554
  %v2633 = vpack.c.b16 %v2558, %v2555
  %v2634 = vpack.c.b16 %v2562, %v2559
  %v2635 = vpack.c.b16 %v2563, %v2560
  %v2636 = vpack.c.b16 %v2564, %v2561
  %v2637 = vpack.c.b16 %v2568, %v2565
  %v2638 = vpack.c.b16 %v2569, %v2566
  %v2639 = vpack.c.b16 %v2570, %v2567
  %v2640 = vpack.c.b16 %v2574, %v2571
  %v2641 = vpack.c.b16 %v2575, %v2572
  %v2642 = vpack.c.b16 %v2576, %v2573
  %v2643 = vpack.c.b16 %v2580, %v2577
  %v2644 = vpack.c.b16 %v2581, %v2578
  %v2645 = vpack.c.b16 %v2582, %v2579
  %v2646 = vpack.c.b16 %v2586, %v2583
  %v2647 = vpack.c.b16 %v2587, %v2584
  %v2648 = vpack.c.b16 %v2588, %v2585
  %v2701 = vunpack.c.l.b16 %v2589
  %v2702 = vunpack.c.l.b16 %v2590
  %v2703 = vunpack.c.l.b16 %v2591
  %v2704 = vunpack.c.l.b16 %v2592
  %v2705 = vunpack.c.l.b16 %v2593
  %v2706 = vunpack.c.l.b16 %v2594
  %v2707 = vunpack.c.l.b16 %v2595
  %v2708 = vunpack.c.l.b16 %v2596
  %v2709 = vunpack.c.l.b16 %v2597
  %v2710 = vunpack.c.l.b16 %v2598
  %v2711 = vunpack.c.l.b16 %v2599
  %v2712 = vunpack.c.l.b16 %v2600
  %v2713 = vunpack.c.l.b16 %v2601
  %v2714 = vunpack.c.l.b16 %v2602
  %v2715 = vunpack.c.l.b16 %v2603
  %v2716 = vunpack.c.l.b16 %v2604
  %v2717 = vunpack.c.l.b16 %v2605
  %v2718 = vunpack.c.l.b16 %v2606
  %v2719 = vunpack.c.l.b16 %v2607
  %v2720 = vunpack.c.l.b16 %v2608
  %v2721 = vunpack.c.l.b16 %v2609
  %v2722 = vunpack.c.l.b16 %v2610
  %v2723 = vunpack.c.l.b16 %v2611
  %v2724 = vunpack.c.l.b16 %v2612
  %v2725 = vunpack.c.l.b16 %v2613
  %v2726 = vunpack.c.l.b16 %v2614
  %v2727 = vunpack.c.l.b16 %v2615
  %v2728 = vunpack.c.l.b16 %v2616
  %v2729 = vunpack.c.l.b16 %v2617
  %v2730 = vunpack.c.l.b16 %v2618
  %v2731 = vunpack.c.l.b16 %v2619
  %v2732 = vunpack.c.l.b16 %v2620
  %v2733 = vunpack.c.l.b16 %v2621
  %v2734 = vunpack.c.l.b16 %v2622
  %v2735 = vunpack.c.l.b16 %v2623
  %v2736 = vunpack.c.l.b16 %v2624
  %v2737 = vpack.c.b16 %v2702, %v2701
  %v2738 = vpack.c.b16 %v2704, %v2703
  %v2739 = vpack.c.b16 %v2706, %v2705
  %v2740 = vpack.c.b16 %v2708, %v2707
  %v2741 = vpack.c.b16 %v2710, %v2709
  %v2742 = vpack.c.b16 %v2712, %v2711
  %v2743 = vpack.c.b16 %v2714, %v2713
  %v2744 = vpack.c.b16 %v2716, %v2715
  %v2745 = vpack.c.b16 %v2718, %v2717
  %v2746 = vpack.c.b16 %v2720, %v2719
  %v2747 = vpack.c.b16 %v2722, %v2721
  %v2748 = vpack.c.b16 %v2724, %v2723
  %v2749 = vpack.c.b16 %v2726, %v2725
  %v2750 = vpack.c.b16 %v2728, %v2727
  %v2751 = vpack.c.b16 %v2730, %v2729
  %v2752 = vpack.c.b16 %v2732, %v2731
  %v2753 = vpack.c.b16 %v2734, %v2733
  %v2754 = vpack.c.b16 %v2736, %v2735
  %v2774 = vsel %vm549, %v2627, 0
  %v2777 = vsel %vm549, %v2630, 0
  %v2780 = vsel %vm549, %v2633, 0
  %v2783 = vsel %vm549, %v2636, 0
  %v2786 = vsel %vm549, %v2639, 0
  %v2789 = vsel %vm549, %v2642, 0
  %v2792 = vsel %vm549, %v2645, 0
  %v2795 = vsel %vm549, %v2648, 0
  %2797 = vmatpush.bf16.msra.mxu0 %v2744
  %2798 = vmatpush.bf16.msra.mxu0 %v2743
  %2799 = vmatpush.bf16.msra.mxu0 %v2742
  %2800 = vmatpush.bf16.msra.mxu0 %v2741
  %2801 = vmatpush.bf16.msra.mxu0 %v2740
  %2802 = vmatpush.bf16.msra.mxu0 %v2739
  %2803 = vmatpush.bf16.msra.mxu0 %v2738
  %2804 = vmatpush.bf16.msra.mxu0 %v2737
  %2805 = vmatmul.bf16.gmra.mxu0 %v2625
  %v2806 = vpop.f32.mrf.mxu0
  %v2807 = vadd.f32 0.0, %v2806
  %v2808 = vpop.f32.mrf.mxu0
  %v2809 = vadd.f32 0.0, %v2808
  %2810 = vmatmul.bf16.gmra.mxu0 %v2628
  %v2811 = vpop.f32.mrf.mxu0
  %v2812 = vadd.f32 0.0, %v2811
  %v2813 = vpop.f32.mrf.mxu0
  %v2814 = vadd.f32 0.0, %v2813
  %2815 = vmatmul.bf16.gmra.mxu0 %v2631
  %v2816 = vpop.f32.mrf.mxu0
  %v2817 = vadd.f32 0.0, %v2816
  %v2818 = vpop.f32.mrf.mxu0
  %v2819 = vadd.f32 0.0, %v2818
  %2820 = vmatmul.bf16.gmra.mxu0 %v2634
  %v2821 = vpop.f32.mrf.mxu0
  %v2822 = vadd.f32 0.0, %v2821
  %v2823 = vpop.f32.mrf.mxu0
  %v2824 = vadd.f32 0.0, %v2823
  %2825 = vmatmul.bf16.gmra.mxu0 %v2637
  %v2826 = vpop.f32.mrf.mxu0
  %v2827 = vadd.f32 0.0, %v2826
  %v2828 = vpop.f32.mrf.mxu0
  %v2829 = vadd.f32 0.0, %v2828
  %2830 = vmatmul.bf16.gmra.mxu0 %v2640
  %v2831 = vpop.f32.mrf.mxu0
  %v2832 = vadd.f32 0.0, %v2831
  %v2833 = vpop.f32.mrf.mxu0
  %v2834 = vadd.f32 0.0, %v2833
  %2835 = vmatmul.bf16.gmra.mxu0 %v2643
  %v2836 = vpop.f32.mrf.mxu0
  %v2837 = vadd.f32 0.0, %v2836
  %v2838 = vpop.f32.mrf.mxu0
  %v2839 = vadd.f32 0.0, %v2838
  %2840 = vmatmul.bf16.gmra.mxu0 %v2646
  %v2841 = vpop.f32.mrf.mxu0
  %v2842 = vadd.f32 0.0, %v2841
  %v2843 = vpop.f32.mrf.mxu0
  %v2844 = vadd.f32 0.0, %v2843
  %2845 = vdwg.mxu0
  %2846 = vmatpush.bf16.msra.mxu0 %v2752
  %2847 = vmatpush.bf16.msra.mxu0 %v2751
  %2848 = vmatpush.bf16.msra.mxu0 %v2750
  %2849 = vmatpush.bf16.msra.mxu0 %v2749
  %2850 = vmatpush.bf16.msra.mxu0 %v2748
  %2851 = vmatpush.bf16.msra.mxu0 %v2747
  %2852 = vmatpush.bf16.msra.mxu0 %v2746
  %2853 = vmatpush.bf16.msra.mxu0 %v2745
  %2854 = vmatmul.bf16.gmra.mxu0 %v2626
  %v2855 = vpop.f32.mrf.mxu0
  %v2856 = vadd.f32 %v2807, %v2855
  %v2857 = vpop.f32.mrf.mxu0
  %v2858 = vadd.f32 %v2809, %v2857
  %2859 = vmatmul.bf16.gmra.mxu0 %v2629
  %v2860 = vpop.f32.mrf.mxu0
  %v2861 = vadd.f32 %v2812, %v2860
  %v2862 = vpop.f32.mrf.mxu0
  %v2863 = vadd.f32 %v2814, %v2862
  %2864 = vmatmul.bf16.gmra.mxu0 %v2632
  %v2865 = vpop.f32.mrf.mxu0
  %v2866 = vadd.f32 %v2817, %v2865
  %v2867 = vpop.f32.mrf.mxu0
  %v2868 = vadd.f32 %v2819, %v2867
  %2869 = vmatmul.bf16.gmra.mxu0 %v2635
  %v2870 = vpop.f32.mrf.mxu0
  %v2871 = vadd.f32 %v2822, %v2870
  %v2872 = vpop.f32.mrf.mxu0
  %v2873 = vadd.f32 %v2824, %v2872
  %2874 = vmatmul.bf16.gmra.mxu0 %v2638
  %v2875 = vpop.f32.mrf.mxu0
  %v2876 = vadd.f32 %v2827, %v2875
  %v2877 = vpop.f32.mrf.mxu0
  %v2878 = vadd.f32 %v2829, %v2877
  %2879 = vmatmul.bf16.gmra.mxu0 %v2641
  %v2880 = vpop.f32.mrf.mxu0
  %v2881 = vadd.f32 %v2832, %v2880
  %v2882 = vpop.f32.mrf.mxu0
  %v2883 = vadd.f32 %v2834, %v2882
  %2884 = vmatmul.bf16.gmra.mxu0 %v2644
  %v2885 = vpop.f32.mrf.mxu0
  %v2886 = vadd.f32 %v2837, %v2885
  %v2887 = vpop.f32.mrf.mxu0
  %v2888 = vadd.f32 %v2839, %v2887
  %2889 = vmatmul.bf16.gmra.mxu0 %v2647
  %v2890 = vpop.f32.mrf.mxu0
  %v2891 = vadd.f32 %v2842, %v2890
  %v2892 = vpop.f32.mrf.mxu0
  %v2893 = vadd.f32 %v2844, %v2892
  %2894 = vdwg.mxu0
  %2895 = vmatpush.bf16.msra.mxu0 0
  %2896 = vmatpush.bf16.msra.mxu0 0
  %2897 = vmatpush.bf16.msra.mxu0 0
  %2898 = vmatpush.bf16.msra.mxu0 0
  %2899 = vmatpush.bf16.msra.mxu0 0
  %2900 = vmatpush.bf16.msra.mxu0 0
  %2901 = vmatpush.bf16.msra.mxu0 %v2754
  %2902 = vmatpush.bf16.msra.mxu0 %v2753
  %2903 = vmatmul.bf16.gmra.mxu0 %v2774
  %v2904 = vpop.f32.mrf.mxu0
  %v2905 = vadd.f32 %v2856, %v2904
  %v2906 = vpop.f32.mrf.mxu0
  %v2907 = vadd.f32 %v2858, %v2906
  %2908 = vmatmul.bf16.gmra.mxu0 %v2777
  %v2909 = vpop.f32.mrf.mxu0
  %v2910 = vadd.f32 %v2861, %v2909
  %v2911 = vpop.f32.mrf.mxu0
  %v2912 = vadd.f32 %v2863, %v2911
  %2913 = vmatmul.bf16.gmra.mxu0 %v2780
  %v2914 = vpop.f32.mrf.mxu0
  %v2915 = vadd.f32 %v2866, %v2914
  %v2916 = vpop.f32.mrf.mxu0
  %v2917 = vadd.f32 %v2868, %v2916
  %2918 = vmatmul.bf16.gmra.mxu0 %v2783
  %v2919 = vpop.f32.mrf.mxu0
  %v2920 = vadd.f32 %v2871, %v2919
  %v2921 = vpop.f32.mrf.mxu0
  %v2922 = vadd.f32 %v2873, %v2921
  %2923 = vmatmul.bf16.gmra.mxu0 %v2786
  %v2924 = vpop.f32.mrf.mxu0
  %v2925 = vadd.f32 %v2876, %v2924
  %v2926 = vpop.f32.mrf.mxu0
  %v2927 = vadd.f32 %v2878, %v2926
  %2928 = vmatmul.bf16.gmra.mxu0 %v2789
  %v2929 = vpop.f32.mrf.mxu0
  %v2930 = vadd.f32 %v2881, %v2929
  %v2931 = vpop.f32.mrf.mxu0
  %v2932 = vadd.f32 %v2883, %v2931
  %2933 = vmatmul.bf16.gmra.mxu0 %v2792
  %v2934 = vpop.f32.mrf.mxu0
  %v2935 = vadd.f32 %v2886, %v2934
  %v2936 = vpop.f32.mrf.mxu0
  %v2937 = vadd.f32 %v2888, %v2936
  %2938 = vmatmul.bf16.gmra.mxu0 %v2795
  %v2939 = vpop.f32.mrf.mxu0
  %v2940 = vadd.f32 %v2891, %v2939
  %v2941 = vpop.f32.mrf.mxu0
  %v2942 = vadd.f32 %v2893, %v2941
  %2943 = vdwg.mxu0
  %v2944 = vsel %vm2331, %v2905, -inf
  %v2945 = vsel %vm2331, %v2907, -inf
  %v2946 = vmax.f32 %v2944, %v2945
  %v2947 = vsel %vm2331, %v2910, -inf
  %v2948 = vsel %vm2331, %v2912, -inf
  %v2949 = vmax.f32 %v2947, %v2948
  %v2950 = vsel %vm2331, %v2915, -inf
  %v2951 = vsel %vm2331, %v2917, -inf
  %v2952 = vmax.f32 %v2950, %v2951
  %v2953 = vsel %vm2331, %v2920, -inf
  %v2954 = vsel %vm2331, %v2922, -inf
  %v2955 = vmax.f32 %v2953, %v2954
  %v2956 = vsel %vm2331, %v2925, -inf
  %v2957 = vsel %vm2331, %v2927, -inf
  %v2958 = vmax.f32 %v2956, %v2957
  %v2959 = vsel %vm2331, %v2930, -inf
  %v2960 = vsel %vm2331, %v2932, -inf
  %v2961 = vmax.f32 %v2959, %v2960
  %v2962 = vsel %vm2331, %v2935, -inf
  %v2963 = vsel %vm2331, %v2937, -inf
  %v2964 = vmax.f32 %v2962, %v2963
  %v2965 = vsel %vm2331, %v2940, -inf
  %v2966 = vsel %vm2331, %v2942, -inf
  %v2967 = vmax.f32 %v2965, %v2966
  %2968 = vst.msk [vmem:[#allocation5] sm:$0xff] %vm2331, %v2946
  %2969 = vst.msk [vmem:[#allocation5 + $0x8] sm:$0xff] %vm2331, %v2949
  %2970 = vst.msk [vmem:[#allocation5 + $0x10] sm:$0xff] %vm2331, %v2952
  %2971 = vst.msk [vmem:[#allocation5 + $0x18] sm:$0xff] %vm2331, %v2955
  %2972 = vst.msk [vmem:[#allocation5 + $0x20] sm:$0xff] %vm2331, %v2958
  %2973 = vst.msk [vmem:[#allocation5 + $0x28] sm:$0xff] %vm2331, %v2961
  %2974 = vst.msk [vmem:[#allocation5 + $0x30] sm:$0xff] %vm2331, %v2964
  %2975 = vst.msk [vmem:[#allocation5 + $0x38] sm:$0xff] %vm2331, %v2967
  %v2976 = vld [vmem:[#allocation5] ss:$2 sm:$0xf]
  %s2977 = scalar_lea.vmem [#allocation5], 8
  %v2978 = vld [vmem:[%s2977] ss:$2 sm:$0xf]
  %s2979 = scalar_lea.vmem [#allocation5], 16
  %v2980 = vld [vmem:[%s2979] ss:$2 sm:$0xf]
  %s2981 = scalar_lea.vmem [#allocation5], 24
  %v2982 = vld [vmem:[%s2981] ss:$2 sm:$0xf]
  %s2983 = scalar_lea.vmem [#allocation5], 32
  %v2984 = vld [vmem:[%s2983] ss:$2 sm:$0xf]
  %s2985 = scalar_lea.vmem [#allocation5], 40
  %v2986 = vld [vmem:[%s2985] ss:$2 sm:$0xf]
  %s2987 = scalar_lea.vmem [#allocation5], 48
  %v2988 = vld [vmem:[%s2987] ss:$2 sm:$0xf]
  %s2989 = scalar_lea.vmem [#allocation5], 56
  %v2990 = vld [vmem:[%s2989] ss:$2 sm:$0xf]
  %s2991 = scalar_lea.vmem [#allocation5], 1
  %v2992 = vld [vmem:[%s2991] ss:$2 sm:$0xf]
  %s2993 = scalar_lea.vmem [#allocation5], 9
  %v2994 = vld [vmem:[%s2993] ss:$2 sm:$0xf]
  %s2995 = scalar_lea.vmem [#allocation5], 17
  %v2996 = vld [vmem:[%s2995] ss:$2 sm:$0xf]
  %s2997 = scalar_lea.vmem [#allocation5], 25
  %v2998 = vld [vmem:[%s2997] ss:$2 sm:$0xf]
  %s2999 = scalar_lea.vmem [#allocation5], 33
  %v3000 = vld [vmem:[%s2999] ss:$2 sm:$0xf]
  %s3001 = scalar_lea.vmem [#allocation5], 41
  %v3002 = vld [vmem:[%s3001] ss:$2 sm:$0xf]
  %s3003 = scalar_lea.vmem [#allocation5], 49
  %v3004 = vld [vmem:[%s3003] ss:$2 sm:$0xf]
  %s3005 = scalar_lea.vmem [#allocation5], 57
  %v3006 = vld [vmem:[%s3005] ss:$2 sm:$0xf]
  %v3007 = vmax.f32 %v2976, %v2992
  %v3008 = vmax.f32 %v2978, %v2994
  %v3009 = vmax.f32 %v2980, %v2996
  %v3010 = vmax.f32 %v2982, %v2998
  %v3011 = vmax.f32 %v2984, %v3000
  %v3012 = vmax.f32 %v2986, %v3002
  %v3013 = vmax.f32 %v2988, %v3004
  %v3014 = vmax.f32 %v2990, %v3006
  %v3015 = vld [vmem:[%s4] sm:$0x1]
  %v3017 = vperm.slane %v3015, 0
  %v3019 = vadd.f32 %v3007, %v3017
  %v3020 = vadd.f32 %v3008, %v3017
  %v3021 = vadd.f32 %v3009, %v3017
  %v3022 = vadd.f32 %v3010, %v3017
  %v3023 = vadd.f32 %v3011, %v3017
  %v3024 = vadd.f32 %v3012, %v3017
  %v3025 = vadd.f32 %v3013, %v3017
  %v3026 = vadd.f32 %v3014, %v3017
  %vm3027 = vcmp.gt.f32.partialorder %v3019, 0.0
  %vm3028 = vcmp.gt.f32.partialorder %v3020, 0.0
  %vm3029 = vcmp.gt.f32.partialorder %v3021, 0.0
  %vm3030 = vcmp.gt.f32.partialorder %v3022, 0.0
  %vm3031 = vcmp.gt.f32.partialorder %v3023, 0.0
  %vm3032 = vcmp.gt.f32.partialorder %v3024, 0.0
  %vm3033 = vcmp.gt.f32.partialorder %v3025, 0.0
  %vm3034 = vcmp.gt.f32.partialorder %v3026, 0.0
  %v3035 = vmul.f32 %v3019, 0.01
  %v3036 = vmul.f32 %v3020, 0.01
  %v3037 = vmul.f32 %v3021, 0.01
  %v3038 = vmul.f32 %v3022, 0.01
  %v3039 = vmul.f32 %v3023, 0.01
  %v3040 = vmul.f32 %v3024, 0.01
  %v3041 = vmul.f32 %v3025, 0.01
  %v3042 = vmul.f32 %v3026, 0.01
  %v3043 = vsel %vm3027, %v3019, %v3035
  %v3044 = vsel %vm3028, %v3020, %v3036
  %v3045 = vsel %vm3029, %v3021, %v3037
  %v3046 = vsel %vm3030, %v3022, %v3038
  %v3047 = vsel %vm3031, %v3023, %v3039
  %v3048 = vsel %vm3032, %v3024, %v3040
  %v3049 = vsel %vm3033, %v3025, %v3041
  %v3050 = vsel %vm3034, %v3026, %v3042
  %vm3051 = vcmask 519168
  %3052 = vst.msk [vmem:[#allocation3] sm:$0xf] %vm3051, 0
  %vm3053 = vcmask 516096
  %3054 = vst.msk [vmem:[#allocation3 + $0x4] sm:$0x1] %vm3053, 0
  %3055 = vst.msk [vmem:[#allocation3 + $0x8] sm:$0xf] %vm3051, 0
  %3056 = vst.msk [vmem:[#allocation3 + $0xc] sm:$0x1] %vm3053, 0
  %3057 = vst.msk [vmem:[#allocation3 + $0x10] sm:$0xf] %vm3051, 0
  %3058 = vst.msk [vmem:[#allocation3 + $0x14] sm:$0x1] %vm3053, 0
  %3059 = vst.msk [vmem:[#allocation3 + $0x18] sm:$0xf] %vm3051, 0
  %3060 = vst.msk [vmem:[#allocation3 + $0x1c] sm:$0x1] %vm3053, 0
  %3061 = vst.msk [vmem:[#allocation3 + $0x20] sm:$0xf] %vm3051, 0
  %3062 = vst.msk [vmem:[#allocation3 + $0x24] sm:$0x1] %vm3053, 0
  %3063 = vst.msk [vmem:[#allocation3 + $0x28] sm:$0xf] %vm3051, 0
  %3064 = vst.msk [vmem:[#allocation3 + $0x2c] sm:$0x1] %vm3053, 0
  %3065 = vst.msk [vmem:[#allocation3 + $0x30] sm:$0xf] %vm3051, 0
  %3066 = vst.msk [vmem:[#allocation3 + $0x34] sm:$0x1] %vm3053, 0
  %3067 = vst.msk [vmem:[#allocation3 + $0x38] sm:$0xf] %vm3051, 0
  %3068 = vst.msk [vmem:[#allocation3 + $0x3c] sm:$0x1] %vm3053, 0
  %3069 = vst.msk [vmem:[#allocation3 + $0x40] sm:$0xf] %vm3051, 0
  %3070 = vst.msk [vmem:[#allocation3 + $0x44] sm:$0x1] %vm3053, 0
  %3071 = vst.msk [vmem:[#allocation3 + $0x48] sm:$0xf] %vm3051, 0
  %3072 = vst.msk [vmem:[#allocation3 + $0x4c] sm:$0x1] %vm3053, 0
  %3073 = vst.msk [vmem:[#allocation3 + $0x50] sm:$0xf] %vm3051, 0
  %3074 = vst.msk [vmem:[#allocation3 + $0x54] sm:$0x1] %vm3053, 0
  %3075 = vst.msk [vmem:[#allocation3 + $0x58] sm:$0xf] %vm3051, 0
  %3076 = vst.msk [vmem:[#allocation3 + $0x5c] sm:$0x1] %vm3053, 0
  %v3077 = vpack.c.bf16 %v3043, %v3043
  %v3078 = vpack.c.bf16 %v3044, %v3044
  %v3079 = vpack.c.bf16 %v3045, %v3045
  %v3080 = vpack.c.bf16 %v3046, %v3046
  %v3081 = vpack.c.bf16 %v3047, %v3047
  %v3082 = vpack.c.bf16 %v3048, %v3048
  %v3083 = vpack.c.bf16 %v3049, %v3049
  %v3084 = vpack.c.bf16 %v3050, %v3050
  %v3086 = vshrl.u32 %v3077, 16
  %v3088 = vrot.slane %v3086, 7
  %v3089 = vshll.u32 %v3077, 16
  %v3091 = vor.u32 %v3088, %v3089
  %v3093 = vshrl.u32 %v3078, 16
  %v3095 = vrot.slane %v3093, 7
  %v3096 = vshll.u32 %v3078, 16
  %v3098 = vor.u32 %v3095, %v3096
  %v3100 = vshrl.u32 %v3079, 16
  %v3102 = vrot.slane %v3100, 7
  %v3103 = vshll.u32 %v3079, 16
  %v3105 = vor.u32 %v3102, %v3103
  %v3107 = vshrl.u32 %v3080, 16
  %v3109 = vrot.slane %v3107, 7
  %v3110 = vshll.u32 %v3080, 16
  %v3112 = vor.u32 %v3109, %v3110
  %v3114 = vshrl.u32 %v3081, 16
  %v3116 = vrot.slane %v3114, 7
  %v3117 = vshll.u32 %v3081, 16
  %v3119 = vor.u32 %v3116, %v3117
  %v3121 = vshrl.u32 %v3082, 16
  %v3123 = vrot.slane %v3121, 7
  %v3124 = vshll.u32 %v3082, 16
  %v3126 = vor.u32 %v3123, %v3124
  %v3128 = vshrl.u32 %v3083, 16
  %v3130 = vrot.slane %v3128, 7
  %v3131 = vshll.u32 %v3083, 16
  %v3133 = vor.u32 %v3130, %v3131
  %v3135 = vshrl.u32 %v3084, 16
  %v3137 = vrot.slane %v3135, 7
  %v3138 = vshll.u32 %v3084, 16
  %v3140 = vor.u32 %v3137, %v3138
  %s3149 = scalar_lea.vmem [#allocation3], 8
  %vm3150 = vcmask 518144
  %vm3151 = vsmask.f32 2306
  %vm3152 = vmand %vm3150, %vm3151
  %v3153 = vld [vmem:[%s3149] sm:$0x7]
  %v3154 = vsel %vm3152, %v3091, %v3153
  %3155 = vst [vmem:[%s3149] sm:$0x7] %v3154
  %v3156 = vld [vmem:[%s3149 + $0x8] sm:$0x7]
  %v3157 = vsel %vm3152, %v3098, %v3156
  %3158 = vst [vmem:[%s3149 + $0x8] sm:$0x7] %v3157
  %v3159 = vld [vmem:[%s3149 + $0x10] sm:$0x7]
  %v3160 = vsel %vm3152, %v3105, %v3159
  %3161 = vst [vmem:[%s3149 + $0x10] sm:$0x7] %v3160
  %v3162 = vld [vmem:[%s3149 + $0x18] sm:$0x7]
  %v3163 = vsel %vm3152, %v3112, %v3162
  %3164 = vst [vmem:[%s3149 + $0x18] sm:$0x7] %v3163
  %v3165 = vld [vmem:[%s3149 + $0x30] sm:$0x7]
  %v3166 = vsel %vm3152, %v3119, %v3165
  %3167 = vst [vmem:[%s3149 + $0x30] sm:$0x7] %v3166
  %v3168 = vld [vmem:[%s3149 + $0x38] sm:$0x7]
  %v3169 = vsel %vm3152, %v3126, %v3168
  %3170 = vst [vmem:[%s3149 + $0x38] sm:$0x7] %v3169
  %v3171 = vld [vmem:[%s3149 + $0x40] sm:$0x7]
  %v3172 = vsel %vm3152, %v3133, %v3171
  %3173 = vst [vmem:[%s3149 + $0x40] sm:$0x7] %v3172
  %v3174 = vld [vmem:[%s3149 + $0x48] sm:$0x7]
  %v3175 = vsel %vm3152, %v3140, %v3174
  %3176 = vst [vmem:[%s3149 + $0x48] sm:$0x7] %v3175
  %v3177 = vld [vmem:[#allocation3] sm:$0xf]
  %v3178 = vld [vmem:[#allocation3 + $0x8] sm:$0xf]
  %v3179 = vld [vmem:[#allocation3 + $0x10] sm:$0xf]
  %v3180 = vld [vmem:[#allocation3 + $0x18] sm:$0xf]
  %v3181 = vld [vmem:[#allocation3 + $0x30] sm:$0xf]
  %v3182 = vld [vmem:[#allocation3 + $0x38] sm:$0xf]
  %v3183 = vld [vmem:[#allocation3 + $0x40] sm:$0xf]
  %v3184 = vld [vmem:[#allocation3 + $0x48] sm:$0xf]
  %v3185 = vld [vmem:[#allocation3 + $0x4] sm:$0x1]
  %v3186 = vld [vmem:[#allocation3 + $0xc] sm:$0x1]
  %v3187 = vld [vmem:[#allocation3 + $0x14] sm:$0x1]
  %v3188 = vld [vmem:[#allocation3 + $0x1c] sm:$0x1]
  %v3189 = vld [vmem:[#allocation3 + $0x34] sm:$0x1]
  %v3190 = vld [vmem:[#allocation3 + $0x3c] sm:$0x1]
  %v3191 = vld [vmem:[#allocation3 + $0x44] sm:$0x1]
  %v3192 = vld [vmem:[#allocation3 + $0x4c] sm:$0x1]
  %v3193 = vld [vmem:[#allocation3] sm:$0xe]
  %v3194 = vld [vmem:[#allocation3 + $0x8] sm:$0xe]
  %v3195 = vld [vmem:[#allocation3 + $0x10] sm:$0xe]
  %v3196 = vld [vmem:[#allocation3 + $0x18] sm:$0xe]
  %v3197 = vld [vmem:[#allocation3 + $0x30] sm:$0xe]
  %v3198 = vld [vmem:[#allocation3 + $0x38] sm:$0xe]
  %v3199 = vld [vmem:[#allocation3 + $0x40] sm:$0xe]
  %v3200 = vld [vmem:[#allocation3 + $0x48] sm:$0xe]
  %v3201 = vld [vmem:[%s3149] sm:$0xf]
  %v3202 = vld [vmem:[%s3149 + $0x8] sm:$0xf]
  %v3203 = vld [vmem:[%s3149 + $0x10] sm:$0xf]
  %v3204 = vld [vmem:[%s3149 + $0x18] sm:$0xf]
  %v3205 = vld [vmem:[%s3149 + $0x30] sm:$0xf]
  %v3206 = vld [vmem:[%s3149 + $0x38] sm:$0xf]
  %v3207 = vld [vmem:[%s3149 + $0x40] sm:$0xf]
  %v3208 = vld [vmem:[%s3149 + $0x48] sm:$0xf]
  %v3209 = vld [vmem:[%s3149 + $0x4] sm:$0x1]
  %v3210 = vld [vmem:[%s3149 + $0xc] sm:$0x1]
  %v3211 = vld [vmem:[%s3149 + $0x14] sm:$0x1]
  %v3212 = vld [vmem:[%s3149 + $0x1c] sm:$0x1]
  %v3213 = vld [vmem:[%s3149 + $0x34] sm:$0x1]
  %v3214 = vld [vmem:[%s3149 + $0x3c] sm:$0x1]
  %v3215 = vld [vmem:[%s3149 + $0x44] sm:$0x1]
  %v3216 = vld [vmem:[%s3149 + $0x4c] sm:$0x1]
  %v3217 = vld [vmem:[%s3149] sm:$0xe]
  %v3218 = vld [vmem:[%s3149 + $0x8] sm:$0xe]
  %v3219 = vld [vmem:[%s3149 + $0x10] sm:$0xe]
  %v3220 = vld [vmem:[%s3149 + $0x18] sm:$0xe]
  %v3221 = vld [vmem:[%s3149 + $0x30] sm:$0xe]
  %v3222 = vld [vmem:[%s3149 + $0x38] sm:$0xe]
  %v3223 = vld [vmem:[%s3149 + $0x40] sm:$0xe]
  %v3224 = vld [vmem:[%s3149 + $0x48] sm:$0xe]
  %s3225 = scalar_lea.vmem [#allocation3], 16
  %v3226 = vld [vmem:[%s3225] sm:$0xf]
  %v3227 = vld [vmem:[%s3225 + $0x8] sm:$0xf]
  %v3228 = vld [vmem:[%s3225 + $0x10] sm:$0xf]
  %v3229 = vld [vmem:[%s3225 + $0x18] sm:$0xf]
  %v3230 = vld [vmem:[%s3225 + $0x30] sm:$0xf]
  %v3231 = vld [vmem:[%s3225 + $0x38] sm:$0xf]
  %v3232 = vld [vmem:[%s3225 + $0x40] sm:$0xf]
  %v3233 = vld [vmem:[%s3225 + $0x48] sm:$0xf]
  %v3234 = vld [vmem:[%s3225 + $0x4] sm:$0x1]
  %v3235 = vld [vmem:[%s3225 + $0xc] sm:$0x1]
  %v3236 = vld [vmem:[%s3225 + $0x14] sm:$0x1]
  %v3237 = vld [vmem:[%s3225 + $0x1c] sm:$0x1]
  %v3238 = vld [vmem:[%s3225 + $0x34] sm:$0x1]
  %v3239 = vld [vmem:[%s3225 + $0x3c] sm:$0x1]
  %v3240 = vld [vmem:[%s3225 + $0x44] sm:$0x1]
  %v3241 = vld [vmem:[%s3225 + $0x4c] sm:$0x1]
  %v3242 = vld [vmem:[%s3225] sm:$0xe]
  %v3243 = vld [vmem:[%s3225 + $0x8] sm:$0xe]
  %v3244 = vld [vmem:[%s3225 + $0x10] sm:$0xe]
  %v3245 = vld [vmem:[%s3225 + $0x18] sm:$0xe]
  %v3246 = vld [vmem:[%s3225 + $0x30] sm:$0xe]
  %v3247 = vld [vmem:[%s3225 + $0x38] sm:$0xe]
  %v3248 = vld [vmem:[%s3225 + $0x40] sm:$0xe]
  %v3249 = vld [vmem:[%s3225 + $0x48] sm:$0xe]
  %v3266 = vunpack.c.l.b16 %v3177
  %v3267 = vunpack.c.l.b16 %v3185
  %v3268 = vunpack.c.l.b16 %v3178
  %v3269 = vunpack.c.l.b16 %v3186
  %v3270 = vunpack.c.l.b16 %v3179
  %v3271 = vunpack.c.l.b16 %v3187
  %v3272 = vunpack.c.l.b16 %v3180
  %v3273 = vunpack.c.l.b16 %v3188
  %v3274 = vunpack.c.l.b16 %v3181
  %v3275 = vunpack.c.l.b16 %v3189
  %v3276 = vunpack.c.l.b16 %v3182
  %v3277 = vunpack.c.l.b16 %v3190
  %v3278 = vunpack.c.l.b16 %v3183
  %v3279 = vunpack.c.l.b16 %v3191
  %v3280 = vunpack.c.l.b16 %v3184
  %v3281 = vunpack.c.l.b16 %v3192
  %v3282 = vpack.c.b16 %v3267, %v3266
  %v3283 = vpack.c.b16 %v3269, %v3268
  %v3284 = vpack.c.b16 %v3271, %v3270
  %v3285 = vpack.c.b16 %v3273, %v3272
  %v3286 = vpack.c.b16 %v3275, %v3274
  %v3287 = vpack.c.b16 %v3277, %v3276
  %v3288 = vpack.c.b16 %v3279, %v3278
  %v3289 = vpack.c.b16 %v3281, %v3280
  %v3291 = vshrl.u32 %v3282, 16
  %v3293 = vshll.u32 %v3282, 16
  %v3295 = vrot.slane %v3293, 1
  %v3296 = vor.u32 %v3291, %v3295
  %v3298 = vshrl.u32 %v3283, 16
  %v3300 = vshll.u32 %v3283, 16
  %v3302 = vrot.slane %v3300, 1
  %v3303 = vor.u32 %v3298, %v3302
  %v3305 = vshrl.u32 %v3284, 16
  %v3307 = vshll.u32 %v3284, 16
  %v3309 = vrot.slane %v3307, 1
  %v3310 = vor.u32 %v3305, %v3309
  %v3312 = vshrl.u32 %v3285, 16
  %v3314 = vshll.u32 %v3285, 16
  %v3316 = vrot.slane %v3314, 1
  %v3317 = vor.u32 %v3312, %v3316
  %v3319 = vshrl.u32 %v3286, 16
  %v3321 = vshll.u32 %v3286, 16
  %v3323 = vrot.slane %v3321, 1
  %v3324 = vor.u32 %v3319, %v3323
  %v3326 = vshrl.u32 %v3287, 16
  %v3328 = vshll.u32 %v3287, 16
  %v3330 = vrot.slane %v3328, 1
  %v3331 = vor.u32 %v3326, %v3330
  %v3333 = vshrl.u32 %v3288, 16
  %v3335 = vshll.u32 %v3288, 16
  %v3337 = vrot.slane %v3335, 1
  %v3338 = vor.u32 %v3333, %v3337
  %v3340 = vshrl.u32 %v3289, 16
  %v3342 = vshll.u32 %v3289, 16
  %v3344 = vrot.slane %v3342, 1
  %v3345 = vor.u32 %v3340, %v3344
  %3346 = vrot.lane.b32.xlu0 %v3296, 64
  %v3347 = vpop.permute.xlu0 %3346
  %3348 = vrot.lane.b32.xlu0 %v3303, 64
  %v3349 = vpop.permute.xlu0 %3348
  %3350 = vrot.lane.b32.xlu0 %v3310, 64
  %v3351 = vpop.permute.xlu0 %3350
  %3352 = vrot.lane.b32.xlu0 %v3317, 64
  %v3353 = vpop.permute.xlu0 %3352
  %3354 = vrot.lane.b32.xlu0 %v3324, 64
  %v3355 = vpop.permute.xlu0 %3354
  %3356 = vrot.lane.b32.xlu0 %v3331, 64
  %v3357 = vpop.permute.xlu0 %3356
  %3358 = vrot.lane.b32.xlu0 %v3338, 64
  %v3359 = vpop.permute.xlu0 %3358
  %3360 = vrot.lane.b32.xlu0 %v3345, 64
  %v3361 = vpop.permute.xlu0 %3360
  %v3370 = vunpack.c.l.b16 %v3193
  %v3371 = vunpack.c.l.b16 %v3194
  %v3372 = vunpack.c.l.b16 %v3195
  %v3373 = vunpack.c.l.b16 %v3196
  %v3374 = vunpack.c.l.b16 %v3197
  %v3375 = vunpack.c.l.b16 %v3198
  %v3376 = vunpack.c.l.b16 %v3199
  %v3377 = vunpack.c.l.b16 %v3200
  %v3378 = vpack.c.b16 %v3267, %v3370
  %v3379 = vpack.c.b16 %v3269, %v3371
  %v3380 = vpack.c.b16 %v3271, %v3372
  %v3381 = vpack.c.b16 %v3273, %v3373
  %v3382 = vpack.c.b16 %v3275, %v3374
  %v3383 = vpack.c.b16 %v3277, %v3375
  %v3384 = vpack.c.b16 %v3279, %v3376
  %v3385 = vpack.c.b16 %v3281, %v3377
  %v3386 = vrot.slane %v3378, 1
  %v3387 = vrot.slane %v3379, 1
  %v3388 = vrot.slane %v3380, 1
  %v3389 = vrot.slane %v3381, 1
  %v3390 = vrot.slane %v3382, 1
  %v3391 = vrot.slane %v3383, 1
  %v3392 = vrot.slane %v3384, 1
  %v3393 = vrot.slane %v3385, 1
  %v3402 = vunpack.c.l.b16 %v3201
  %v3403 = vunpack.c.l.b16 %v3202
  %v3404 = vunpack.c.l.b16 %v3203
  %v3405 = vunpack.c.l.b16 %v3204
  %v3406 = vunpack.c.l.b16 %v3205
  %v3407 = vunpack.c.l.b16 %v3206
  %v3408 = vunpack.c.l.b16 %v3207
  %v3409 = vunpack.c.l.b16 %v3208
  %v3410 = vpack.c.b16 %v3402, %v3402
  %v3411 = vpack.c.b16 %v3403, %v3403
  %v3412 = vpack.c.b16 %v3404, %v3404
  %v3413 = vpack.c.b16 %v3405, %v3405
  %v3414 = vpack.c.b16 %v3406, %v3406
  %v3415 = vpack.c.b16 %v3407, %v3407
  %v3416 = vpack.c.b16 %v3408, %v3408
  %v3417 = vpack.c.b16 %v3409, %v3409
  %3418 = vrot.lane.b32.xlu0 %v3410, 64
  %v3419 = vpop.permute.xlu0 %3418
  %3420 = vrot.lane.b32.xlu0 %v3411, 64
  %v3421 = vpop.permute.xlu0 %3420
  %3422 = vrot.lane.b32.xlu0 %v3412, 64
  %v3423 = vpop.permute.xlu0 %3422
  %3424 = vrot.lane.b32.xlu0 %v3413, 64
  %v3425 = vpop.permute.xlu0 %3424
  %3426 = vrot.lane.b32.xlu0 %v3414, 64
  %v3427 = vpop.permute.xlu0 %3426
  %3428 = vrot.lane.b32.xlu0 %v3415, 64
  %v3429 = vpop.permute.xlu0 %3428
  %3430 = vrot.lane.b32.xlu0 %v3416, 64
  %v3431 = vpop.permute.xlu0 %3430
  %3432 = vrot.lane.b32.xlu0 %v3417, 64
  %v3433 = vpop.permute.xlu0 %3432
  %v3442 = vunpack.c.l.b16 %v3209
  %v3443 = vunpack.c.l.b16 %v3210
  %v3444 = vunpack.c.l.b16 %v3211
  %v3445 = vunpack.c.l.b16 %v3212
  %v3446 = vunpack.c.l.b16 %v3213
  %v3447 = vunpack.c.l.b16 %v3214
  %v3448 = vunpack.c.l.b16 %v3215
  %v3449 = vunpack.c.l.b16 %v3216
  %v3450 = vpack.c.b16 %v3442, %v3402
  %v3451 = vpack.c.b16 %v3443, %v3403
  %v3452 = vpack.c.b16 %v3444, %v3404
  %v3453 = vpack.c.b16 %v3445, %v3405
  %v3454 = vpack.c.b16 %v3446, %v3406
  %v3455 = vpack.c.b16 %v3447, %v3407
  %v3456 = vpack.c.b16 %v3448, %v3408
  %v3457 = vpack.c.b16 %v3449, %v3409
  %v3459 = vshrl.u32 %v3450, 16
  %v3461 = vshll.u32 %v3450, 16
  %v3463 = vrot.slane %v3461, 1
  %v3464 = vor.u32 %v3459, %v3463
  %v3466 = vshrl.u32 %v3451, 16
  %v3468 = vshll.u32 %v3451, 16
  %v3470 = vrot.slane %v3468, 1
  %v3471 = vor.u32 %v3466, %v3470
  %v3473 = vshrl.u32 %v3452, 16
  %v3475 = vshll.u32 %v3452, 16
  %v3477 = vrot.slane %v3475, 1
  %v3478 = vor.u32 %v3473, %v3477
  %v3480 = vshrl.u32 %v3453, 16
  %v3482 = vshll.u32 %v3453, 16
  %v3484 = vrot.slane %v3482, 1
  %v3485 = vor.u32 %v3480, %v3484
  %v3487 = vshrl.u32 %v3454, 16
  %v3489 = vshll.u32 %v3454, 16
  %v3491 = vrot.slane %v3489, 1
  %v3492 = vor.u32 %v3487, %v3491
  %v3494 = vshrl.u32 %v3455, 16
  %v3496 = vshll.u32 %v3455, 16
  %v3498 = vrot.slane %v3496, 1
  %v3499 = vor.u32 %v3494, %v3498
  %v3501 = vshrl.u32 %v3456, 16
  %v3503 = vshll.u32 %v3456, 16
  %v3505 = vrot.slane %v3503, 1
  %v3506 = vor.u32 %v3501, %v3505
  %v3508 = vshrl.u32 %v3457, 16
  %v3510 = vshll.u32 %v3457, 16
  %v3512 = vrot.slane %v3510, 1
  %v3513 = vor.u32 %v3508, %v3512
  %v3522 = vunpack.c.l.b16 %v3217
  %v3523 = vunpack.c.l.b16 %v3218
  %v3524 = vunpack.c.l.b16 %v3219
  %v3525 = vunpack.c.l.b16 %v3220
  %v3526 = vunpack.c.l.b16 %v3221
  %v3527 = vunpack.c.l.b16 %v3222
  %v3528 = vunpack.c.l.b16 %v3223
  %v3529 = vunpack.c.l.b16 %v3224
  %v3530 = vpack.c.b16 %v3442, %v3522
  %v3531 = vpack.c.b16 %v3443, %v3523
  %v3532 = vpack.c.b16 %v3444, %v3524
  %v3533 = vpack.c.b16 %v3445, %v3525
  %v3534 = vpack.c.b16 %v3446, %v3526
  %v3535 = vpack.c.b16 %v3447, %v3527
  %v3536 = vpack.c.b16 %v3448, %v3528
  %v3537 = vpack.c.b16 %v3449, %v3529
  %v3538 = vrot.slane %v3530, 1
  %v3539 = vrot.slane %v3531, 1
  %v3540 = vrot.slane %v3532, 1
  %v3541 = vrot.slane %v3533, 1
  %v3542 = vrot.slane %v3534, 1
  %v3543 = vrot.slane %v3535, 1
  %v3544 = vrot.slane %v3536, 1
  %v3545 = vrot.slane %v3537, 1
  %3546 = vrot.lane.b32.xlu0 %v3538, 64
  %v3547 = vpop.permute.xlu0 %3546
  %3548 = vrot.lane.b32.xlu0 %v3539, 64
  %v3549 = vpop.permute.xlu0 %3548
  %3550 = vrot.lane.b32.xlu0 %v3540, 64
  %v3551 = vpop.permute.xlu0 %3550
  %3552 = vrot.lane.b32.xlu0 %v3541, 64
  %v3553 = vpop.permute.xlu0 %3552
  %3554 = vrot.lane.b32.xlu0 %v3542, 64
  %v3555 = vpop.permute.xlu0 %3554
  %3556 = vrot.lane.b32.xlu0 %v3543, 64
  %v3557 = vpop.permute.xlu0 %3556
  %3558 = vrot.lane.b32.xlu0 %v3544, 64
  %v3559 = vpop.permute.xlu0 %3558
  %3560 = vrot.lane.b32.xlu0 %v3545, 64
  %v3561 = vpop.permute.xlu0 %3560
  %v3578 = vunpack.c.l.b16 %v3226
  %v3579 = vunpack.c.l.b16 %v3234
  %v3580 = vunpack.c.l.b16 %v3227
  %v3581 = vunpack.c.l.b16 %v3235
  %v3582 = vunpack.c.l.b16 %v3228
  %v3583 = vunpack.c.l.b16 %v3236
  %v3584 = vunpack.c.l.b16 %v3229
  %v3585 = vunpack.c.l.b16 %v3237
  %v3586 = vunpack.c.l.b16 %v3230
  %v3587 = vunpack.c.l.b16 %v3238
  %v3588 = vunpack.c.l.b16 %v3231
  %v3589 = vunpack.c.l.b16 %v3239
  %v3590 = vunpack.c.l.b16 %v3232
  %v3591 = vunpack.c.l.b16 %v3240
  %v3592 = vunpack.c.l.b16 %v3233
  %v3593 = vunpack.c.l.b16 %v3241
  %v3594 = vpack.c.b16 %v3579, %v3578
  %v3595 = vpack.c.b16 %v3581, %v3580
  %v3596 = vpack.c.b16 %v3583, %v3582
  %v3597 = vpack.c.b16 %v3585, %v3584
  %v3598 = vpack.c.b16 %v3587, %v3586
  %v3599 = vpack.c.b16 %v3589, %v3588
  %v3600 = vpack.c.b16 %v3591, %v3590
  %v3601 = vpack.c.b16 %v3593, %v3592
  %v3603 = vshrl.u32 %v3594, 16
  %v3605 = vshll.u32 %v3594, 16
  %v3607 = vrot.slane %v3605, 1
  %v3608 = vor.u32 %v3603, %v3607
  %v3610 = vshrl.u32 %v3595, 16
  %v3612 = vshll.u32 %v3595, 16
  %v3614 = vrot.slane %v3612, 1
  %v3615 = vor.u32 %v3610, %v3614
  %v3617 = vshrl.u32 %v3596, 16
  %v3619 = vshll.u32 %v3596, 16
  %v3621 = vrot.slane %v3619, 1
  %v3622 = vor.u32 %v3617, %v3621
  %v3624 = vshrl.u32 %v3597, 16
  %v3626 = vshll.u32 %v3597, 16
  %v3628 = vrot.slane %v3626, 1
  %v3629 = vor.u32 %v3624, %v3628
  %v3631 = vshrl.u32 %v3598, 16
  %v3633 = vshll.u32 %v3598, 16
  %v3635 = vrot.slane %v3633, 1
  %v3636 = vor.u32 %v3631, %v3635
  %v3638 = vshrl.u32 %v3599, 16
  %v3640 = vshll.u32 %v3599, 16
  %v3642 = vrot.slane %v3640, 1
  %v3643 = vor.u32 %v3638, %v3642
  %v3645 = vshrl.u32 %v3600, 16
  %v3647 = vshll.u32 %v3600, 16
  %v3649 = vrot.slane %v3647, 1
  %v3650 = vor.u32 %v3645, %v3649
  %v3652 = vshrl.u32 %v3601, 16
  %v3654 = vshll.u32 %v3601, 16
  %v3656 = vrot.slane %v3654, 1
  %v3657 = vor.u32 %v3652, %v3656
  %3658 = vrot.lane.b32.xlu0 %v3608, 64
  %v3659 = vpop.permute.xlu0 %3658
  %3660 = vrot.lane.b32.xlu0 %v3615, 64
  %v3661 = vpop.permute.xlu0 %3660
  %3662 = vrot.lane.b32.xlu0 %v3622, 64
  %v3663 = vpop.permute.xlu0 %3662
  %3664 = vrot.lane.b32.xlu0 %v3629, 64
  %v3665 = vpop.permute.xlu0 %3664
  %3666 = vrot.lane.b32.xlu0 %v3636, 64
  %v3667 = vpop.permute.xlu0 %3666
  %3668 = vrot.lane.b32.xlu0 %v3643, 64
  %v3669 = vpop.permute.xlu0 %3668
  %3670 = vrot.lane.b32.xlu0 %v3650, 64
  %v3671 = vpop.permute.xlu0 %3670
  %3672 = vrot.lane.b32.xlu0 %v3657, 64
  %v3673 = vpop.permute.xlu0 %3672
  %v3682 = vunpack.c.l.b16 %v3242
  %v3683 = vunpack.c.l.b16 %v3243
  %v3684 = vunpack.c.l.b16 %v3244
  %v3685 = vunpack.c.l.b16 %v3245
  %v3686 = vunpack.c.l.b16 %v3246
  %v3687 = vunpack.c.l.b16 %v3247
  %v3688 = vunpack.c.l.b16 %v3248
  %v3689 = vunpack.c.l.b16 %v3249
  %v3690 = vpack.c.b16 %v3579, %v3682
  %v3691 = vpack.c.b16 %v3581, %v3683
  %v3692 = vpack.c.b16 %v3583, %v3684
  %v3693 = vpack.c.b16 %v3585, %v3685
  %v3694 = vpack.c.b16 %v3587, %v3686
  %v3695 = vpack.c.b16 %v3589, %v3687
  %v3696 = vpack.c.b16 %v3591, %v3688
  %v3697 = vpack.c.b16 %v3593, %v3689
  %v3698 = vrot.slane %v3690, 1
  %v3699 = vrot.slane %v3691, 1
  %v3700 = vrot.slane %v3692, 1
  %v3701 = vrot.slane %v3693, 1
  %v3702 = vrot.slane %v3694, 1
  %v3703 = vrot.slane %v3695, 1
  %v3704 = vrot.slane %v3696, 1
  %v3705 = vrot.slane %v3697, 1
  %v3708 = vsel %vm2331, %v3177, %v3347
  %v3711 = vsel %vm2331, %v3178, %v3349
  %v3714 = vsel %vm2331, %v3179, %v3351
  %v3717 = vsel %vm2331, %v3180, %v3353
  %v3720 = vsel %vm2331, %v3181, %v3355
  %v3723 = vsel %vm2331, %v3182, %v3357
  %v3726 = vsel %vm2331, %v3183, %v3359
  %v3729 = vsel %vm2331, %v3184, %v3361
  %v3732 = vsel %vm2331, %v3386, %v3419
  %v3735 = vsel %vm2331, %v3387, %v3421
  %v3738 = vsel %vm2331, %v3388, %v3423
  %v3741 = vsel %vm2331, %v3389, %v3425
  %v3744 = vsel %vm2331, %v3390, %v3427
  %v3747 = vsel %vm2331, %v3391, %v3429
  %v3750 = vsel %vm2331, %v3392, %v3431
  %v3753 = vsel %vm2331, %v3393, %v3433
  %v3756 = vsel %vm2331, %v3464, %v3547
  %v3759 = vsel %vm2331, %v3471, %v3549
  %v3762 = vsel %vm2331, %v3478, %v3551
  %v3765 = vsel %vm2331, %v3485, %v3553
  %v3768 = vsel %vm2331, %v3492, %v3555
  %v3771 = vsel %vm2331, %v3499, %v3557
  %v3774 = vsel %vm2331, %v3506, %v3559
  %v3777 = vsel %vm2331, %v3513, %v3561
  %v3780 = vsel %vm2331, %v3226, %v3659
  %v3783 = vsel %vm2331, %v3227, %v3661
  %v3786 = vsel %vm2331, %v3228, %v3663
  %v3789 = vsel %vm2331, %v3229, %v3665
  %v3792 = vsel %vm2331, %v3230, %v3667
  %v3795 = vsel %vm2331, %v3231, %v3669
  %v3798 = vsel %vm2331, %v3232, %v3671
  %v3801 = vsel %vm2331, %v3233, %v3673
  %v3834 = vunpack.c.l.b16 %v3708
  %v3835 = vunpack.c.l.b16 %v3732
  %v3836 = vunpack.c.l.b16 %v3756
  %v3837 = vunpack.c.l.b16 %v3780
  %v3838 = vunpack.c.l.b16 %v3698
  %v3839 = vunpack.c.l.b16 %v3711
  %v3840 = vunpack.c.l.b16 %v3735
  %v3841 = vunpack.c.l.b16 %v3759
  %v3842 = vunpack.c.l.b16 %v3783
  %v3843 = vunpack.c.l.b16 %v3699
  %v3844 = vunpack.c.l.b16 %v3714
  %v3845 = vunpack.c.l.b16 %v3738
  %v3846 = vunpack.c.l.b16 %v3762
  %v3847 = vunpack.c.l.b16 %v3786
  %v3848 = vunpack.c.l.b16 %v3700
  %v3849 = vunpack.c.l.b16 %v3717
  %v3850 = vunpack.c.l.b16 %v3741
  %v3851 = vunpack.c.l.b16 %v3765
  %v3852 = vunpack.c.l.b16 %v3789
  %v3853 = vunpack.c.l.b16 %v3701
  %v3854 = vunpack.c.l.b16 %v3720
  %v3855 = vunpack.c.l.b16 %v3744
  %v3856 = vunpack.c.l.b16 %v3768
  %v3857 = vunpack.c.l.b16 %v3792
  %v3858 = vunpack.c.l.b16 %v3702
  %v3859 = vunpack.c.l.b16 %v3723
  %v3860 = vunpack.c.l.b16 %v3747
  %v3861 = vunpack.c.l.b16 %v3771
  %v3862 = vunpack.c.l.b16 %v3795
  %v3863 = vunpack.c.l.b16 %v3703
  %v3864 = vunpack.c.l.b16 %v3726
  %v3865 = vunpack.c.l.b16 %v3750
  %v3866 = vunpack.c.l.b16 %v3774
  %v3867 = vunpack.c.l.b16 %v3798
  %v3868 = vunpack.c.l.b16 %v3704
  %v3869 = vunpack.c.l.b16 %v3729
  %v3870 = vunpack.c.l.b16 %v3753
  %v3871 = vunpack.c.l.b16 %v3777
  %v3872 = vunpack.c.l.b16 %v3801
  %v3873 = vunpack.c.l.b16 %v3705
  %v3874 = vld [vmem:[%s5] sm:$0xf]
  %v3875 = vld [vmem:[%s5 + $0x4] sm:$0xf]
  %v3876 = vld [vmem:[%s5 + $0x8] sm:$0xf]
  %v3877 = vld [vmem:[%s5 + $0xc] sm:$0xf]
  %v3878 = vld [vmem:[%s5 + $0x10] sm:$0xf]
  %v3879 = vld [vmem:[%s5 + $0x14] sm:$0xf]
  %v3880 = vld [vmem:[%s5 + $0x18] sm:$0xf]
  %v3881 = vld [vmem:[%s5 + $0x1c] sm:$0xf]
  %v3882 = vld [vmem:[%s5 + $0x20] sm:$0xf]
  %v3883 = vld [vmem:[%s5 + $0x24] sm:$0xf]
  %v3884 = vld [vmem:[%s5 + $0x28] sm:$0xf]
  %v3885 = vld [vmem:[%s5 + $0x2c] sm:$0xf]
  %v3886 = vld [vmem:[%s5 + $0x30] sm:$0xf]
  %v3887 = vld [vmem:[%s5 + $0x34] sm:$0xf]
  %v3888 = vld [vmem:[%s5 + $0x38] sm:$0xf]
  %v3889 = vld [vmem:[%s5 + $0x3c] sm:$0xf]
  %v3890 = vld [vmem:[%s5 + $0x40] sm:$0xf]
  %v3891 = vld [vmem:[%s5 + $0x44] sm:$0xf]
  %v3892 = vld [vmem:[%s5 + $0x48] sm:$0xf]
  %v3893 = vld [vmem:[%s5 + $0x4c] sm:$0xf]
  %v3894 = vld [vmem:[%s5 + $0x50] sm:$0xf]
  %v3895 = vld [vmem:[%s5 + $0x54] sm:$0xf]
  %v3896 = vld [vmem:[%s5 + $0x58] sm:$0xf]
  %v3897 = vld [vmem:[%s5 + $0x5c] sm:$0xf]
  %v3898 = vld [vmem:[%s5 + $0x60] sm:$0xf]
  %v3899 = vld [vmem:[%s5 + $0x64] sm:$0xf]
  %v3900 = vld [vmem:[%s5 + $0x68] sm:$0xf]
  %v3901 = vld [vmem:[%s5 + $0x6c] sm:$0xf]
  %v3902 = vld [vmem:[%s5 + $0x70] sm:$0xf]
  %v3903 = vld [vmem:[%s5 + $0x74] sm:$0xf]
  %v3904 = vld [vmem:[%s5 + $0x78] sm:$0xf]
  %v3905 = vld [vmem:[%s5 + $0x7c] sm:$0xf]
  %v3906 = vld [vmem:[%s5 + $0x80] sm:$0xf]
  %v3907 = vld [vmem:[%s5 + $0x84] sm:$0xf]
  %v3908 = vld [vmem:[%s5 + $0x88] sm:$0xf]
  %v3909 = vld [vmem:[%s5 + $0x8c] sm:$0xf]
  %v3910 = vld [vmem:[%s5 + $0x90] sm:$0xf]
  %v3911 = vld [vmem:[%s5 + $0x94] sm:$0xf]
  %v3912 = vld [vmem:[%s5 + $0x98] sm:$0xf]
  %v3913 = vld [vmem:[%s5 + $0x9c] sm:$0xf]
  %v3914 = vld [vmem:[%s5 + $0xa0] sm:$0xf]
  %v3915 = vld [vmem:[%s5 + $0xa4] sm:$0xf]
  %v3916 = vld [vmem:[%s5 + $0xa8] sm:$0xf]
  %v3917 = vld [vmem:[%s5 + $0xac] sm:$0xf]
  %v3918 = vld [vmem:[%s5 + $0xb0] sm:$0xf]
  %v3919 = vld [vmem:[%s5 + $0xb4] sm:$0xf]
  %v3920 = vld [vmem:[%s5 + $0xb8] sm:$0xf]
  %v3921 = vld [vmem:[%s5 + $0xbc] sm:$0xf]
  %v3922 = vld [vmem:[%s5 + $0xc0] sm:$0xf]
  %v3923 = vld [vmem:[%s5 + $0xc4] sm:$0xf]
  %v3924 = vld [vmem:[%s5 + $0xc8] sm:$0xf]
  %v3925 = vld [vmem:[%s5 + $0xcc] sm:$0xf]
  %v3926 = vld [vmem:[%s5 + $0xd0] sm:$0xf]
  %v3927 = vld [vmem:[%s5 + $0xd4] sm:$0xf]
  %v3928 = vld [vmem:[%s5 + $0xd8] sm:$0xf]
  %v3929 = vld [vmem:[%s5 + $0xdc] sm:$0xf]
  %v3930 = vld [vmem:[%s5 + $0xe0] sm:$0xf]
  %v3931 = vld [vmem:[%s5 + $0xe4] sm:$0xf]
  %v3932 = vld [vmem:[%s5 + $0xe8] sm:$0xf]
  %v3933 = vld [vmem:[%s5 + $0xec] sm:$0xf]
  %v3934 = vld [vmem:[%s5 + $0xf0] sm:$0xf]
  %v3935 = vld [vmem:[%s5 + $0xf4] sm:$0xf]
  %v3936 = vld [vmem:[%s5 + $0xf8] sm:$0xf]
  %v3937 = vld [vmem:[%s5 + $0xfc] sm:$0xf]
  %v3938 = vld [vmem:[%s5 + $0x100] sm:$0xf]
  %v3939 = vld [vmem:[%s5 + $0x104] sm:$0xf]
  %v3940 = vld [vmem:[%s5 + $0x108] sm:$0xf]
  %v3941 = vld [vmem:[%s5 + $0x10c] sm:$0xf]
  %v3942 = vld [vmem:[%s5 + $0x110] sm:$0xf]
  %v3943 = vld [vmem:[%s5 + $0x114] sm:$0xf]
  %v3944 = vld [vmem:[%s5 + $0x118] sm:$0xf]
  %v3945 = vld [vmem:[%s5 + $0x11c] sm:$0xf]
  %v3946 = vpack.c.b16 %v3839, %v3834
  %v3947 = vpack.c.b16 %v3840, %v3835
  %v3948 = vpack.c.b16 %v3841, %v3836
  %v3949 = vpack.c.b16 %v3842, %v3837
  %v3950 = vpack.c.b16 %v3843, %v3838
  %v3951 = vpack.c.b16 %v3849, %v3844
  %v3952 = vpack.c.b16 %v3850, %v3845
  %v3953 = vpack.c.b16 %v3851, %v3846
  %v3954 = vpack.c.b16 %v3852, %v3847
  %v3955 = vpack.c.b16 %v3853, %v3848
  %v3956 = vpack.c.b16 %v3859, %v3854
  %v3957 = vpack.c.b16 %v3860, %v3855
  %v3958 = vpack.c.b16 %v3861, %v3856
  %v3959 = vpack.c.b16 %v3862, %v3857
  %v3960 = vpack.c.b16 %v3863, %v3858
  %v3961 = vpack.c.b16 %v3869, %v3864
  %v3962 = vpack.c.b16 %v3870, %v3865
  %v3963 = vpack.c.b16 %v3871, %v3866
  %v3964 = vpack.c.b16 %v3872, %v3867
  %v3965 = vpack.c.b16 %v3873, %v3868
  %v4054 = vunpack.c.l.b16 %v3874
  %v4055 = vunpack.c.l.b16 %v3875
  %v4056 = vunpack.c.l.b16 %v3876
  %v4057 = vunpack.c.l.b16 %v3877
  %v4058 = vunpack.c.l.b16 %v3878
  %v4059 = vunpack.c.l.b16 %v3879
  %v4060 = vunpack.c.l.b16 %v3880
  %v4061 = vunpack.c.l.b16 %v3881
  %v4062 = vunpack.c.l.b16 %v3882
  %v4063 = vunpack.c.l.b16 %v3883
  %v4064 = vunpack.c.l.b16 %v3884
  %v4065 = vunpack.c.l.b16 %v3885
  %v4066 = vunpack.c.l.b16 %v3886
  %v4067 = vunpack.c.l.b16 %v3887
  %v4068 = vunpack.c.l.b16 %v3888
  %v4069 = vunpack.c.l.b16 %v3889
  %v4070 = vunpack.c.l.b16 %v3890
  %v4071 = vunpack.c.l.b16 %v3891
  %v4072 = vunpack.c.l.b16 %v3892
  %v4073 = vunpack.c.l.b16 %v3893
  %v4074 = vunpack.c.l.b16 %v3894
  %v4075 = vunpack.c.l.b16 %v3895
  %v4076 = vunpack.c.l.b16 %v3896
  %v4077 = vunpack.c.l.b16 %v3897
  %v4078 = vunpack.c.l.b16 %v3898
  %v4079 = vunpack.c.l.b16 %v3899
  %v4080 = vunpack.c.l.b16 %v3900
  %v4081 = vunpack.c.l.b16 %v3901
  %v4082 = vunpack.c.l.b16 %v3902
  %v4083 = vunpack.c.l.b16 %v3903
  %v4084 = vunpack.c.l.b16 %v3904
  %v4085 = vunpack.c.l.b16 %v3905
  %v4086 = vunpack.c.l.b16 %v3906
  %v4087 = vunpack.c.l.b16 %v3907
  %v4088 = vunpack.c.l.b16 %v3908
  %v4089 = vunpack.c.l.b16 %v3909
  %v4090 = vunpack.c.l.b16 %v3910
  %v4091 = vunpack.c.l.b16 %v3911
  %v4092 = vunpack.c.l.b16 %v3912
  %v4093 = vunpack.c.l.b16 %v3913
  %v4094 = vunpack.c.l.b16 %v3914
  %v4095 = vunpack.c.l.b16 %v3915
  %v4096 = vunpack.c.l.b16 %v3916
  %v4097 = vunpack.c.l.b16 %v3917
  %v4098 = vunpack.c.l.b16 %v3918
  %v4099 = vunpack.c.l.b16 %v3919
  %v4100 = vunpack.c.l.b16 %v3920
  %v4101 = vunpack.c.l.b16 %v3921
  %v4102 = vunpack.c.l.b16 %v3922
  %v4103 = vunpack.c.l.b16 %v3923
  %v4104 = vunpack.c.l.b16 %v3924
  %v4105 = vunpack.c.l.b16 %v3925
  %v4106 = vunpack.c.l.b16 %v3926
  %v4107 = vunpack.c.l.b16 %v3927
  %v4108 = vunpack.c.l.b16 %v3928
  %v4109 = vunpack.c.l.b16 %v3929
  %v4110 = vunpack.c.l.b16 %v3930
  %v4111 = vunpack.c.l.b16 %v3931
  %v4112 = vunpack.c.l.b16 %v3932
  %v4113 = vunpack.c.l.b16 %v3933
  %v4114 = vunpack.c.l.b16 %v3934
  %v4115 = vunpack.c.l.b16 %v3935
  %v4116 = vunpack.c.l.b16 %v3936
  %v4117 = vunpack.c.l.b16 %v3937
  %v4118 = vunpack.c.l.b16 %v3938
  %v4119 = vunpack.c.l.b16 %v3939
  %v4120 = vunpack.c.l.b16 %v3940
  %v4121 = vunpack.c.l.b16 %v3941
  %v4122 = vunpack.c.l.b16 %v3942
  %v4123 = vunpack.c.l.b16 %v3943
  %v4124 = vunpack.c.l.b16 %v3944
  %v4125 = vunpack.c.l.b16 %v3945
  %v4126 = vpack.c.b16 %v4055, %v4054
  %v4127 = vpack.c.b16 %v4057, %v4056
  %v4128 = vpack.c.b16 %v4059, %v4058
  %v4129 = vpack.c.b16 %v4061, %v4060
  %v4130 = vpack.c.b16 %v4063, %v4062
  %v4131 = vpack.c.b16 %v4065, %v4064
  %v4132 = vpack.c.b16 %v4067, %v4066
  %v4133 = vpack.c.b16 %v4069, %v4068
  %v4134 = vpack.c.b16 %v4071, %v4070
  %v4135 = vpack.c.b16 %v4073, %v4072
  %v4136 = vpack.c.b16 %v4075, %v4074
  %v4137 = vpack.c.b16 %v4077, %v4076
  %v4138 = vpack.c.b16 %v4079, %v4078
  %v4139 = vpack.c.b16 %v4081, %v4080
  %v4140 = vpack.c.b16 %v4083, %v4082
  %v4141 = vpack.c.b16 %v4085, %v4084
  %v4142 = vpack.c.b16 %v4087, %v4086
  %v4143 = vpack.c.b16 %v4089, %v4088
  %v4144 = vpack.c.b16 %v4091, %v4090
  %v4145 = vpack.c.b16 %v4093, %v4092
  %v4146 = vpack.c.b16 %v4095, %v4094
  %v4147 = vpack.c.b16 %v4097, %v4096
  %v4148 = vpack.c.b16 %v4099, %v4098
  %v4149 = vpack.c.b16 %v4101, %v4100
  %v4150 = vpack.c.b16 %v4103, %v4102
  %v4151 = vpack.c.b16 %v4105, %v4104
  %v4152 = vpack.c.b16 %v4107, %v4106
  %v4153 = vpack.c.b16 %v4109, %v4108
  %v4154 = vpack.c.b16 %v4111, %v4110
  %v4155 = vpack.c.b16 %v4113, %v4112
  %v4156 = vpack.c.b16 %v4115, %v4114
  %v4157 = vpack.c.b16 %v4117, %v4116
  %v4158 = vpack.c.b16 %v4119, %v4118
  %v4159 = vpack.c.b16 %v4121, %v4120
  %v4160 = vpack.c.b16 %v4123, %v4122
  %v4161 = vpack.c.b16 %v4125, %v4124
  %v4199 = vsel %vm2331, %v3950, 0
  %v4202 = vsel %vm2331, %v3955, 0
  %v4205 = vsel %vm2331, %v3960, 0
  %v4208 = vsel %vm2331, %v3965, 0
  %4210 = vmatpush.bf16.msra.mxu0 %v4133
  %4211 = vmatpush.bf16.msra.mxu0 %v4132
  %4212 = vmatpush.bf16.msra.mxu0 %v4131
  %4213 = vmatpush.bf16.msra.mxu0 %v4130
  %4214 = vmatpush.bf16.msra.mxu0 %v4129
  %4215 = vmatpush.bf16.msra.mxu0 %v4128
  %4216 = vmatpush.bf16.msra.mxu0 %v4127
  %4217 = vmatpush.bf16.msra.mxu0 %v4126
  %4218 = vmatmul.bf16.gmra.mxu0 %v3946
  %v4219 = vpop.f32.mrf.mxu0
  %v4220 = vadd.f32 0.0, %v4219
  %v4221 = vpop.f32.mrf.mxu0
  %v4222 = vadd.f32 0.0, %v4221
  %4223 = vmatmul.bf16.gmra.mxu0 %v3951
  %v4224 = vpop.f32.mrf.mxu0
  %v4225 = vadd.f32 0.0, %v4224
  %v4226 = vpop.f32.mrf.mxu0
  %v4227 = vadd.f32 0.0, %v4226
  %4228 = vmatmul.bf16.gmra.mxu0 %v3956
  %v4229 = vpop.f32.mrf.mxu0
  %v4230 = vadd.f32 0.0, %v4229
  %v4231 = vpop.f32.mrf.mxu0
  %v4232 = vadd.f32 0.0, %v4231
  %4233 = vmatmul.bf16.gmra.mxu0 %v3961
  %v4234 = vpop.f32.mrf.mxu0
  %v4235 = vadd.f32 0.0, %v4234
  %v4236 = vpop.f32.mrf.mxu0
  %v4237 = vadd.f32 0.0, %v4236
  %4238 = vdwg.mxu0
  %4239 = vmatpush.bf16.msra.mxu0 %v4141
  %4240 = vmatpush.bf16.msra.mxu0 %v4140
  %4241 = vmatpush.bf16.msra.mxu0 %v4139
  %4242 = vmatpush.bf16.msra.mxu0 %v4138
  %4243 = vmatpush.bf16.msra.mxu0 %v4137
  %4244 = vmatpush.bf16.msra.mxu0 %v4136
  %4245 = vmatpush.bf16.msra.mxu0 %v4135
  %4246 = vmatpush.bf16.msra.mxu0 %v4134
  %4247 = vmatmul.bf16.gmra.mxu0 %v3947
  %v4248 = vpop.f32.mrf.mxu0
  %v4249 = vadd.f32 %v4220, %v4248
  %v4250 = vpop.f32.mrf.mxu0
  %v4251 = vadd.f32 %v4222, %v4250
  %4252 = vmatmul.bf16.gmra.mxu0 %v3952
  %v4253 = vpop.f32.mrf.mxu0
  %v4254 = vadd.f32 %v4225, %v4253
  %v4255 = vpop.f32.mrf.mxu0
  %v4256 = vadd.f32 %v4227, %v4255
  %4257 = vmatmul.bf16.gmra.mxu0 %v3957
  %v4258 = vpop.f32.mrf.mxu0
  %v4259 = vadd.f32 %v4230, %v4258
  %v4260 = vpop.f32.mrf.mxu0
  %v4261 = vadd.f32 %v4232, %v4260
  %4262 = vmatmul.bf16.gmra.mxu0 %v3962
  %v4263 = vpop.f32.mrf.mxu0
  %v4264 = vadd.f32 %v4235, %v4263
  %v4265 = vpop.f32.mrf.mxu0
  %v4266 = vadd.f32 %v4237, %v4265
  %4267 = vdwg.mxu0
  %4268 = vmatpush.bf16.msra.mxu0 %v4149
  %4269 = vmatpush.bf16.msra.mxu0 %v4148
  %4270 = vmatpush.bf16.msra.mxu0 %v4147
  %4271 = vmatpush.bf16.msra.mxu0 %v4146
  %4272 = vmatpush.bf16.msra.mxu0 %v4145
  %4273 = vmatpush.bf16.msra.mxu0 %v4144
  %4274 = vmatpush.bf16.msra.mxu0 %v4143
  %4275 = vmatpush.bf16.msra.mxu0 %v4142
  %4276 = vmatmul.bf16.gmra.mxu0 %v3948
  %v4277 = vpop.f32.mrf.mxu0
  %v4278 = vadd.f32 %v4249, %v4277
  %v4279 = vpop.f32.mrf.mxu0
  %v4280 = vadd.f32 %v4251, %v4279
  %4281 = vmatmul.bf16.gmra.mxu0 %v3953
  %v4282 = vpop.f32.mrf.mxu0
  %v4283 = vadd.f32 %v4254, %v4282
  %v4284 = vpop.f32.mrf.mxu0
  %v4285 = vadd.f32 %v4256, %v4284
  %4286 = vmatmul.bf16.gmra.mxu0 %v3958
  %v4287 = vpop.f32.mrf.mxu0
  %v4288 = vadd.f32 %v4259, %v4287
  %v4289 = vpop.f32.mrf.mxu0
  %v4290 = vadd.f32 %v4261, %v4289
  %4291 = vmatmul.bf16.gmra.mxu0 %v3963
  %v4292 = vpop.f32.mrf.mxu0
  %v4293 = vadd.f32 %v4264, %v4292
  %v4294 = vpop.f32.mrf.mxu0
  %v4295 = vadd.f32 %v4266, %v4294
  %4296 = vdwg.mxu0
  %4297 = vmatpush.bf16.msra.mxu0 %v4157
  %4298 = vmatpush.bf16.msra.mxu0 %v4156
  %4299 = vmatpush.bf16.msra.mxu0 %v4155
  %4300 = vmatpush.bf16.msra.mxu0 %v4154
  %4301 = vmatpush.bf16.msra.mxu0 %v4153
  %4302 = vmatpush.bf16.msra.mxu0 %v4152
  %4303 = vmatpush.bf16.msra.mxu0 %v4151
  %4304 = vmatpush.bf16.msra.mxu0 %v4150
  %4305 = vmatmul.bf16.gmra.mxu0 %v3949
  %v4306 = vpop.f32.mrf.mxu0
  %v4307 = vadd.f32 %v4278, %v4306
  %v4308 = vpop.f32.mrf.mxu0
  %v4309 = vadd.f32 %v4280, %v4308
  %4310 = vmatmul.bf16.gmra.mxu0 %v3954
  %v4311 = vpop.f32.mrf.mxu0
  %v4312 = vadd.f32 %v4283, %v4311
  %v4313 = vpop.f32.mrf.mxu0
  %v4314 = vadd.f32 %v4285, %v4313
  %4315 = vmatmul.bf16.gmra.mxu0 %v3959
  %v4316 = vpop.f32.mrf.mxu0
  %v4317 = vadd.f32 %v4288, %v4316
  %v4318 = vpop.f32.mrf.mxu0
  %v4319 = vadd.f32 %v4290, %v4318
  %4320 = vmatmul.bf16.gmra.mxu0 %v3964
  %v4321 = vpop.f32.mrf.mxu0
  %v4322 = vadd.f32 %v4293, %v4321
  %v4323 = vpop.f32.mrf.mxu0
  %v4324 = vadd.f32 %v4295, %v4323
  %4325 = vdwg.mxu0
  %4326 = vmatpush.bf16.msra.mxu0 0
  %4327 = vmatpush.bf16.msra.mxu0 0
  %4328 = vmatpush.bf16.msra.mxu0 0
  %4329 = vmatpush.bf16.msra.mxu0 0
  %4330 = vmatpush.bf16.msra.mxu0 %v4161
  %4331 = vmatpush.bf16.msra.mxu0 %v4160
  %4332 = vmatpush.bf16.msra.mxu0 %v4159
  %4333 = vmatpush.bf16.msra.mxu0 %v4158
  %4334 = vmatmul.bf16.gmra.mxu0 %v4199
  %v4335 = vpop.f32.mrf.mxu0
  %v4336 = vadd.f32 %v4307, %v4335
  %v4337 = vpop.f32.mrf.mxu0
  %v4338 = vadd.f32 %v4309, %v4337
  %4339 = vmatmul.bf16.gmra.mxu0 %v4202
  %v4340 = vpop.f32.mrf.mxu0
  %v4341 = vadd.f32 %v4312, %v4340
  %v4342 = vpop.f32.mrf.mxu0
  %v4343 = vadd.f32 %v4314, %v4342
  %4344 = vmatmul.bf16.gmra.mxu0 %v4205
  %v4345 = vpop.f32.mrf.mxu0
  %v4346 = vadd.f32 %v4317, %v4345
  %v4347 = vpop.f32.mrf.mxu0
  %v4348 = vadd.f32 %v4319, %v4347
  %4349 = vmatmul.bf16.gmra.mxu0 %v4208
  %v4350 = vpop.f32.mrf.mxu0
  %v4351 = vadd.f32 %v4322, %v4350
  %v4352 = vpop.f32.mrf.mxu0
  %v4353 = vadd.f32 %v4324, %v4352
  %4354 = vdwg.mxu0
  %v4355 = vmax.f32 %v4336, %v4338
  %v4356 = vmax.f32 %v4341, %v4343
  %v4357 = vmax.f32 %v4346, %v4348
  %v4358 = vmax.f32 %v4351, %v4353
  %4359 = vst [vmem:[#allocation6] sm:$0xff] %v4355
  %4360 = vst [vmem:[#allocation6 + $0x8] sm:$0xff] %v4356
  %4361 = vst [vmem:[#allocation6 + $0x10] sm:$0xff] %v4357
  %4362 = vst [vmem:[#allocation6 + $0x18] sm:$0xff] %v4358
  %v4363 = vld [vmem:[#allocation6] ss:$2 sm:$0x3]
  %s4364 = scalar_lea.vmem [#allocation6], 8
  %v4365 = vld [vmem:[%s4364] ss:$2 sm:$0x3]
  %s4366 = scalar_lea.vmem [#allocation6], 16
  %v4367 = vld [vmem:[%s4366] ss:$2 sm:$0x3]
  %s4368 = scalar_lea.vmem [#allocation6], 24
  %v4369 = vld [vmem:[%s4368] ss:$2 sm:$0x3]
  %s4370 = scalar_lea.vmem [#allocation6], 1
  %v4371 = vld [vmem:[%s4370] ss:$2 sm:$0x3]
  %s4372 = scalar_lea.vmem [#allocation6], 9
  %v4373 = vld [vmem:[%s4372] ss:$2 sm:$0x3]
  %s4374 = scalar_lea.vmem [#allocation6], 17
  %v4375 = vld [vmem:[%s4374] ss:$2 sm:$0x3]
  %s4376 = scalar_lea.vmem [#allocation6], 25
  %v4377 = vld [vmem:[%s4376] ss:$2 sm:$0x3]
  %v4378 = vmax.f32 %v4363, %v4371
  %v4379 = vmax.f32 %v4365, %v4373
  %v4380 = vmax.f32 %v4367, %v4375
  %v4381 = vmax.f32 %v4369, %v4377
  %v4382 = vld [vmem:[%s6] sm:$0x1]
  %v4384 = vperm.slane %v4382, 0
  %v4386 = vadd.f32 %v4378, %v4384
  %v4387 = vadd.f32 %v4379, %v4384
  %v4388 = vadd.f32 %v4380, %v4384
  %v4389 = vadd.f32 %v4381, %v4384
  %vm4390 = vcmp.gt.f32.partialorder %v4386, 0.0
  %vm4391 = vcmp.gt.f32.partialorder %v4387, 0.0
  %vm4392 = vcmp.gt.f32.partialorder %v4388, 0.0
  %vm4393 = vcmp.gt.f32.partialorder %v4389, 0.0
  %v4394 = vmul.f32 %v4386, 0.01
  %v4395 = vmul.f32 %v4387, 0.01
  %v4396 = vmul.f32 %v4388, 0.01
  %v4397 = vmul.f32 %v4389, 0.01
  %v4398 = vsel %vm4390, %v4386, %v4394
  %v4399 = vsel %vm4391, %v4387, %v4395
  %v4400 = vsel %vm4392, %v4388, %v4396
  %v4401 = vsel %vm4393, %v4389, %v4397
  %v4402 = vld [vmem:[%s7] sm:$0x3]
  %v4403 = vld [vmem:[%s7 + $0x2] sm:$0x3]
  %v4404 = vmul.f32 %v4398, %v4402
  %v4405 = vmul.f32 %v4399, %v4403
  %v4406 = vmul.f32 %v4400, %v4402
  %v4407 = vmul.f32 %v4401, %v4403
  %v4408 = vsel %vm376, %v4404, 0.0
  %4409 = vadd.xlane.f32.xlu0 %v4408
  %v4410 = vpop.xlane.xlu0 %4409
  %v4411 = vsel %vm376, %v4405, 0.0
  %4412 = vadd.xlane.f32.xlu0 %v4411
  %v4413 = vpop.xlane.xlu0 %4412
  %v4414 = vsel %vm376, %v4406, 0.0
  %4415 = vadd.xlane.f32.xlu0 %v4414
  %v4416 = vpop.xlane.xlu0 %4415
  %v4417 = vsel %vm376, %v4407, 0.0
  %4418 = vadd.xlane.f32.xlu0 %v4417
  %v4419 = vpop.xlane.xlu0 %4418
  %v4420 = vld [vmem:[#allocation7] sm:$0x1]
  %v4421 = vadd.f32 %v4420, %v4410
  %v4422 = vadd.f32 %v4420, %v4416
  %v4425 = vperm.slane %v4410, 1
  %v4426 = vperm.slane %v4416, 1
  %v4429 = vadd.f32 %v4421, %v4425
  %v4430 = vadd.f32 %v4422, %v4426
  %v4431 = vadd.f32 %v4429, %v4413
  %v4432 = vadd.f32 %v4430, %v4419
  %v4435 = vperm.slane %v4413, 1
  %v4436 = vperm.slane %v4419, 1
  %v4439 = vadd.f32 %v4431, %v4435
  %v4440 = vadd.f32 %v4432, %v4436
  %vm4441 = vcmp.ge.f32.partialorder %v4439, 0.0
  %vm4442 = vcmp.ge.f32.partialorder %v4440, 0.0
  %v4443 = vsub.f32 0.0, %v4439
  %v4444 = vsub.f32 0.0, %v4440
  %v4445 = vmul.f32 %v4443, 1.442695
  %v4446 = vpow.pop %v4445
  %v4447 = vmul.f32 %v4444, 1.442695
  %v4448 = vpow.pop %v4447
  %v4449 = vadd.f32 %v4446, 1.0
  %v4450 = vadd.f32 %v4448, 1.0
  %v4451 = vrcp.pop %v4449
  %v4452 = vmul.f32 %v4449, %v4451
  %v4453 = vsub.f32 1.0, %v4452
  %v4454 = vmul.f32 %v4451, %v4453
  %v4455 = vadd.f32 %v4451, %v4454
  %vm4456 = vweird.f32 %v4449
  %vm4457 = vweird.f32 %v4451
  %vm4458 = vmor %vm4456, %vm4457
  %v4459 = vsel %vm4458, %v4451, %v4455
  %v4460 = vand.u32 2147483647, %v4449
  %vm4461 = vcmp.eq.f32.partialorder %v4460, 8.507059e+37
  %v4462 = vand.u32 %v4449, 2147483648
  %v4463 = vor.u32 1.1754944e-38, %v4462
  %v4464 = vsel %vm4461, %v4463, %v4459
  %v4465 = vmul.f32 1.0, %v4464
  %v4466 = vrcp.pop %v4450
  %v4467 = vmul.f32 %v4450, %v4466
  %v4468 = vsub.f32 1.0, %v4467
  %v4469 = vmul.f32 %v4466, %v4468
  %v4470 = vadd.f32 %v4466, %v4469
  %vm4471 = vweird.f32 %v4450
  %vm4472 = vweird.f32 %v4466
  %vm4473 = vmor %vm4471, %vm4472
  %v4474 = vsel %vm4473, %v4466, %v4470
  %v4475 = vand.u32 2147483647, %v4450
  %vm4476 = vcmp.eq.f32.partialorder %v4475, 8.507059e+37
  %v4477 = vand.u32 %v4450, 2147483648
  %v4478 = vor.u32 1.1754944e-38, %v4477
  %v4479 = vsel %vm4476, %v4478, %v4474
  %v4480 = vmul.f32 1.0, %v4479
  %v4481 = vmul.f32 %v4439, 1.442695
  %v4482 = vpow.pop %v4481
  %v4483 = vmul.f32 %v4440, 1.442695
  %v4484 = vpow.pop %v4483
  %v4485 = vadd.f32 %v4482, 1.0
  %v4486 = vadd.f32 %v4484, 1.0
  %v4487 = vrcp.pop %v4485
  %v4488 = vmul.f32 %v4485, %v4487
  %v4489 = vsub.f32 1.0, %v4488
  %v4490 = vmul.f32 %v4487, %v4489
  %v4491 = vadd.f32 %v4487, %v4490
  %vm4492 = vweird.f32 %v4485
  %vm4493 = vweird.f32 %v4487
  %vm4494 = vmor %vm4492, %vm4493
  %v4495 = vsel %vm4494, %v4487, %v4491
  %v4496 = vand.u32 2147483647, %v4485
  %vm4497 = vcmp.eq.f32.partialorder %v4496, 8.507059e+37
  %v4498 = vand.u32 %v4485, 2147483648
  %v4499 = vor.u32 1.1754944e-38, %v4498
  %v4500 = vsel %vm4497, %v4499, %v4495
  %v4501 = vmul.f32 %v4482, %v4500
  %v4502 = vrcp.pop %v4486
  %v4503 = vmul.f32 %v4486, %v4502
  %v4504 = vsub.f32 1.0, %v4503
  %v4505 = vmul.f32 %v4502, %v4504
  %v4506 = vadd.f32 %v4502, %v4505
  %vm4507 = vweird.f32 %v4486
  %vm4508 = vweird.f32 %v4502
  %vm4509 = vmor %vm4507, %vm4508
  %v4510 = vsel %vm4509, %v4502, %v4506
  %v4511 = vand.u32 2147483647, %v4486
  %vm4512 = vcmp.eq.f32.partialorder %v4511, 8.507059e+37
  %v4513 = vand.u32 %v4486, 2147483648
  %v4514 = vor.u32 1.1754944e-38, %v4513
  %v4515 = vsel %vm4512, %v4514, %v4510
  %v4516 = vmul.f32 %v4484, %v4515
  %v4517 = vsel %vm4441, %v4465, %v4501
  %v4518 = vsel %vm4442, %v4480, %v4516
  %vm4519 = vcmask 0
  %4520 = vst.msk [vmem:[%s9] sm:$0x1] %vm4519, %v4517
  %4521 = vst.msk [vmem:[%s9 + $0x1] sm:$0x1] %vm4519, %v4518
  // Predicated region
  $region38: #{simple_cnn_forward.1} parent=0 // pred_check
    _
  $region39: #{simple_cnn_forward.1} parent=0 // pred_check_branch
    %4523 = sbr.rel (0) target = $region41
  $region40: #{simple_cnn_forward.1} parent=0 // pred_region
    _
  $region41: #{simple_cnn_forward.1} parent=0 // pred_fallthru
    _
  // Predicated region
  $region42: #{simple_cnn_forward.1} parent=0 // pred_check
    _
  $region43: #{simple_cnn_forward.1} parent=0 // pred_check_branch
    %4525 = sbr.rel (0) target = $region45
  $region44: #{simple_cnn_forward.1} parent=0 // pred_region
    _
  $region45: #{simple_cnn_forward.1} parent=0 // pred_fallthru
    _

</llo_original>
